<compile_context>
chip_gen: v7x
topology: tpu7x:2x2x1
jax: 0.10.0
libtpu: 0.0.40
codegen_flags: <defaults>
</compile_context>

<pallas_src>
import math
from functools import partial

import jax
import jax.numpy as jnp
from jax import lax
from jax.experimental import pallas as pl
from jax.experimental.pallas import tpu as pltpu

EPS = 1e-5                                   # nn.LayerNorm default eps
_F32_MIN = float(jnp.finfo(jnp.float32).min)


def _layer_norm(x, gamma, beta):
    mean = jnp.mean(x, axis=-1, keepdims=True)
    var = jnp.mean(jnp.square(x - mean), axis=-1, keepdims=True)
    return (x - mean) * lax.rsqrt(var + EPS) * gamma + beta


def _ffn(x, g_ref, b_ref, w1_ref, b1_ref, w2_ref, b2_ref):
    """FeedForward: relu(LN(x) @ W1 + b1) @ W2 + b2   (dropout = identity)."""
    xn = _layer_norm(x, g_ref[...], b_ref[...]).astype(jnp.bfloat16)
    h = jnp.dot(xn, w1_ref[...], preferred_element_type=jnp.float32) + b1_ref[...]
    h = jnp.maximum(h, 0.0).astype(jnp.bfloat16)                     # ReLU
    return jnp.dot(h, w2_ref[...], preferred_element_type=jnp.float32) + b2_ref[...]


# ---------------------------------------------------------------------------
# Fully fused EncoderLayer kernel (one batch element per grid step)
# ---------------------------------------------------------------------------
def encoder_layer_kernel(
        len_ref,                                            # scalar prefetch (B,) i32
        x_ref, posk_ref,
        ln1_g, ln1_b, ff1_w1, ff1_b1, ff1_w2, ff1_b2,       # macaron FFN (in)
        ln2_g, ln2_b, wqkv_ref, bqkv_ref, wo_ref, bo_ref,   # MHA
        ln3_g, ln3_b, pw1_w, pw1_b, dw_w, dw_b, pw2_w, pw2_b,  # ConvModule
        ln4_g, ln4_b, ff2_w1, ff2_b1, ff2_w2, ff2_b2,       # macaron FFN (out)
        ln5_g, ln5_b,                                       # final LayerNorm
        o_ref,
        dwbuf,                                              # VMEM scratch (T+2*pad, D) f32
        *, n_head, d_k, kernel_size, exp_dtype):
    x = x_ref[0].astype(jnp.float32)                        # (T, D)
    tlen, dim = x.shape
    length = len_ref[pl.program_id(0)]                      # valid frames this batch

    # ---- macaron FeedForward (input half), residual scale 0.5 --------------
    x = x + 0.5 * _ffn(x, ln1_g, ln1_b, ff1_w1, ff1_b1, ff1_w2, ff1_b2)

    # ---- relative-position multi-head self attention (head-batched) --------
    xn = _layer_norm(x, ln2_g[...], ln2_b[...]).astype(jnp.bfloat16)
    qkv = jnp.dot(xn, wqkv_ref[...],
                  preferred_element_type=jnp.float32) + bqkv_ref[...]   # (T, 3D)
    qkv_b = qkv.astype(jnp.bfloat16)

    # head-major (h, T, d_k) operands from cheap lane slices + major-dim stack
    def heads(base):
        return jnp.stack(
            [qkv_b[:, base + hh * d_k: base + (hh + 1) * d_k]
             for hh in range(n_head)], axis=0)
    q_hb, k_hb, v_hb = heads(0), heads(dim), heads(2 * dim)             # (h, T, d_k)

    # A[h, t1, t2] = q . k  — one batched MXU dot over all heads
    A = lax.dot_general(q_hb, k_hb, (((2,), (2,)), ((0,), (0,))),
                        preferred_element_type=jnp.float32)             # (h, T, T)

    # rel-pos term: Bp_all[t1, h, t2] = sum_d q[t1,h,d] * pos_k[t1,d,t2]
    # pos_k arrives bf16, lane-dense (T, d_k, T); batch dim = t1
    q3 = qkv_b[:, :dim].reshape(tlen, n_head, d_k)
    Bp_all = lax.dot_general(q3, posk_ref[...], (((2,), (1,)), ((0,), (0,))),
                             preferred_element_type=jnp.float32)        # (T, h, T)
    Bp = jnp.stack([Bp_all[:, hh, :] for hh in range(n_head)], axis=0)  # (h, T, T)

    # key-only padding mask folded into a single additive bias (ESPnet semantics)
    col = lax.broadcasted_iota(jnp.int32, (1, 1, tlen), 2)
    key_valid = (col < length).astype(jnp.float32)                      # (1,1,T)
    bias = jnp.where(col < length, 0.0, _F32_MIN)                       # (1,1,T)

    inv_sqrt_dk = jnp.float32(1.0 / math.sqrt(d_k))
    scores = (A + Bp) * inv_sqrt_dk + bias                              # (h, T, T)
    m = jnp.max(scores, axis=-1, keepdims=True)
    e = jnp.exp((scores - m).astype(exp_dtype)).astype(jnp.float32)     # bf16 EUP on v6e/v7x
    attn = e * pl.reciprocal(jnp.sum(e, axis=-1, keepdims=True), approx=True)
    attn = (attn * key_valid).astype(jnp.bfloat16)                      # masked_fill(…, 0.0)

    ctx = lax.dot_general(attn, v_hb, (((2,), (1,)), ((0,), (0,))),
                          preferred_element_type=jnp.float32)           # (h, T, d_k)
    ctx = jnp.concatenate([ctx[hh] for hh in range(n_head)],
                          axis=-1).astype(jnp.bfloat16)                 # (T, D)
    x = x + (jnp.dot(ctx, wo_ref[...],
                     preferred_element_type=jnp.float32) + bo_ref[...])

    # ---- Conformer ConvModule ----------------------------------------------
    xn = _layer_norm(x, ln3_g[...], ln3_b[...])
    # pw_conv_1: Conv2d(1, 2, 1) == two scalar affine maps, then GLU
    u = (xn * pw1_w[0] + pw1_b[0]) * jax.nn.sigmoid(xn * pw1_w[1] + pw1_b[1])
    # depthwise Conv1d over time (groups = D), "same" zero padding via a zero-edged
    # VMEM scratch + K static sublane slices (no rolls, no per-tap selects)
    pad = (kernel_size - 1) // 2
    if pad > 0:
        zeros_edge = jnp.zeros((pad, dim), jnp.float32)
        dwbuf[0:pad, :] = zeros_edge
        dwbuf[pad + tlen:pad + tlen + pad, :] = zeros_edge
    dwbuf[pad:pad + tlen, :] = u
    acc = dw_w[0:1, :] * dwbuf[0:tlen, :]
    for kk in range(1, kernel_size):                        # static unroll, small K
        acc = acc + dw_w[kk:kk + 1, :] * dwbuf[kk:kk + tlen, :]
    y = jnp.maximum(acc + dw_b[...], 0.0)                   # ReLU
    # pw_conv_2: Conv2d(1, 1, 1) == scalar affine (dropout = identity)
    x = x + (y * pw2_w[0] + pw2_b[0])

    # ---- macaron FeedForward (output half), residual scale 0.5 -------------
    x = x + 0.5 * _ffn(x, ln4_g, ln4_b, ff2_w1, ff2_b1, ff2_w2, ff2_b2)

    # ---- final LayerNorm ----------------------------------------------------
    o_ref[0] = _layer_norm(x, ln5_g[...], ln5_b[...]).astype(o_ref.dtype)


# ---------------------------------------------------------------------------
# Generation-aware knobs (safe fallbacks everywhere)
# ---------------------------------------------------------------------------
def _bf16_exp_supported():
    """bf16 EUP exists on v6e/v7x; keep f32 exp on v5e and older (and if unknown)."""
    try:
        kind = jax.devices()[0].device_kind.lower()
    except Exception:
        return False
    return not any(tag in kind for tag in ("v2", "v3", "v4", "v5"))


def _vmem_limit_bytes():
    """~85% of physical VMEM (≈108 MiB on v5e/v6e, ≈54 MiB on v7x); safe fallback."""
    try:
        cap = getattr(pltpu.get_tpu_info(), "vmem_capacity_bytes", None)
        if cap:
            return int(cap * 0.85)
    except Exception:
        pass
    return 48 * 1024 * 1024


# ---------------------------------------------------------------------------
# pallas_call wrapper
# ---------------------------------------------------------------------------
def encoder_layer_forward(x, pos_k, lengths, params, *, n_head, kernel_size,
                          out_dtype=jnp.float32):
    """EncoderLayer.forward:
       x = x + 0.5*FF_in(x); x = x + MHA(x, pos_k, mask(lengths)); x = x + Conv(x);
       x = x + 0.5*FF_out(x); out = LN(x); return (out, pos_k, lengths)"""
    B, T, D = x.shape
    assert D % 128 == 0, "d_model must be a multiple of 128 (lane-dense stores)"
    assert D % n_head == 0, "d_model must be divisible by n_head"
    assert kernel_size % 2 == 1, "non-causal ConvModule needs an odd kernel_size"
    d_k = D // n_head
    F = params["ffn_in"]["w1"].shape[1]
    K = kernel_size
    pad = (K - 1) // 2

    # pos_k (T1, T2, d_k) f32  ->  lane-dense bf16 (T1, d_k, T2), once, outside the kernel
    pos_k_kd = jnp.swapaxes(pos_k, 1, 2).astype(jnp.bfloat16)

    def cspec(shape):
        # grid-invariant operand: constant index map, single-buffered
        n = len(shape)
        return pl.BlockSpec(shape, lambda b, lens, _n=n: (0,) * _n,
                            pipeline_mode=pl.Buffered(1))

    io_spec = pl.BlockSpec((1, T, D), lambda b, lens: (b, 0, 0))
    smem = pl.BlockSpec(memory_space=pltpu.MemorySpace.SMEM)

    p1, pm, pc, p2, pf = (params["ffn_in"], params["mha"], params["conv"],
                          params["ffn_out"], params["final_ln"])

    grid_spec = pltpu.PrefetchScalarGridSpec(
        num_scalar_prefetch=1,                    # lengths -> SMEM scalars
        grid=(B,),
        in_specs=[
            io_spec,                              # x
            cspec((T, d_k, T)),                   # pos_k (bf16, lane-dense)
            cspec((1, D)), cspec((1, D)),         # ffn_in LN
            cspec((D, F)), cspec((1, F)), cspec((F, D)), cspec((1, D)),
            cspec((1, D)), cspec((1, D)),         # mha LN
            cspec((D, 3 * D)), cspec((1, 3 * D)), # fused Wqkv / bqkv
            cspec((D, D)), cspec((1, D)),         # Wo / bo
            cspec((1, D)), cspec((1, D)),         # conv LN
            smem, smem,                           # pw1_w, pw1_b (scalars)
            cspec((K, D)), cspec((1, D)),         # depthwise conv
            smem, smem,                           # pw2_w, pw2_b (scalars)
            cspec((1, D)), cspec((1, D)),         # ffn_out LN
            cspec((D, F)), cspec((1, F)), cspec((F, D)), cspec((1, D)),
            cspec((1, D)), cspec((1, D)),         # final LN
        ],
        out_specs=io_spec,
        scratch_shapes=[pltpu.VMEM((T + 2 * pad, D), jnp.float32)],  # dw-conv pad buffer
    )

    exp_dtype = jnp.bfloat16 if _bf16_exp_supported() else jnp.float32

    out = pl.pallas_call(
        partial(encoder_layer_kernel, n_head=n_head, d_k=d_k,
                kernel_size=kernel_size, exp_dtype=exp_dtype),
        out_shape=jax.ShapeDtypeStruct((B, T, D), out_dtype),
        grid_spec=grid_spec,
        compiler_params=pltpu.CompilerParams(
            dimension_semantics=("parallel",),
            vmem_limit_bytes=_vmem_limit_bytes()),
    )(lengths,
      x, pos_k_kd,
      p1["ln_g"], p1["ln_b"], p1["w1"], p1["b1"], p1["w2"], p1["b2"],
      pm["ln_g"], pm["ln_b"], pm["wqkv"], pm["bqkv"], pm["wo"], pm["bo"],
      pc["ln_g"], pc["ln_b"], pc["pw1_w"], pc["pw1_b"], pc["dw_w"], pc["dw_b"],
      pc["pw2_w"], pc["pw2_b"],
      p2["ln_g"], p2["ln_b"], p2["w1"], p2["b1"], p2["w2"], p2["b2"],
      pf["ln_g"], pf["ln_b"])
    return out, pos_k, lengths


# ---------------------------------------------------------------------------
# Deterministic parameter init (linear weights stored as (in, out), bf16 GEMM weights)
# ---------------------------------------------------------------------------
def init_params(key, d_model, n_head, d_ffn, kernel_size):
    keys = iter(jax.random.split(key, 48))

    def nrm(shape, scale=0.1, dtype=jnp.float32):
        return (scale * jax.random.normal(next(keys), shape, jnp.float32)).astype(dtype)

    def ln():
        return {"ln_g": 1.0 + nrm((1, d_model), 0.05),
                "ln_b": nrm((1, d_model), 0.05)}

    def ffn():
        return dict(ln(),
                    w1=nrm((d_model, d_ffn), dtype=jnp.bfloat16),
                    b1=nrm((1, d_ffn)),
                    w2=nrm((d_ffn, d_model), dtype=jnp.bfloat16),
                    b2=nrm((1, d_model)))

    wq, wk, wv = (nrm((d_model, d_model)) for _ in range(3))
    bq, bk, bv = (nrm((1, d_model)) for _ in range(3))
    mha = dict(ln(),
               wqkv=jnp.concatenate([wq, wk, wv], axis=1).astype(jnp.bfloat16),
               bqkv=jnp.concatenate([bq, bk, bv], axis=1),
               wo=nrm((d_model, d_model), dtype=jnp.bfloat16),
               bo=nrm((1, d_model)))
    conv = dict(ln(),
                pw1_w=nrm((2,), 0.5), pw1_b=nrm((2,), 0.1),      # Conv2d(1,2,1)
                dw_w=nrm((kernel_size, d_model), 0.3),           # depthwise (K, D)
                dw_b=nrm((1, d_model), 0.1),
                pw2_w=1.0 + nrm((1,), 0.2), pw2_b=nrm((1,), 0.1))  # Conv2d(1,1,1)
    return {"ffn_in": ffn(), "mha": mha, "conv": conv,
            "ffn_out": ffn(), "final_ln": ln()}


if __name__ == "__main__":
    B, T = 2, 16
    d_model, n_head, d_ffn, kernel_size = 128, 4, 256, 3   # D multiple of 128 (lane-dense)
    d_k = d_model // n_head

    root = jax.random.PRNGKey(0)
    k_x, k_pos, k_par = jax.random.split(root, 3)

    x = jax.random.normal(k_x, (B, T, d_model), jnp.float32)
    pos_k = 0.1 * jax.random.normal(k_pos, (T, T, d_k), jnp.float32)  # relative pos keys
    lengths = jnp.array([T, T - 5], jnp.int32)                        # padding mask source

    params = init_params(k_par, d_model, n_head, d_ffn, kernel_size)

    out, _, _ = encoder_layer_forward(x, pos_k, lengths, params,
                                      n_head=n_head, kernel_size=kernel_size)
    out = jax.block_until_ready(out)
    assert out.shape == (B, T, d_model)
    assert bool(jnp.all(jnp.isfinite(out)))
    print("KERNEL_OK")
</pallas_src>

<mosaic_0001>
module attributes {stable_mosaic.version = 11 : i64} {
  func.func @encoder_layer_kernel(%arg0: i32, %arg1: memref<2xi32, #tpu.memory_space<smem>>, %arg2: memref<1x16x128xf32, #tpu.memory_space<vmem>>, %arg3: memref<16x32x16xbf16, #tpu.memory_space<vmem>>, %arg4: memref<1x128xf32, #tpu.memory_space<vmem>>, %arg5: memref<1x128xf32, #tpu.memory_space<vmem>>, %arg6: memref<128x256xbf16, #tpu.memory_space<vmem>>, %arg7: memref<1x256xf32, #tpu.memory_space<vmem>>, %arg8: memref<256x128xbf16, #tpu.memory_space<vmem>>, %arg9: memref<1x128xf32, #tpu.memory_space<vmem>>, %arg10: memref<1x128xf32, #tpu.memory_space<vmem>>, %arg11: memref<1x128xf32, #tpu.memory_space<vmem>>, %arg12: memref<128x384xbf16, #tpu.memory_space<vmem>>, %arg13: memref<1x384xf32, #tpu.memory_space<vmem>>, %arg14: memref<128x128xbf16, #tpu.memory_space<vmem>>, %arg15: memref<1x128xf32, #tpu.memory_space<vmem>>, %arg16: memref<1x128xf32, #tpu.memory_space<vmem>>, %arg17: memref<1x128xf32, #tpu.memory_space<vmem>>, %arg18: memref<2xf32, #tpu.memory_space<smem>>, %arg19: memref<2xf32, #tpu.memory_space<smem>>, %arg20: memref<3x128xf32, #tpu.memory_space<vmem>>, %arg21: memref<1x128xf32, #tpu.memory_space<vmem>>, %arg22: memref<1xf32, #tpu.memory_space<smem>>, %arg23: memref<1xf32, #tpu.memory_space<smem>>, %arg24: memref<1x128xf32, #tpu.memory_space<vmem>>, %arg25: memref<1x128xf32, #tpu.memory_space<vmem>>, %arg26: memref<128x256xbf16, #tpu.memory_space<vmem>>, %arg27: memref<1x256xf32, #tpu.memory_space<vmem>>, %arg28: memref<256x128xbf16, #tpu.memory_space<vmem>>, %arg29: memref<1x128xf32, #tpu.memory_space<vmem>>, %arg30: memref<1x128xf32, #tpu.memory_space<vmem>>, %arg31: memref<1x128xf32, #tpu.memory_space<vmem>>, %arg32: memref<1x16x128xf32, #tpu.memory_space<vmem>>, %arg33: memref<18x128xf32, #tpu.memory_space<vmem>>) attributes {dimension_semantics = [#tpu.dimension_semantics<parallel>], iteration_bounds = array<i64: 2>, scalar_prefetch = 1 : i64, scratch_operands = 1 : i64, tpu.core_type = #tpu.core_type<tc>, window_params = [{transform_indices = @transform_0, window_bounds = array<i64: 1, 16, 128>}, {pipeline_mode = #tpu.pipeline_mode<synchronous>, transform_indices = @transform_1, window_bounds = array<i64: 16, 32, 16>}, {pipeline_mode = #tpu.pipeline_mode<synchronous>, transform_indices = @transform_2, window_bounds = array<i64: 1, 128>}, {pipeline_mode = #tpu.pipeline_mode<synchronous>, transform_indices = @transform_3, window_bounds = array<i64: 1, 128>}, {pipeline_mode = #tpu.pipeline_mode<synchronous>, transform_indices = @transform_4, window_bounds = array<i64: 128, 256>}, {pipeline_mode = #tpu.pipeline_mode<synchronous>, transform_indices = @transform_5, window_bounds = array<i64: 1, 256>}, {pipeline_mode = #tpu.pipeline_mode<synchronous>, transform_indices = @transform_6, window_bounds = array<i64: 256, 128>}, {pipeline_mode = #tpu.pipeline_mode<synchronous>, transform_indices = @transform_7, window_bounds = array<i64: 1, 128>}, {pipeline_mode = #tpu.pipeline_mode<synchronous>, transform_indices = @transform_8, window_bounds = array<i64: 1, 128>}, {pipeline_mode = #tpu.pipeline_mode<synchronous>, transform_indices = @transform_9, window_bounds = array<i64: 1, 128>}, {pipeline_mode = #tpu.pipeline_mode<synchronous>, transform_indices = @transform_10, window_bounds = array<i64: 128, 384>}, {pipeline_mode = #tpu.pipeline_mode<synchronous>, transform_indices = @transform_11, window_bounds = array<i64: 1, 384>}, {pipeline_mode = #tpu.pipeline_mode<synchronous>, transform_indices = @transform_12, window_bounds = array<i64: 128, 128>}, {pipeline_mode = #tpu.pipeline_mode<synchronous>, transform_indices = @transform_13, window_bounds = array<i64: 1, 128>}, {pipeline_mode = #tpu.pipeline_mode<synchronous>, transform_indices = @transform_14, window_bounds = array<i64: 1, 128>}, {pipeline_mode = #tpu.pipeline_mode<synchronous>, transform_indices = @transform_15, window_bounds = array<i64: 1, 128>}, {transform_indices = @transform_16, window_bounds = array<i64: 2>}, {transform_indices = @transform_17, window_bounds = array<i64: 2>}, {pipeline_mode = #tpu.pipeline_mode<synchronous>, transform_indices = @transform_18, window_bounds = array<i64: 3, 128>}, {pipeline_mode = #tpu.pipeline_mode<synchronous>, transform_indices = @transform_19, window_bounds = array<i64: 1, 128>}, {transform_indices = @transform_20, window_bounds = array<i64: 1>}, {transform_indices = @transform_21, window_bounds = array<i64: 1>}, {pipeline_mode = #tpu.pipeline_mode<synchronous>, transform_indices = @transform_22, window_bounds = array<i64: 1, 128>}, {pipeline_mode = #tpu.pipeline_mode<synchronous>, transform_indices = @transform_23, window_bounds = array<i64: 1, 128>}, {pipeline_mode = #tpu.pipeline_mode<synchronous>, transform_indices = @transform_24, window_bounds = array<i64: 128, 256>}, {pipeline_mode = #tpu.pipeline_mode<synchronous>, transform_indices = @transform_25, window_bounds = array<i64: 1, 256>}, {pipeline_mode = #tpu.pipeline_mode<synchronous>, transform_indices = @transform_26, window_bounds = array<i64: 256, 128>}, {pipeline_mode = #tpu.pipeline_mode<synchronous>, transform_indices = @transform_27, window_bounds = array<i64: 1, 128>}, {pipeline_mode = #tpu.pipeline_mode<synchronous>, transform_indices = @transform_28, window_bounds = array<i64: 1, 128>}, {pipeline_mode = #tpu.pipeline_mode<synchronous>, transform_indices = @transform_29, window_bounds = array<i64: 1, 128>}, {transform_indices = @transform_30, window_bounds = array<i64: 1, 16, 128>}]} {
    %c0 = arith.constant 0 : index
    %c0_0 = arith.constant 0 : index
    %c0_1 = arith.constant 0 : index
    %0 = vector.load %arg2[%c0, %c0_0, %c0_1] : memref<1x16x128xf32, #tpu.memory_space<vmem>>, vector<1x16x128xf32>
    %1 = vector.shape_cast %0 : vector<1x16x128xf32> to vector<16x128xf32>
    %2 = arith.index_cast %arg0 : i32 to index
    %3 = memref.load %arg1[%2] : memref<2xi32, #tpu.memory_space<smem>>
    %c0_2 = arith.constant 0 : index
    %c0_3 = arith.constant 0 : index
    %4 = vector.load %arg4[%c0_2, %c0_3] : memref<1x128xf32, #tpu.memory_space<vmem>>, vector<1x128xf32>
    %c0_4 = arith.constant 0 : index
    %c0_5 = arith.constant 0 : index
    %5 = vector.load %arg5[%c0_4, %c0_5] : memref<1x128xf32, #tpu.memory_space<vmem>>, vector<1x128xf32>
    %cst = arith.constant dense<0.000000e+00> : vector<16xf32>
    %6 = vector.multi_reduction <add>, %1, %cst [1] : vector<16x128xf32> to vector<16xf32>
    %7 = vector.shape_cast %6 : vector<16xf32> to vector<16x1xf32>
    %cst_6 = arith.constant 1.280000e+02 : f32
    %8 = vector.broadcast %cst_6 : f32 to vector<16x1xf32>
    %9 = arith.divf %7, %8 : vector<16x1xf32>
    %10 = vector.broadcast %9 : vector<16x1xf32> to vector<16x128xf32>
    %11 = arith.subf %1, %10 : vector<16x128xf32>
    %12 = arith.mulf %11, %11 : vector<16x128xf32>
    %cst_7 = arith.constant dense<0.000000e+00> : vector<16xf32>
    %13 = vector.multi_reduction <add>, %12, %cst_7 [1] : vector<16x128xf32> to vector<16xf32>
    %14 = vector.shape_cast %13 : vector<16xf32> to vector<16x1xf32>
    %cst_8 = arith.constant 1.280000e+02 : f32
    %15 = vector.broadcast %cst_8 : f32 to vector<16x1xf32>
    %16 = arith.divf %14, %15 : vector<16x1xf32>
    %17 = vector.broadcast %9 : vector<16x1xf32> to vector<16x128xf32>
    %18 = arith.subf %1, %17 : vector<16x128xf32>
    %cst_9 = arith.constant 9.99999974E-6 : f32
    %19 = vector.broadcast %cst_9 : f32 to vector<16x1xf32>
    %20 = arith.addf %16, %19 : vector<16x1xf32>
    %21 = math.rsqrt %20 : vector<16x1xf32>
    %22 = vector.broadcast %21 : vector<16x1xf32> to vector<16x128xf32>
    %23 = arith.mulf %18, %22 : vector<16x128xf32>
    %24 = vector.broadcast %4 : vector<1x128xf32> to vector<16x128xf32>
    %25 = arith.mulf %23, %24 : vector<16x128xf32>
    %26 = vector.broadcast %5 : vector<1x128xf32> to vector<16x128xf32>
    %27 = arith.addf %25, %26 : vector<16x128xf32>
    %28 = arith.truncf %27 : vector<16x128xf32> to vector<16x128xbf16>
    %c0_10 = arith.constant 0 : index
    %c0_11 = arith.constant 0 : index
    %29 = vector.load %arg6[%c0_10, %c0_11] : memref<128x256xbf16, #tpu.memory_space<vmem>>, vector<128x256xbf16>
    %cst_12 = arith.constant dense<0.000000e+00> : vector<16x256xf32>
    %30 = tpu.matmul %28, %29, %cst_12 {dimension_numbers = #tpu.dot_dimension_numbers<[1], [0], [0], [1], [0, 0, 1, 1], [], []>} : vector<16x128xbf16>, vector<128x256xbf16>, vector<16x256xf32> -> vector<16x256xf32>
    %c0_13 = arith.constant 0 : index
    %c0_14 = arith.constant 0 : index
    %31 = vector.load %arg7[%c0_13, %c0_14] : memref<1x256xf32, #tpu.memory_space<vmem>>, vector<1x256xf32>
    %32 = vector.broadcast %31 : vector<1x256xf32> to vector<16x256xf32>
    %33 = arith.addf %30, %32 : vector<16x256xf32>
    %cst_15 = arith.constant 0.000000e+00 : f32
    %34 = vector.broadcast %cst_15 : f32 to vector<16x256xf32>
    %35 = arith.maximumf %33, %34 : vector<16x256xf32>
    %36 = arith.truncf %35 : vector<16x256xf32> to vector<16x256xbf16>
    %c0_16 = arith.constant 0 : index
    %c0_17 = arith.constant 0 : index
    %37 = vector.load %arg8[%c0_16, %c0_17] : memref<256x128xbf16, #tpu.memory_space<vmem>>, vector<256x128xbf16>
    %cst_18 = arith.constant dense<0.000000e+00> : vector<16x128xf32>
    %38 = tpu.matmul %36, %37, %cst_18 {dimension_numbers = #tpu.dot_dimension_numbers<[1], [0], [0], [1], [0, 0, 1, 1], [], []>} : vector<16x256xbf16>, vector<256x128xbf16>, vector<16x128xf32> -> vector<16x128xf32>
    %c0_19 = arith.constant 0 : index
    %c0_20 = arith.constant 0 : index
    %39 = vector.load %arg9[%c0_19, %c0_20] : memref<1x128xf32, #tpu.memory_space<vmem>>, vector<1x128xf32>
    %40 = vector.broadcast %39 : vector<1x128xf32> to vector<16x128xf32>
    %41 = arith.addf %38, %40 : vector<16x128xf32>
    %cst_21 = arith.constant 5.000000e-01 : f32
    %42 = vector.broadcast %cst_21 : f32 to vector<16x128xf32>
    %43 = arith.mulf %42, %41 : vector<16x128xf32>
    %44 = arith.addf %1, %43 : vector<16x128xf32>
    %c0_22 = arith.constant 0 : index
    %c0_23 = arith.constant 0 : index
    %45 = vector.load %arg10[%c0_22, %c0_23] : memref<1x128xf32, #tpu.memory_space<vmem>>, vector<1x128xf32>
    %c0_24 = arith.constant 0 : index
    %c0_25 = arith.constant 0 : index
    %46 = vector.load %arg11[%c0_24, %c0_25] : memref<1x128xf32, #tpu.memory_space<vmem>>, vector<1x128xf32>
    %cst_26 = arith.constant dense<0.000000e+00> : vector<16xf32>
    %47 = vector.multi_reduction <add>, %44, %cst_26 [1] : vector<16x128xf32> to vector<16xf32>
    %48 = vector.shape_cast %47 : vector<16xf32> to vector<16x1xf32>
    %cst_27 = arith.constant 1.280000e+02 : f32
    %49 = vector.broadcast %cst_27 : f32 to vector<16x1xf32>
    %50 = arith.divf %48, %49 : vector<16x1xf32>
    %51 = vector.broadcast %50 : vector<16x1xf32> to vector<16x128xf32>
    %52 = arith.subf %44, %51 : vector<16x128xf32>
    %53 = arith.mulf %52, %52 : vector<16x128xf32>
    %cst_28 = arith.constant dense<0.000000e+00> : vector<16xf32>
    %54 = vector.multi_reduction <add>, %53, %cst_28 [1] : vector<16x128xf32> to vector<16xf32>
    %55 = vector.shape_cast %54 : vector<16xf32> to vector<16x1xf32>
    %cst_29 = arith.constant 1.280000e+02 : f32
    %56 = vector.broadcast %cst_29 : f32 to vector<16x1xf32>
    %57 = arith.divf %55, %56 : vector<16x1xf32>
    %58 = vector.broadcast %50 : vector<16x1xf32> to vector<16x128xf32>
    %59 = arith.subf %44, %58 : vector<16x128xf32>
    %cst_30 = arith.constant 9.99999974E-6 : f32
    %60 = vector.broadcast %cst_30 : f32 to vector<16x1xf32>
    %61 = arith.addf %57, %60 : vector<16x1xf32>
    %62 = math.rsqrt %61 : vector<16x1xf32>
    %63 = vector.broadcast %62 : vector<16x1xf32> to vector<16x128xf32>
    %64 = arith.mulf %59, %63 : vector<16x128xf32>
    %65 = vector.broadcast %45 : vector<1x128xf32> to vector<16x128xf32>
    %66 = arith.mulf %64, %65 : vector<16x128xf32>
    %67 = vector.broadcast %46 : vector<1x128xf32> to vector<16x128xf32>
    %68 = arith.addf %66, %67 : vector<16x128xf32>
    %69 = arith.truncf %68 : vector<16x128xf32> to vector<16x128xbf16>
    %c0_31 = arith.constant 0 : index
    %c0_32 = arith.constant 0 : index
    %70 = vector.load %arg12[%c0_31, %c0_32] : memref<128x384xbf16, #tpu.memory_space<vmem>>, vector<128x384xbf16>
    %cst_33 = arith.constant dense<0.000000e+00> : vector<16x384xf32>
    %71 = tpu.matmul %69, %70, %cst_33 {dimension_numbers = #tpu.dot_dimension_numbers<[1], [0], [0], [1], [0, 0, 1, 1], [], []>} : vector<16x128xbf16>, vector<128x384xbf16>, vector<16x384xf32> -> vector<16x384xf32>
    %c0_34 = arith.constant 0 : index
    %c0_35 = arith.constant 0 : index
    %72 = vector.load %arg13[%c0_34, %c0_35] : memref<1x384xf32, #tpu.memory_space<vmem>>, vector<1x384xf32>
    %73 = vector.broadcast %72 : vector<1x384xf32> to vector<16x384xf32>
    %74 = arith.addf %71, %73 : vector<16x384xf32>
    %75 = arith.truncf %74 : vector<16x384xf32> to vector<16x384xbf16>
    %76 = vector.extract_strided_slice %75 {offsets = [0, 0], sizes = [16, 32], strides = [1, 1]} : vector<16x384xbf16> to vector<16x32xbf16>
    %77 = vector.extract_strided_slice %75 {offsets = [0, 32], sizes = [16, 32], strides = [1, 1]} : vector<16x384xbf16> to vector<16x32xbf16>
    %78 = vector.extract_strided_slice %75 {offsets = [0, 64], sizes = [16, 32], strides = [1, 1]} : vector<16x384xbf16> to vector<16x32xbf16>
    %79 = vector.extract_strided_slice %75 {offsets = [0, 96], sizes = [16, 32], strides = [1, 1]} : vector<16x384xbf16> to vector<16x32xbf16>
    %80 = vector.shape_cast %76 : vector<16x32xbf16> to vector<1x16x32xbf16>
    %81 = vector.shape_cast %77 : vector<16x32xbf16> to vector<1x16x32xbf16>
    %82 = vector.shape_cast %78 : vector<16x32xbf16> to vector<1x16x32xbf16>
    %83 = vector.shape_cast %79 : vector<16x32xbf16> to vector<1x16x32xbf16>
    %84 = tpu.concatenate %80, %81, %82, %83 in 0 : vector<1x16x32xbf16>, vector<1x16x32xbf16>, vector<1x16x32xbf16>, vector<1x16x32xbf16> -> vector<4x16x32xbf16>
    %85 = vector.extract_strided_slice %75 {offsets = [0, 128], sizes = [16, 32], strides = [1, 1]} : vector<16x384xbf16> to vector<16x32xbf16>
    %86 = vector.extract_strided_slice %75 {offsets = [0, 160], sizes = [16, 32], strides = [1, 1]} : vector<16x384xbf16> to vector<16x32xbf16>
    %87 = vector.extract_strided_slice %75 {offsets = [0, 192], sizes = [16, 32], strides = [1, 1]} : vector<16x384xbf16> to vector<16x32xbf16>
    %88 = vector.extract_strided_slice %75 {offsets = [0, 224], sizes = [16, 32], strides = [1, 1]} : vector<16x384xbf16> to vector<16x32xbf16>
    %89 = vector.shape_cast %85 : vector<16x32xbf16> to vector<1x16x32xbf16>
    %90 = vector.shape_cast %86 : vector<16x32xbf16> to vector<1x16x32xbf16>
    %91 = vector.shape_cast %87 : vector<16x32xbf16> to vector<1x16x32xbf16>
    %92 = vector.shape_cast %88 : vector<16x32xbf16> to vector<1x16x32xbf16>
    %93 = tpu.concatenate %89, %90, %91, %92 in 0 : vector<1x16x32xbf16>, vector<1x16x32xbf16>, vector<1x16x32xbf16>, vector<1x16x32xbf16> -> vector<4x16x32xbf16>
    %94 = vector.extract_strided_slice %75 {offsets = [0, 256], sizes = [16, 32], strides = [1, 1]} : vector<16x384xbf16> to vector<16x32xbf16>
    %95 = vector.extract_strided_slice %75 {offsets = [0, 288], sizes = [16, 32], strides = [1, 1]} : vector<16x384xbf16> to vector<16x32xbf16>
    %96 = vector.extract_strided_slice %75 {offsets = [0, 320], sizes = [16, 32], strides = [1, 1]} : vector<16x384xbf16> to vector<16x32xbf16>
    %97 = vector.extract_strided_slice %75 {offsets = [0, 352], sizes = [16, 32], strides = [1, 1]} : vector<16x384xbf16> to vector<16x32xbf16>
    %98 = vector.shape_cast %94 : vector<16x32xbf16> to vector<1x16x32xbf16>
    %99 = vector.shape_cast %95 : vector<16x32xbf16> to vector<1x16x32xbf16>
    %100 = vector.shape_cast %96 : vector<16x32xbf16> to vector<1x16x32xbf16>
    %101 = vector.shape_cast %97 : vector<16x32xbf16> to vector<1x16x32xbf16>
    %102 = tpu.concatenate %98, %99, %100, %101 in 0 : vector<1x16x32xbf16>, vector<1x16x32xbf16>, vector<1x16x32xbf16>, vector<1x16x32xbf16> -> vector<4x16x32xbf16>
    %cst_36 = arith.constant dense<0.000000e+00> : vector<4x16x16xf32>
    %103 = tpu.matmul %84, %93, %cst_36 {dimension_numbers = #tpu.dot_dimension_numbers<[2], [2], [1], [1], [0, 0, 0, 1, 1, 1], [0], [0]>} : vector<4x16x32xbf16>, vector<4x16x32xbf16>, vector<4x16x16xf32> -> vector<4x16x16xf32>
    %104 = vector.extract_strided_slice %75 {offsets = [0, 0], sizes = [16, 128], strides = [1, 1]} : vector<16x384xbf16> to vector<16x128xbf16>
    %105 = vector.shape_cast %104 : vector<16x128xbf16> to vector<16x4x32xbf16>
    %c0_37 = arith.constant 0 : index
    %c0_38 = arith.constant 0 : index
    %c0_39 = arith.constant 0 : index
    %106 = vector.load %arg3[%c0_37, %c0_38, %c0_39] : memref<16x32x16xbf16, #tpu.memory_space<vmem>>, vector<16x32x16xbf16>
    %cst_40 = arith.constant dense<0.000000e+00> : vector<16x4x16xf32>
    %107 = tpu.matmul %105, %106, %cst_40 {dimension_numbers = #tpu.dot_dimension_numbers<[2], [1], [1], [2], [0, 0, 0, 1, 1, 2], [0], [0]>} : vector<16x4x32xbf16>, vector<16x32x16xbf16>, vector<16x4x16xf32> -> vector<16x4x16xf32>
    %108 = vector.extract_strided_slice %107 {offsets = [0, 0, 0], sizes = [16, 1, 16], strides = [1, 1, 1]} : vector<16x4x16xf32> to vector<16x1x16xf32>
    %109 = vector.shape_cast %108 : vector<16x1x16xf32> to vector<16x16xf32>
    %110 = vector.extract_strided_slice %107 {offsets = [0, 1, 0], sizes = [16, 1, 16], strides = [1, 1, 1]} : vector<16x4x16xf32> to vector<16x1x16xf32>
    %111 = vector.shape_cast %110 : vector<16x1x16xf32> to vector<16x16xf32>
    %112 = vector.extract_strided_slice %107 {offsets = [0, 2, 0], sizes = [16, 1, 16], strides = [1, 1, 1]} : vector<16x4x16xf32> to vector<16x1x16xf32>
    %113 = vector.shape_cast %112 : vector<16x1x16xf32> to vector<16x16xf32>
    %114 = vector.extract_strided_slice %107 {offsets = [0, 3, 0], sizes = [16, 1, 16], strides = [1, 1, 1]} : vector<16x4x16xf32> to vector<16x1x16xf32>
    %115 = vector.shape_cast %114 : vector<16x1x16xf32> to vector<16x16xf32>
    %116 = vector.shape_cast %109 : vector<16x16xf32> to vector<1x16x16xf32>
    %117 = vector.shape_cast %111 : vector<16x16xf32> to vector<1x16x16xf32>
    %118 = vector.shape_cast %113 : vector<16x16xf32> to vector<1x16x16xf32>
    %119 = vector.shape_cast %115 : vector<16x16xf32> to vector<1x16x16xf32>
    %120 = tpu.concatenate %116, %117, %118, %119 in 0 : vector<1x16x16xf32>, vector<1x16x16xf32>, vector<1x16x16xf32>, vector<1x16x16xf32> -> vector<4x16x16xf32>
    %121 = tpu.iota {dimensions = array<i32: 2>} : vector<1x1x16xi32>
    %122 = vector.broadcast %3 : i32 to vector<1x1x16xi32>
    %123 = arith.cmpi slt, %121, %122 : vector<1x1x16xi32>
    %124 = arith.extui %123 : vector<1x1x16xi1> to vector<1x1x16xi32>
    %125 = arith.sitofp %124 : vector<1x1x16xi32> to vector<1x1x16xf32>
    %126 = vector.broadcast %3 : i32 to vector<1x1x16xi32>
    %127 = arith.cmpi slt, %121, %126 : vector<1x1x16xi32>
    %cst_41 = arith.constant 0.000000e+00 : f32
    %cst_42 = arith.constant -3.40282347E+38 : f32
    %128 = vector.broadcast %cst_41 : f32 to vector<1x1x16xf32>
    %129 = vector.broadcast %cst_42 : f32 to vector<1x1x16xf32>
    %130 = arith.select %127, %128, %129 : vector<1x1x16xi1>, vector<1x1x16xf32>
    %131 = arith.addf %103, %120 : vector<4x16x16xf32>
    %cst_43 = arith.constant 0.176776692 : f32
    %132 = vector.broadcast %cst_43 : f32 to vector<4x16x16xf32>
    %133 = arith.mulf %131, %132 : vector<4x16x16xf32>
    %134 = vector.broadcast %130 : vector<1x1x16xf32> to vector<4x16x16xf32>
    %135 = arith.addf %133, %134 : vector<4x16x16xf32>
    %cst_44 = arith.constant dense<0xFF800000> : vector<4x16xf32>
    %136 = vector.multi_reduction <maximumf>, %135, %cst_44 [2] : vector<4x16x16xf32> to vector<4x16xf32>
    %137 = vector.shape_cast %136 : vector<4x16xf32> to vector<4x16x1xf32>
    %138 = vector.broadcast %137 : vector<4x16x1xf32> to vector<4x16x16xf32>
    %139 = arith.subf %135, %138 : vector<4x16x16xf32>
    %140 = arith.truncf %139 : vector<4x16x16xf32> to vector<4x16x16xbf16>
    %141 = math.exp %140 : vector<4x16x16xbf16>
    %142 = arith.extf %141 : vector<4x16x16xbf16> to vector<4x16x16xf32>
    %cst_45 = arith.constant dense<0.000000e+00> : vector<4x16xf32>
    %143 = vector.multi_reduction <add>, %142, %cst_45 [2] : vector<4x16x16xf32> to vector<4x16xf32>
    %144 = vector.shape_cast %143 : vector<4x16xf32> to vector<4x16x1xf32>
    %145 = tpu.reciprocal %144 {approx = true} : vector<4x16x1xf32> -> vector<4x16x1xf32>
    %146 = vector.broadcast %145 : vector<4x16x1xf32> to vector<4x16x16xf32>
    %147 = arith.mulf %142, %146 : vector<4x16x16xf32>
    %148 = vector.broadcast %125 : vector<1x1x16xf32> to vector<4x16x16xf32>
    %149 = arith.mulf %147, %148 : vector<4x16x16xf32>
    %150 = arith.truncf %149 : vector<4x16x16xf32> to vector<4x16x16xbf16>
    %cst_46 = arith.constant dense<0.000000e+00> : vector<4x16x32xf32>
    %151 = tpu.matmul %150, %102, %cst_46 {dimension_numbers = #tpu.dot_dimension_numbers<[2], [1], [1], [2], [0, 0, 0, 1, 1, 2], [0], [0]>} : vector<4x16x16xbf16>, vector<4x16x32xbf16>, vector<4x16x32xf32> -> vector<4x16x32xf32>
    %152 = vector.extract_strided_slice %151 {offsets = [0, 0, 0], sizes = [1, 16, 32], strides = [1, 1, 1]} : vector<4x16x32xf32> to vector<1x16x32xf32>
    %153 = vector.shape_cast %152 : vector<1x16x32xf32> to vector<16x32xf32>
    %154 = vector.extract_strided_slice %151 {offsets = [1, 0, 0], sizes = [1, 16, 32], strides = [1, 1, 1]} : vector<4x16x32xf32> to vector<1x16x32xf32>
    %155 = vector.shape_cast %154 : vector<1x16x32xf32> to vector<16x32xf32>
    %156 = vector.extract_strided_slice %151 {offsets = [2, 0, 0], sizes = [1, 16, 32], strides = [1, 1, 1]} : vector<4x16x32xf32> to vector<1x16x32xf32>
    %157 = vector.shape_cast %156 : vector<1x16x32xf32> to vector<16x32xf32>
    %158 = vector.extract_strided_slice %151 {offsets = [3, 0, 0], sizes = [1, 16, 32], strides = [1, 1, 1]} : vector<4x16x32xf32> to vector<1x16x32xf32>
    %159 = vector.shape_cast %158 : vector<1x16x32xf32> to vector<16x32xf32>
    %160 = tpu.concatenate %153, %155, %157, %159 in 1 : vector<16x32xf32>, vector<16x32xf32>, vector<16x32xf32>, vector<16x32xf32> -> vector<16x128xf32>
    %161 = arith.truncf %160 : vector<16x128xf32> to vector<16x128xbf16>
    %c0_47 = arith.constant 0 : index
    %c0_48 = arith.constant 0 : index
    %162 = vector.load %arg14[%c0_47, %c0_48] : memref<128x128xbf16, #tpu.memory_space<vmem>>, vector<128x128xbf16>
    %cst_49 = arith.constant dense<0.000000e+00> : vector<16x128xf32>
    %163 = tpu.matmul %161, %162, %cst_49 {dimension_numbers = #tpu.dot_dimension_numbers<[1], [0], [0], [1], [0, 0, 1, 1], [], []>} : vector<16x128xbf16>, vector<128x128xbf16>, vector<16x128xf32> -> vector<16x128xf32>
    %c0_50 = arith.constant 0 : index
    %c0_51 = arith.constant 0 : index
    %164 = vector.load %arg15[%c0_50, %c0_51] : memref<1x128xf32, #tpu.memory_space<vmem>>, vector<1x128xf32>
    %165 = vector.broadcast %164 : vector<1x128xf32> to vector<16x128xf32>
    %166 = arith.addf %163, %165 : vector<16x128xf32>
    %167 = arith.addf %44, %166 : vector<16x128xf32>
    %c0_52 = arith.constant 0 : index
    %c0_53 = arith.constant 0 : index
    %168 = vector.load %arg16[%c0_52, %c0_53] : memref<1x128xf32, #tpu.memory_space<vmem>>, vector<1x128xf32>
    %c0_54 = arith.constant 0 : index
    %c0_55 = arith.constant 0 : index
    %169 = vector.load %arg17[%c0_54, %c0_55] : memref<1x128xf32, #tpu.memory_space<vmem>>, vector<1x128xf32>
    %cst_56 = arith.constant dense<0.000000e+00> : vector<16xf32>
    %170 = vector.multi_reduction <add>, %167, %cst_56 [1] : vector<16x128xf32> to vector<16xf32>
    %171 = vector.shape_cast %170 : vector<16xf32> to vector<16x1xf32>
    %cst_57 = arith.constant 1.280000e+02 : f32
    %172 = vector.broadcast %cst_57 : f32 to vector<16x1xf32>
    %173 = arith.divf %171, %172 : vector<16x1xf32>
    %174 = vector.broadcast %173 : vector<16x1xf32> to vector<16x128xf32>
    %175 = arith.subf %167, %174 : vector<16x128xf32>
    %176 = arith.mulf %175, %175 : vector<16x128xf32>
    %cst_58 = arith.constant dense<0.000000e+00> : vector<16xf32>
    %177 = vector.multi_reduction <add>, %176, %cst_58 [1] : vector<16x128xf32> to vector<16xf32>
    %178 = vector.shape_cast %177 : vector<16xf32> to vector<16x1xf32>
    %cst_59 = arith.constant 1.280000e+02 : f32
    %179 = vector.broadcast %cst_59 : f32 to vector<16x1xf32>
    %180 = arith.divf %178, %179 : vector<16x1xf32>
    %181 = vector.broadcast %173 : vector<16x1xf32> to vector<16x128xf32>
    %182 = arith.subf %167, %181 : vector<16x128xf32>
    %cst_60 = arith.constant 9.99999974E-6 : f32
    %183 = vector.broadcast %cst_60 : f32 to vector<16x1xf32>
    %184 = arith.addf %180, %183 : vector<16x1xf32>
    %185 = math.rsqrt %184 : vector<16x1xf32>
    %186 = vector.broadcast %185 : vector<16x1xf32> to vector<16x128xf32>
    %187 = arith.mulf %182, %186 : vector<16x128xf32>
    %188 = vector.broadcast %168 : vector<1x128xf32> to vector<16x128xf32>
    %189 = arith.mulf %187, %188 : vector<16x128xf32>
    %190 = vector.broadcast %169 : vector<1x128xf32> to vector<16x128xf32>
    %191 = arith.addf %189, %190 : vector<16x128xf32>
    %c0_61 = arith.constant 0 : index
    %192 = memref.load %arg18[%c0_61] : memref<2xf32, #tpu.memory_space<smem>>
    %193 = vector.broadcast %192 : f32 to vector<16x128xf32>
    %194 = arith.mulf %191, %193 : vector<16x128xf32>
    %c0_62 = arith.constant 0 : index
    %195 = memref.load %arg19[%c0_62] : memref<2xf32, #tpu.memory_space<smem>>
    %196 = vector.broadcast %195 : f32 to vector<16x128xf32>
    %197 = arith.addf %194, %196 : vector<16x128xf32>
    %c1 = arith.constant 1 : index
    %198 = memref.load %arg18[%c1] : memref<2xf32, #tpu.memory_space<smem>>
    %199 = vector.broadcast %198 : f32 to vector<16x128xf32>
    %200 = arith.mulf %191, %199 : vector<16x128xf32>
    %c1_63 = arith.constant 1 : index
    %201 = memref.load %arg19[%c1_63] : memref<2xf32, #tpu.memory_space<smem>>
    %202 = vector.broadcast %201 : f32 to vector<16x128xf32>
    %203 = arith.addf %200, %202 : vector<16x128xf32>
    %204 = arith.negf %203 : vector<16x128xf32>
    %205 = math.exp %204 : vector<16x128xf32>
    %cst_64 = arith.constant 1.000000e+00 : f32
    %206 = vector.broadcast %cst_64 : f32 to vector<16x128xf32>
    %207 = arith.addf %206, %205 : vector<16x128xf32>
    %208 = arith.divf %206, %207 : vector<16x128xf32>
    %209 = arith.mulf %197, %208 : vector<16x128xf32>
    %cst_65 = arith.constant 0.000000e+00 : f32
    %210 = vector.broadcast %cst_65 : f32 to vector<1x128xf32>
    %c0_66 = arith.constant 0 : index
    %c0_67 = arith.constant 0 : index
    %211 = vector.load %arg33[%c0_66, %c0_67] : memref<18x128xf32, #tpu.memory_space<vmem>>, vector<1x128xf32>
    tpu.vector_store %arg33[%c0_66, %c0_67], %210 {strides = array<i32>} : memref<18x128xf32, #tpu.memory_space<vmem>>, vector<1x128xf32>,
    %c17 = arith.constant 17 : index
    %c0_68 = arith.constant 0 : index
    %212 = vector.load %arg33[%c17, %c0_68] : memref<18x128xf32, #tpu.memory_space<vmem>>, vector<1x128xf32>
    tpu.vector_store %arg33[%c17, %c0_68], %210 {strides = array<i32>} : memref<18x128xf32, #tpu.memory_space<vmem>>, vector<1x128xf32>,
    %c1_69 = arith.constant 1 : index
    %c0_70 = arith.constant 0 : index
    %213 = vector.load %arg33[%c1_69, %c0_70] : memref<18x128xf32, #tpu.memory_space<vmem>>, vector<16x128xf32>
    tpu.vector_store %arg33[%c1_69, %c0_70], %209 {strides = array<i32>} : memref<18x128xf32, #tpu.memory_space<vmem>>, vector<16x128xf32>,
    %c0_71 = arith.constant 0 : index
    %c0_72 = arith.constant 0 : index
    %214 = vector.load %arg20[%c0_71, %c0_72] : memref<3x128xf32, #tpu.memory_space<vmem>>, vector<1x128xf32>
    %c0_73 = arith.constant 0 : index
    %c0_74 = arith.constant 0 : index
    %215 = vector.load %arg33[%c0_73, %c0_74] : memref<18x128xf32, #tpu.memory_space<vmem>>, vector<16x128xf32>
    %216 = vector.broadcast %214 : vector<1x128xf32> to vector<16x128xf32>
    %217 = arith.mulf %216, %215 : vector<16x128xf32>
    %c1_75 = arith.constant 1 : index
    %c0_76 = arith.constant 0 : index
    %218 = vector.load %arg20[%c1_75, %c0_76] : memref<3x128xf32, #tpu.memory_space<vmem>>, vector<1x128xf32>
    %c1_77 = arith.constant 1 : index
    %c0_78 = arith.constant 0 : index
    %219 = vector.load %arg33[%c1_77, %c0_78] : memref<18x128xf32, #tpu.memory_space<vmem>>, vector<16x128xf32>
    %220 = vector.broadcast %218 : vector<1x128xf32> to vector<16x128xf32>
    %221 = arith.mulf %220, %219 : vector<16x128xf32>
    %222 = arith.addf %217, %221 : vector<16x128xf32>
    %c2 = arith.constant 2 : index
    %c0_79 = arith.constant 0 : index
    %223 = vector.load %arg20[%c2, %c0_79] : memref<3x128xf32, #tpu.memory_space<vmem>>, vector<1x128xf32>
    %c2_80 = arith.constant 2 : index
    %c0_81 = arith.constant 0 : index
    %224 = vector.load %arg33[%c2_80, %c0_81] : memref<18x128xf32, #tpu.memory_space<vmem>>, vector<16x128xf32>
    %225 = vector.broadcast %223 : vector<1x128xf32> to vector<16x128xf32>
    %226 = arith.mulf %225, %224 : vector<16x128xf32>
    %227 = arith.addf %222, %226 : vector<16x128xf32>
    %c0_82 = arith.constant 0 : index
    %c0_83 = arith.constant 0 : index
    %228 = vector.load %arg21[%c0_82, %c0_83] : memref<1x128xf32, #tpu.memory_space<vmem>>, vector<1x128xf32>
    %229 = vector.broadcast %228 : vector<1x128xf32> to vector<16x128xf32>
    %230 = arith.addf %227, %229 : vector<16x128xf32>
    %cst_84 = arith.constant 0.000000e+00 : f32
    %231 = vector.broadcast %cst_84 : f32 to vector<16x128xf32>
    %232 = arith.maximumf %230, %231 : vector<16x128xf32>
    %c0_85 = arith.constant 0 : index
    %233 = memref.load %arg22[%c0_85] : memref<1xf32, #tpu.memory_space<smem>>
    %234 = vector.broadcast %233 : f32 to vector<16x128xf32>
    %235 = arith.mulf %232, %234 : vector<16x128xf32>
    %c0_86 = arith.constant 0 : index
    %236 = memref.load %arg23[%c0_86] : memref<1xf32, #tpu.memory_space<smem>>
    %237 = vector.broadcast %236 : f32 to vector<16x128xf32>
    %238 = arith.addf %235, %237 : vector<16x128xf32>
    %239 = arith.addf %167, %238 : vector<16x128xf32>
    %c0_87 = arith.constant 0 : index
    %c0_88 = arith.constant 0 : index
    %240 = vector.load %arg24[%c0_87, %c0_88] : memref<1x128xf32, #tpu.memory_space<vmem>>, vector<1x128xf32>
    %c0_89 = arith.constant 0 : index
    %c0_90 = arith.constant 0 : index
    %241 = vector.load %arg25[%c0_89, %c0_90] : memref<1x128xf32, #tpu.memory_space<vmem>>, vector<1x128xf32>
    %cst_91 = arith.constant dense<0.000000e+00> : vector<16xf32>
    %242 = vector.multi_reduction <add>, %239, %cst_91 [1] : vector<16x128xf32> to vector<16xf32>
    %243 = vector.shape_cast %242 : vector<16xf32> to vector<16x1xf32>
    %cst_92 = arith.constant 1.280000e+02 : f32
    %244 = vector.broadcast %cst_92 : f32 to vector<16x1xf32>
    %245 = arith.divf %243, %244 : vector<16x1xf32>
    %246 = vector.broadcast %245 : vector<16x1xf32> to vector<16x128xf32>
    %247 = arith.subf %239, %246 : vector<16x128xf32>
    %248 = arith.mulf %247, %247 : vector<16x128xf32>
    %cst_93 = arith.constant dense<0.000000e+00> : vector<16xf32>
    %249 = vector.multi_reduction <add>, %248, %cst_93 [1] : vector<16x128xf32> to vector<16xf32>
    %250 = vector.shape_cast %249 : vector<16xf32> to vector<16x1xf32>
    %cst_94 = arith.constant 1.280000e+02 : f32
    %251 = vector.broadcast %cst_94 : f32 to vector<16x1xf32>
    %252 = arith.divf %250, %251 : vector<16x1xf32>
    %253 = vector.broadcast %245 : vector<16x1xf32> to vector<16x128xf32>
    %254 = arith.subf %239, %253 : vector<16x128xf32>
    %cst_95 = arith.constant 9.99999974E-6 : f32
    %255 = vector.broadcast %cst_95 : f32 to vector<16x1xf32>
    %256 = arith.addf %252, %255 : vector<16x1xf32>
    %257 = math.rsqrt %256 : vector<16x1xf32>
    %258 = vector.broadcast %257 : vector<16x1xf32> to vector<16x128xf32>
    %259 = arith.mulf %254, %258 : vector<16x128xf32>
    %260 = vector.broadcast %240 : vector<1x128xf32> to vector<16x128xf32>
    %261 = arith.mulf %259, %260 : vector<16x128xf32>
    %262 = vector.broadcast %241 : vector<1x128xf32> to vector<16x128xf32>
    %263 = arith.addf %261, %262 : vector<16x128xf32>
    %264 = arith.truncf %263 : vector<16x128xf32> to vector<16x128xbf16>
    %c0_96 = arith.constant 0 : index
    %c0_97 = arith.constant 0 : index
    %265 = vector.load %arg26[%c0_96, %c0_97] : memref<128x256xbf16, #tpu.memory_space<vmem>>, vector<128x256xbf16>
    %cst_98 = arith.constant dense<0.000000e+00> : vector<16x256xf32>
    %266 = tpu.matmul %264, %265, %cst_98 {dimension_numbers = #tpu.dot_dimension_numbers<[1], [0], [0], [1], [0, 0, 1, 1], [], []>} : vector<16x128xbf16>, vector<128x256xbf16>, vector<16x256xf32> -> vector<16x256xf32>
    %c0_99 = arith.constant 0 : index
    %c0_100 = arith.constant 0 : index
    %267 = vector.load %arg27[%c0_99, %c0_100] : memref<1x256xf32, #tpu.memory_space<vmem>>, vector<1x256xf32>
    %268 = vector.broadcast %267 : vector<1x256xf32> to vector<16x256xf32>
    %269 = arith.addf %266, %268 : vector<16x256xf32>
    %cst_101 = arith.constant 0.000000e+00 : f32
    %270 = vector.broadcast %cst_101 : f32 to vector<16x256xf32>
    %271 = arith.maximumf %269, %270 : vector<16x256xf32>
    %272 = arith.truncf %271 : vector<16x256xf32> to vector<16x256xbf16>
    %c0_102 = arith.constant 0 : index
    %c0_103 = arith.constant 0 : index
    %273 = vector.load %arg28[%c0_102, %c0_103] : memref<256x128xbf16, #tpu.memory_space<vmem>>, vector<256x128xbf16>
    %cst_104 = arith.constant dense<0.000000e+00> : vector<16x128xf32>
    %274 = tpu.matmul %272, %273, %cst_104 {dimension_numbers = #tpu.dot_dimension_numbers<[1], [0], [0], [1], [0, 0, 1, 1], [], []>} : vector<16x256xbf16>, vector<256x128xbf16>, vector<16x128xf32> -> vector<16x128xf32>
    %c0_105 = arith.constant 0 : index
    %c0_106 = arith.constant 0 : index
    %275 = vector.load %arg29[%c0_105, %c0_106] : memref<1x128xf32, #tpu.memory_space<vmem>>, vector<1x128xf32>
    %276 = vector.broadcast %275 : vector<1x128xf32> to vector<16x128xf32>
    %277 = arith.addf %274, %276 : vector<16x128xf32>
    %cst_107 = arith.constant 5.000000e-01 : f32
    %278 = vector.broadcast %cst_107 : f32 to vector<16x128xf32>
    %279 = arith.mulf %278, %277 : vector<16x128xf32>
    %280 = arith.addf %239, %279 : vector<16x128xf32>
    %c0_108 = arith.constant 0 : index
    %c0_109 = arith.constant 0 : index
    %281 = vector.load %arg30[%c0_108, %c0_109] : memref<1x128xf32, #tpu.memory_space<vmem>>, vector<1x128xf32>
    %c0_110 = arith.constant 0 : index
    %c0_111 = arith.constant 0 : index
    %282 = vector.load %arg31[%c0_110, %c0_111] : memref<1x128xf32, #tpu.memory_space<vmem>>, vector<1x128xf32>
    %cst_112 = arith.constant dense<0.000000e+00> : vector<16xf32>
    %283 = vector.multi_reduction <add>, %280, %cst_112 [1] : vector<16x128xf32> to vector<16xf32>
    %284 = vector.shape_cast %283 : vector<16xf32> to vector<16x1xf32>
    %cst_113 = arith.constant 1.280000e+02 : f32
    %285 = vector.broadcast %cst_113 : f32 to vector<16x1xf32>
    %286 = arith.divf %284, %285 : vector<16x1xf32>
    %287 = vector.broadcast %286 : vector<16x1xf32> to vector<16x128xf32>
    %288 = arith.subf %280, %287 : vector<16x128xf32>
    %289 = arith.mulf %288, %288 : vector<16x128xf32>
    %cst_114 = arith.constant dense<0.000000e+00> : vector<16xf32>
    %290 = vector.multi_reduction <add>, %289, %cst_114 [1] : vector<16x128xf32> to vector<16xf32>
    %291 = vector.shape_cast %290 : vector<16xf32> to vector<16x1xf32>
    %cst_115 = arith.constant 1.280000e+02 : f32
    %292 = vector.broadcast %cst_115 : f32 to vector<16x1xf32>
    %293 = arith.divf %291, %292 : vector<16x1xf32>
    %294 = vector.broadcast %286 : vector<16x1xf32> to vector<16x128xf32>
    %295 = arith.subf %280, %294 : vector<16x128xf32>
    %cst_116 = arith.constant 9.99999974E-6 : f32
    %296 = vector.broadcast %cst_116 : f32 to vector<16x1xf32>
    %297 = arith.addf %293, %296 : vector<16x1xf32>
    %298 = math.rsqrt %297 : vector<16x1xf32>
    %299 = vector.broadcast %298 : vector<16x1xf32> to vector<16x128xf32>
    %300 = arith.mulf %295, %299 : vector<16x128xf32>
    %301 = vector.broadcast %281 : vector<1x128xf32> to vector<16x128xf32>
    %302 = arith.mulf %300, %301 : vector<16x128xf32>
    %303 = vector.broadcast %282 : vector<1x128xf32> to vector<16x128xf32>
    %304 = arith.addf %302, %303 : vector<16x128xf32>
    %c0_117 = arith.constant 0 : index
    %c0_118 = arith.constant 0 : index
    %c0_119 = arith.constant 0 : index
    %305 = vector.load %arg32[%c0_117, %c0_118, %c0_119] : memref<1x16x128xf32, #tpu.memory_space<vmem>>, vector<1x16x128xf32>
    %306 = vector.shape_cast %305 : vector<1x16x128xf32> to vector<16x128xf32>
    %307 = vector.shape_cast %304 : vector<16x128xf32> to vector<1x16x128xf32>
    tpu.vector_store %arg32[%c0_117, %c0_118, %c0_119], %307 {strides = array<i32>} : memref<1x16x128xf32, #tpu.memory_space<vmem>>, vector<1x16x128xf32>,
    return
  }
  func.func @transform_0(%arg0: i32, %arg1: memref<2xi32, #tpu.memory_space<smem>>) -> (i32, i32, i32) {
    %c0_i32 = arith.constant 0 : i32
    %c0_i32_0 = arith.constant 0 : i32
    %c0_i32_1 = arith.constant 0 : i32
    return %arg0, %c0_i32, %c0_i32_0 : i32, i32, i32
  }
  func.func @transform_1(%arg0: i32, %arg1: memref<2xi32, #tpu.memory_space<smem>>) -> (i32, i32, i32) {
    %c0_i32 = arith.constant 0 : i32
    %c0_i32_0 = arith.constant 0 : i32
    %c0_i32_1 = arith.constant 0 : i32
    %c0_i32_2 = arith.constant 0 : i32
    return %c0_i32, %c0_i32_0, %c0_i32_1 : i32, i32, i32
  }
  func.func @transform_2(%arg0: i32, %arg1: memref<2xi32, #tpu.memory_space<smem>>) -> (i32, i32) {
    %c0_i32 = arith.constant 0 : i32
    %c0_i32_0 = arith.constant 0 : i32
    %c0_i32_1 = arith.constant 0 : i32
    return %c0_i32, %c0_i32_0 : i32, i32
  }
  func.func @transform_3(%arg0: i32, %arg1: memref<2xi32, #tpu.memory_space<smem>>) -> (i32, i32) {
    %c0_i32 = arith.constant 0 : i32
    %c0_i32_0 = arith.constant 0 : i32
    %c0_i32_1 = arith.constant 0 : i32
    return %c0_i32, %c0_i32_0 : i32, i32
  }
  func.func @transform_4(%arg0: i32, %arg1: memref<2xi32, #tpu.memory_space<smem>>) -> (i32, i32) {
    %c0_i32 = arith.constant 0 : i32
    %c0_i32_0 = arith.constant 0 : i32
    %c0_i32_1 = arith.constant 0 : i32
    return %c0_i32, %c0_i32_0 : i32, i32
  }
  func.func @transform_5(%arg0: i32, %arg1: memref<2xi32, #tpu.memory_space<smem>>) -> (i32, i32) {
    %c0_i32 = arith.constant 0 : i32
    %c0_i32_0 = arith.constant 0 : i32
    %c0_i32_1 = arith.constant 0 : i32
    return %c0_i32, %c0_i32_0 : i32, i32
  }
  func.func @transform_6(%arg0: i32, %arg1: memref<2xi32, #tpu.memory_space<smem>>) -> (i32, i32) {
    %c0_i32 = arith.constant 0 : i32
    %c0_i32_0 = arith.constant 0 : i32
    %c0_i32_1 = arith.constant 0 : i32
    return %c0_i32, %c0_i32_0 : i32, i32
  }
  func.func @transform_7(%arg0: i32, %arg1: memref<2xi32, #tpu.memory_space<smem>>) -> (i32, i32) {
    %c0_i32 = arith.constant 0 : i32
    %c0_i32_0 = arith.constant 0 : i32
    %c0_i32_1 = arith.constant 0 : i32
    return %c0_i32, %c0_i32_0 : i32, i32
  }
  func.func @transform_8(%arg0: i32, %arg1: memref<2xi32, #tpu.memory_space<smem>>) -> (i32, i32) {
    %c0_i32 = arith.constant 0 : i32
    %c0_i32_0 = arith.constant 0 : i32
    %c0_i32_1 = arith.constant 0 : i32
    return %c0_i32, %c0_i32_0 : i32, i32
  }
  func.func @transform_9(%arg0: i32, %arg1: memref<2xi32, #tpu.memory_space<smem>>) -> (i32, i32) {
    %c0_i32 = arith.constant 0 : i32
    %c0_i32_0 = arith.constant 0 : i32
    %c0_i32_1 = arith.constant 0 : i32
    return %c0_i32, %c0_i32_0 : i32, i32
  }
  func.func @transform_10(%arg0: i32, %arg1: memref<2xi32, #tpu.memory_space<smem>>) -> (i32, i32) {
    %c0_i32 = arith.constant 0 : i32
    %c0_i32_0 = arith.constant 0 : i32
    %c0_i32_1 = arith.constant 0 : i32
    return %c0_i32, %c0_i32_0 : i32, i32
  }
  func.func @transform_11(%arg0: i32, %arg1: memref<2xi32, #tpu.memory_space<smem>>) -> (i32, i32) {
    %c0_i32 = arith.constant 0 : i32
    %c0_i32_0 = arith.constant 0 : i32
    %c0_i32_1 = arith.constant 0 : i32
    return %c0_i32, %c0_i32_0 : i32, i32
  }
  func.func @transform_12(%arg0: i32, %arg1: memref<2xi32, #tpu.memory_space<smem>>) -> (i32, i32) {
    %c0_i32 = arith.constant 0 : i32
    %c0_i32_0 = arith.constant 0 : i32
    %c0_i32_1 = arith.constant 0 : i32
    return %c0_i32, %c0_i32_0 : i32, i32
  }
  func.func @transform_13(%arg0: i32, %arg1: memref<2xi32, #tpu.memory_space<smem>>) -> (i32, i32) {
    %c0_i32 = arith.constant 0 : i32
    %c0_i32_0 = arith.constant 0 : i32
    %c0_i32_1 = arith.constant 0 : i32
    return %c0_i32, %c0_i32_0 : i32, i32
  }
  func.func @transform_14(%arg0: i32, %arg1: memref<2xi32, #tpu.memory_space<smem>>) -> (i32, i32) {
    %c0_i32 = arith.constant 0 : i32
    %c0_i32_0 = arith.constant 0 : i32
    %c0_i32_1 = arith.constant 0 : i32
    return %c0_i32, %c0_i32_0 : i32, i32
  }
  func.func @transform_15(%arg0: i32, %arg1: memref<2xi32, #tpu.memory_space<smem>>) -> (i32, i32) {
    %c0_i32 = arith.constant 0 : i32
    %c0_i32_0 = arith.constant 0 : i32
    %c0_i32_1 = arith.constant 0 : i32
    return %c0_i32, %c0_i32_0 : i32, i32
  }
  func.func @transform_16(%arg0: i32, %arg1: memref<2xi32, #tpu.memory_space<smem>>) -> i32 {
    %c0_i32 = arith.constant 0 : i32
    %c0_i32_0 = arith.constant 0 : i32
    return %c0_i32 : i32
  }
  func.func @transform_17(%arg0: i32, %arg1: memref<2xi32, #tpu.memory_space<smem>>) -> i32 {
    %c0_i32 = arith.constant 0 : i32
    %c0_i32_0 = arith.constant 0 : i32
    return %c0_i32 : i32
  }
  func.func @transform_18(%arg0: i32, %arg1: memref<2xi32, #tpu.memory_space<smem>>) -> (i32, i32) {
    %c0_i32 = arith.constant 0 : i32
    %c0_i32_0 = arith.constant 0 : i32
    %c0_i32_1 = arith.constant 0 : i32
    return %c0_i32, %c0_i32_0 : i32, i32
  }
  func.func @transform_19(%arg0: i32, %arg1: memref<2xi32, #tpu.memory_space<smem>>) -> (i32, i32) {
    %c0_i32 = arith.constant 0 : i32
    %c0_i32_0 = arith.constant 0 : i32
    %c0_i32_1 = arith.constant 0 : i32
    return %c0_i32, %c0_i32_0 : i32, i32
  }
  func.func @transform_20(%arg0: i32, %arg1: memref<2xi32, #tpu.memory_space<smem>>) -> i32 {
    %c0_i32 = arith.constant 0 : i32
    %c0_i32_0 = arith.constant 0 : i32
    return %c0_i32 : i32
  }
  func.func @transform_21(%arg0: i32, %arg1: memref<2xi32, #tpu.memory_space<smem>>) -> i32 {
    %c0_i32 = arith.constant 0 : i32
    %c0_i32_0 = arith.constant 0 : i32
    return %c0_i32 : i32
  }
  func.func @transform_22(%arg0: i32, %arg1: memref<2xi32, #tpu.memory_space<smem>>) -> (i32, i32) {
    %c0_i32 = arith.constant 0 : i32
    %c0_i32_0 = arith.constant 0 : i32
    %c0_i32_1 = arith.constant 0 : i32
    return %c0_i32, %c0_i32_0 : i32, i32
  }
  func.func @transform_23(%arg0: i32, %arg1: memref<2xi32, #tpu.memory_space<smem>>) -> (i32, i32) {
    %c0_i32 = arith.constant 0 : i32
    %c0_i32_0 = arith.constant 0 : i32
    %c0_i32_1 = arith.constant 0 : i32
    return %c0_i32, %c0_i32_0 : i32, i32
  }
  func.func @transform_24(%arg0: i32, %arg1: memref<2xi32, #tpu.memory_space<smem>>) -> (i32, i32) {
    %c0_i32 = arith.constant 0 : i32
    %c0_i32_0 = arith.constant 0 : i32
    %c0_i32_1 = arith.constant 0 : i32
    return %c0_i32, %c0_i32_0 : i32, i32
  }
  func.func @transform_25(%arg0: i32, %arg1: memref<2xi32, #tpu.memory_space<smem>>) -> (i32, i32) {
    %c0_i32 = arith.constant 0 : i32
    %c0_i32_0 = arith.constant 0 : i32
    %c0_i32_1 = arith.constant 0 : i32
    return %c0_i32, %c0_i32_0 : i32, i32
  }
  func.func @transform_26(%arg0: i32, %arg1: memref<2xi32, #tpu.memory_space<smem>>) -> (i32, i32) {
    %c0_i32 = arith.constant 0 : i32
    %c0_i32_0 = arith.constant 0 : i32
    %c0_i32_1 = arith.constant 0 : i32
    return %c0_i32, %c0_i32_0 : i32, i32
  }
  func.func @transform_27(%arg0: i32, %arg1: memref<2xi32, #tpu.memory_space<smem>>) -> (i32, i32) {
    %c0_i32 = arith.constant 0 : i32
    %c0_i32_0 = arith.constant 0 : i32
    %c0_i32_1 = arith.constant 0 : i32
    return %c0_i32, %c0_i32_0 : i32, i32
  }
  func.func @transform_28(%arg0: i32, %arg1: memref<2xi32, #tpu.memory_space<smem>>) -> (i32, i32) {
    %c0_i32 = arith.constant 0 : i32
    %c0_i32_0 = arith.constant 0 : i32
    %c0_i32_1 = arith.constant 0 : i32
    return %c0_i32, %c0_i32_0 : i32, i32
  }
  func.func @transform_29(%arg0: i32, %arg1: memref<2xi32, #tpu.memory_space<smem>>) -> (i32, i32) {
    %c0_i32 = arith.constant 0 : i32
    %c0_i32_0 = arith.constant 0 : i32
    %c0_i32_1 = arith.constant 0 : i32
    return %c0_i32, %c0_i32_0 : i32, i32
  }
  func.func @transform_30(%arg0: i32, %arg1: memref<2xi32, #tpu.memory_space<smem>>) -> (i32, i32, i32) {
    %c0_i32 = arith.constant 0 : i32
    %c0_i32_0 = arith.constant 0 : i32
    %c0_i32_1 = arith.constant 0 : i32
    return %arg0, %c0_i32, %c0_i32_0 : i32, i32, i32
  }
}

</mosaic_0001>

<llo_original>
// kernel: tpu_custom_call.1
$region0: #{tpu_custom_call.1}
  #allocation0 [shape = 'u32[]', space=smem, size = 0x4, offset = 0x4, fixed_abs, tag = 'smem constant byte address 0x4 - core index']
  #allocation1 [shape = 'u32[144,128]{1,0:T(1,128)}', space=vmem, size = 0x12000, scoped, tag = 'internal scratch']
  #allocation2 [shape = 'f32[18,128]{1,0:T(8,128)}', space=vmem, size = 0x3000, scoped, tag = 'scratch operand']
  #allocation3 [shape = 's32[1]{0}', space=sflag, size = 0x4, scoped, tag = 'scoped memory for tpu_custom_call.1']
  #allocation4 [shape = 'u8[512]{0}', space=smem, size = 0x200, scoped, tag = 'prefetched SMEM operand 0']
  #allocation5 [shape = 'f32[1]{0:T(128)S(6)}', space=smem, size = 0x200, scoped, tag = 'scoped memory for tpu_custom_call.1']
  #allocation6 [shape = 'f32[1]{0:T(128)S(6)}', space=smem, size = 0x200, scoped, tag = 'scoped memory for tpu_custom_call.1']
  %s0 = inlined_call_operand.smem [shape: u32[32], index: -1, kind: input, shape index: {}]
  %s1 = sld [smem:[%s0]]
  %s2 = scalar_lea.smem %s0, 1
  %s3 = sld [smem:[%s2]]
  %s4 = scalar_lea.smem %s0, 2
  %s5 = sld [smem:[%s4]]
  %s6 = scalar_lea.smem %s0, 3
  %s7 = sld [smem:[%s6]]
  %s8 = scalar_lea.smem %s0, 4
  %s9 = sld [smem:[%s8]]
  %s10 = scalar_lea.smem %s0, 5
  %s11 = sld [smem:[%s10]]
  %s12 = scalar_lea.smem %s0, 6
  %s13 = sld [smem:[%s12]]
  %s14 = scalar_lea.smem %s0, 7
  %s15 = sld [smem:[%s14]]
  %s16 = scalar_lea.smem %s0, 8
  %s17 = sld [smem:[%s16]]
  %s18 = scalar_lea.smem %s0, 9
  %s19 = sld [smem:[%s18]]
  %s20 = scalar_lea.smem %s0, 10
  %s21 = sld [smem:[%s20]]
  %s22 = scalar_lea.smem %s0, 11
  %s23 = sld [smem:[%s22]]
  %s24 = scalar_lea.smem %s0, 12
  %s25 = sld [smem:[%s24]]
  %s26 = scalar_lea.smem %s0, 13
  %s27 = sld [smem:[%s26]]
  %s28 = scalar_lea.smem %s0, 14
  %s29 = sld [smem:[%s28]]
  %s30 = scalar_lea.smem %s0, 15
  %s31 = sld [smem:[%s30]]
  %s32 = scalar_lea.smem %s0, 16
  %s33 = sld [smem:[%s32]]
  %s34 = scalar_lea.smem %s0, 17
  %s35 = sld [smem:[%s34]]
  %s36 = scalar_lea.smem %s0, 18
  %s37 = sld [smem:[%s36]]
  %s38 = scalar_lea.smem %s0, 19
  %s39 = sld [smem:[%s38]]
  %s40 = scalar_lea.smem %s0, 20
  %s41 = sld [smem:[%s40]]
  %s42 = scalar_lea.smem %s0, 21
  %s43 = sld [smem:[%s42]]
  %s44 = scalar_lea.smem %s0, 22
  %s45 = sld [smem:[%s44]]
  %s46 = scalar_lea.smem %s0, 23
  %s47 = sld [smem:[%s46]]
  %s48 = scalar_lea.smem %s0, 24
  %s49 = sld [smem:[%s48]]
  %s50 = scalar_lea.smem %s0, 25
  %s51 = sld [smem:[%s50]]
  %s52 = scalar_lea.smem %s0, 26
  %s53 = sld [smem:[%s52]]
  %s54 = scalar_lea.smem %s0, 27
  %s55 = sld [smem:[%s54]]
  %s56 = scalar_lea.smem %s0, 28
  %s57 = sld [smem:[%s56]]
  %s58 = scalar_lea.smem %s0, 29
  %s59 = sld [smem:[%s58]]
  %s60 = scalar_lea.smem %s0, 30
  %s61 = sld [smem:[%s60]]
  %s62 = scalar_lea.smem %s0, 31
  %s63 = sld [smem:[%s62]]
  %s64 = sld [smem:[#allocation0]]
  $region217: #{tpu_custom_call.1} parent=0
    _
  %s66 = ssub.s32 1, %s64
  %s67 = scalar_select 0, %s66, %s64
  %69 = dma.hbm_to_smem %s1, 16, [#allocation4], [#allocation3]
  %70 = sst [smem:[#allocation5]] %s43
  %71 = sst [smem:[#allocation6]] %s45
  %72 = dma.done [#allocation3], 16
  %73 = sfence
  $region1: #{tpu_custom_call.1} parent=0
    #allocation7 [shape = 'u8[16384]{0}', space=vmem, size = 0x4000, scoped, tag = 'input window, operand 1']
    #allocation8 [shape = 's32[2]{0}', space=sflag, size = 0x8, scoped, tag = 'scoped memory for tpu_custom_call.1']
    #allocation9 [shape = 's32[2]{0}', space=sflag, size = 0x8, scoped, tag = 'scoped memory for tpu_custom_call.1']
    #allocation10 [shape = 's32[2]{0}', space=sflag, size = 0x8, scoped, tag = 'scoped memory for tpu_custom_call.1']
    #allocation11 [shape = 's32[2]{0}', space=sflag, size = 0x8, scoped, tag = 'scoped memory for tpu_custom_call.1']
    #allocation12 [shape = 'u8[512]{0}', space=vmem, size = 0x400, scoped, tag = 'input window, operand 3, single buffered']
    #allocation13 [shape = 's32[1]{0}', space=sflag, size = 0x4, scoped, tag = 'scoped memory for tpu_custom_call.1']
    #allocation14 [shape = 'u8[512]{0}', space=vmem, size = 0x400, scoped, tag = 'input window, operand 4, single buffered']
    #allocation15 [shape = 'u8[1024]{0}', space=vmem, size = 0x400, scoped, tag = 'input window, operand 6, single buffered']
    #allocation16 [shape = 's32[1]{0}', space=sflag, size = 0x4, scoped, tag = 'scoped memory for tpu_custom_call.1']
    #allocation17 [shape = 'u8[65536]{0}', space=vmem, size = 0x10000, scoped, tag = 'input window, operand 7, single buffered']
    #allocation18 [shape = 'u8[512]{0}', space=vmem, size = 0x400, scoped, tag = 'input window, operand 8, single buffered']
    #allocation19 [shape = 's32[1]{0}', space=sflag, size = 0x4, scoped, tag = 'scoped memory for tpu_custom_call.1']
    #allocation20 [shape = 'u8[512]{0}', space=vmem, size = 0x400, scoped, tag = 'input window, operand 9, single buffered']
    #allocation21 [shape = 'u8[512]{0}', space=vmem, size = 0x400, scoped, tag = 'input window, operand 10, single buffered']
    #allocation22 [shape = 's32[1]{0}', space=sflag, size = 0x4, scoped, tag = 'scoped memory for tpu_custom_call.1']
    #allocation23 [shape = 'u8[1536]{0}', space=vmem, size = 0x800, scoped, tag = 'input window, operand 12, single buffered']
    #allocation24 [shape = 'u8[32768]{0}', space=vmem, size = 0x8000, scoped, tag = 'input window, operand 13, single buffered']
    #allocation25 [shape = 's32[1]{0}', space=sflag, size = 0x4, scoped, tag = 'scoped memory for tpu_custom_call.1']
    #allocation26 [shape = 'u8[512]{0}', space=vmem, size = 0x400, scoped, tag = 'input window, operand 14, single buffered']
    #allocation27 [shape = 'u8[512]{0}', space=vmem, size = 0x400, scoped, tag = 'input window, operand 15, single buffered']
    #allocation28 [shape = 's32[1]{0}', space=sflag, size = 0x4, scoped, tag = 'scoped memory for tpu_custom_call.1']
    #allocation29 [shape = 'u8[512]{0}', space=vmem, size = 0x400, scoped, tag = 'input window, operand 16, single buffered']
    #allocation30 [shape = 'u8[512]{0}', space=smem, size = 0x200, scoped, tag = 'input window, operand 17, single buffered']
    #allocation31 [shape = 'u8[512]{0}', space=smem, size = 0x200, scoped, tag = 'input window, operand 18, single buffered']
    #allocation32 [shape = 'u8[65536]{0}', space=vmem, size = 0x10000, scoped, tag = 'input window, operand 27, single buffered']
    #allocation33 [shape = 's32[1]{0}', space=sflag, size = 0x4, scoped, tag = 'scoped memory for tpu_custom_call.1']
    #allocation34 [shape = 'u8[16384]{0}', space=vmem, size = 0x4000, scoped, tag = 'output window, operand 0']
    %74 = vsyncpa [#allocation8], 0
    %s75 = scalar_lea.sflag [#allocation8], 1
    %76 = vsyncpa %s75, 0
    %77 = vsyncpa [#allocation13], 0
    %78 = vsyncpa [#allocation16], 0
    %79 = vsyncpa [#allocation19], 0
    %80 = vsyncpa [#allocation22], 0
    %81 = vsyncpa [#allocation25], 0
    %82 = vsyncpa [#allocation28], 0
    %83 = vsyncpa [#allocation10], 0
    %84 = vsyncpa [#allocation11], 0
    %85 = vsyncpa [#allocation33], 0
    %86 = vsyncpa [#allocation9], 0
    %s87 = scalar_lea.sflag [#allocation9], 1
    %88 = vsyncpa %s87, 0
    loop: start=0, step=1, limit=4
    $region2: #{tpu_custom_call.1} parent=1 // loop_pre_header
      _
    $region3: #{tpu_custom_call.1} parent=1 // loop_header
      %s90 = sphi 0, %s94
      %p91 = scmp.ge.s32.totalorder %s90, 4
      %s100 = sphi 0, %s102
      %s103 = sphi 0, %s100
      %s104 = sphi 0, %s103
      %s120 = sphi 0, %s104
      %s124 = sphi 0, %s124
      %s126 = sphi 0, %s124
      %s127 = sphi 0, %s126
      %s141 = sphi 0, %s127
      %s145 = sphi 0, %s145
      %s147 = sphi 0, %s145
      %s148 = sphi 0, %s147
      %s162 = sphi 0, %s148
      %s166 = sphi 0, %s166
      %s168 = sphi 0, %s166
      %s169 = sphi 0, %s168
      %s183 = sphi 0, %s169
      %s187 = sphi 0, %s187
      %s189 = sphi 0, %s187
      %s190 = sphi 0, %s189
      %s204 = sphi 0, %s190
      %s208 = sphi 0, %s208
      %s210 = sphi 0, %s208
      %s211 = sphi 0, %s210
      %s225 = sphi 0, %s211
      %s229 = sphi 0, %s229
      %s231 = sphi 0, %s229
      %s232 = sphi 0, %s231
      %s246 = sphi 0, %s232
      %s250 = sphi 0, %s250
      %s252 = sphi 0, %s250
      %s253 = sphi 0, %s252
      %s267 = sphi 0, %s253
      %s271 = sphi 0, %s271
      %s273 = sphi 0, %s271
      %s274 = sphi 0, %s273
      %s288 = sphi 0, %s274
      %s292 = sphi 0, %s292
      %s294 = sphi 0, %s292
      %s295 = sphi 0, %s294
      %s309 = sphi 0, %s295
      %s313 = sphi 0, %s313
      %s315 = sphi 0, %s313
      %s316 = sphi 0, %s315
      %s330 = sphi 0, %s316
      %s334 = sphi 0, %s334
      %s336 = sphi 0, %s334
      %s337 = sphi 0, %s336
      %s351 = sphi 0, %s337
      %s355 = sphi 0, %s355
      %s357 = sphi 0, %s355
      %s358 = sphi 0, %s357
      %s372 = sphi 0, %s358
      %s376 = sphi 0, %s376
      %s378 = sphi 0, %s376
      %s379 = sphi 0, %s378
      %s393 = sphi 0, %s379
      %s397 = sphi 0, %s397
      %s399 = sphi 0, %s397
      %s400 = sphi 0, %s399
      %s414 = sphi 0, %s400
      %s418 = sphi 0, %s418
      %s420 = sphi 0, %s418
      %s421 = sphi 0, %s420
      %s435 = sphi 0, %s421
      %s439 = sphi 0, %s439
      %s441 = sphi 0, %s439
      %s442 = sphi 0, %s441
      %s456 = sphi 0, %s442
      %s460 = sphi 0, %s460
      %s462 = sphi 0, %s460
      %s463 = sphi 0, %s462
      %s477 = sphi 0, %s463
      %s481 = sphi 0, %s481
      %s483 = sphi 0, %s481
      %s484 = sphi 0, %s483
      %s498 = sphi 0, %s484
      %s502 = sphi 0, %s502
      %s504 = sphi 0, %s502
      %s505 = sphi 0, %s504
      %s519 = sphi 0, %s505
      %s523 = sphi 0, %s523
      %s525 = sphi 0, %s523
      %s526 = sphi 0, %s525
      %s540 = sphi 0, %s526
      %s544 = sphi 0, %s544
      %s546 = sphi 0, %s544
      %s547 = sphi 0, %s546
      %s561 = sphi 0, %s547
      %s565 = sphi 0, %s565
      %s567 = sphi 0, %s565
      %s568 = sphi 0, %s567
      %s582 = sphi 0, %s568
      %s586 = sphi 0, %s586
      %s588 = sphi 0, %s586
      %s589 = sphi 0, %s588
      %s603 = sphi 0, %s589
      %s607 = sphi 0, %s607
      %s609 = sphi 0, %s607
      %s610 = sphi 0, %s609
      %s624 = sphi 0, %s610
      %s628 = sphi 0, %s628
      %s630 = sphi 0, %s628
      %s631 = sphi 0, %s630
      %s645 = sphi 0, %s631
      %s649 = sphi 0, %s649
      %s651 = sphi 0, %s649
      %s652 = sphi 0, %s651
      %s666 = sphi 0, %s652
      %s670 = sphi 0, %s670
      %s672 = sphi 0, %s670
      %s673 = sphi 0, %s672
      %s687 = sphi 0, %s673
      %s691 = sphi 0, %s691
      %s693 = sphi 0, %s691
      %s694 = sphi 0, %s693
      %s708 = sphi 0, %s694
      %s712 = sphi 0, %s712
      %s714 = sphi 0, %s712
      %s715 = sphi 0, %s714
      %s729 = sphi 0, %s715
      %s735 = sphi 0, %s737
      %s738 = sphi 0, %s735
      %s739 = sphi 0, %s738
      %s755 = sphi 0, %s739
    $region4: #{tpu_custom_call.1} parent=1 // loop_header_branch
      %93 = sbr.rel (%p91) target = $region8
    $region5: #{tpu_custom_call.1} parent=1 // loop_body
      %s95 = ssub.s32 %s90, 1
      %s96 = ssub.s32 %s90, 2
      %s97 = sadd.s32 %s90, 1
      %s98 = ssub.s32 %s90, %s97
      %p99 = scmp.eq.s32.totalorder %s98, 0
      %s101 = sadd.s32 %s100, 1
      %s102 = scalar_select %p99, %s100, %s101
      %p105 = pneg %p99
      %p106 = scmp.eq.s32.totalorder %s90, 1
      %p107 = por %p105, %p106
      %p108 = scmp.ne.s32.totalorder %s100, %s103
      %p109 = scmp.eq.s32.totalorder %s90, 0
      %p110 = por %p108, %p109
      %p111 = scmp.ne.s32.totalorder %s100, %s103
      %p112 = scmp.eq.s32.totalorder %s95, 1
      %p113 = por %p111, %p112
      %p114 = scmp.ne.s32.totalorder %s103, %s104
      %p115 = scmp.eq.s32.totalorder %s95, 0
      %p116 = por %p114, %p115
      %p117 = scmp.ne.s32.totalorder %s103, %s104
      %p118 = scmp.eq.s32.totalorder %s96, 1
      %p119 = por %p117, %p118
      %p121 = scmp.ne.s32.totalorder %s104, %s120
      %p122 = scmp.eq.s32.totalorder %s96, 0
      %p123 = por %p121, %p122
      %s125 = sadd.s32 %s124, 1
      %p128 = scmp.eq.s32.totalorder %s90, 1
      %p129 = scmp.ne.s32.totalorder %s124, %s126
      %p130 = scmp.eq.s32.totalorder %s90, 0
      %p131 = por %p129, %p130
      %p132 = scmp.ne.s32.totalorder %s124, %s126
      %p133 = scmp.eq.s32.totalorder %s95, 1
      %p134 = por %p132, %p133
      %p135 = scmp.ne.s32.totalorder %s126, %s127
      %p136 = scmp.eq.s32.totalorder %s95, 0
      %p137 = por %p135, %p136
      %p138 = scmp.ne.s32.totalorder %s126, %s127
      %p139 = scmp.eq.s32.totalorder %s96, 1
      %p140 = por %p138, %p139
      %p142 = scmp.ne.s32.totalorder %s127, %s141
      %p143 = scmp.eq.s32.totalorder %s96, 0
      %p144 = por %p142, %p143
      %s146 = sadd.s32 %s145, 1
      %p149 = scmp.eq.s32.totalorder %s90, 1
      %p150 = scmp.ne.s32.totalorder %s145, %s147
      %p151 = scmp.eq.s32.totalorder %s90, 0
      %p152 = por %p150, %p151
      %p153 = scmp.ne.s32.totalorder %s145, %s147
      %p154 = scmp.eq.s32.totalorder %s95, 1
      %p155 = por %p153, %p154
      %p156 = scmp.ne.s32.totalorder %s147, %s148
      %p157 = scmp.eq.s32.totalorder %s95, 0
      %p158 = por %p156, %p157
      %p159 = scmp.ne.s32.totalorder %s147, %s148
      %p160 = scmp.eq.s32.totalorder %s96, 1
      %p161 = por %p159, %p160
      %p163 = scmp.ne.s32.totalorder %s148, %s162
      %p164 = scmp.eq.s32.totalorder %s96, 0
      %p165 = por %p163, %p164
      %s167 = sadd.s32 %s166, 1
      %p170 = scmp.eq.s32.totalorder %s90, 1
      %p171 = scmp.ne.s32.totalorder %s166, %s168
      %p172 = scmp.eq.s32.totalorder %s90, 0
      %p173 = por %p171, %p172
      %p174 = scmp.ne.s32.totalorder %s166, %s168
      %p175 = scmp.eq.s32.totalorder %s95, 1
      %p176 = por %p174, %p175
      %p177 = scmp.ne.s32.totalorder %s168, %s169
      %p178 = scmp.eq.s32.totalorder %s95, 0
      %p179 = por %p177, %p178
      %p180 = scmp.ne.s32.totalorder %s168, %s169
      %p181 = scmp.eq.s32.totalorder %s96, 1
      %p182 = por %p180, %p181
      %p184 = scmp.ne.s32.totalorder %s169, %s183
      %p185 = scmp.eq.s32.totalorder %s96, 0
      %p186 = por %p184, %p185
      %s188 = sadd.s32 %s187, 1
      %p191 = scmp.eq.s32.totalorder %s90, 1
      %p192 = scmp.ne.s32.totalorder %s187, %s189
      %p193 = scmp.eq.s32.totalorder %s90, 0
      %p194 = por %p192, %p193
      %p195 = scmp.ne.s32.totalorder %s187, %s189
      %p196 = scmp.eq.s32.totalorder %s95, 1
      %p197 = por %p195, %p196
      %p198 = scmp.ne.s32.totalorder %s189, %s190
      %p199 = scmp.eq.s32.totalorder %s95, 0
      %p200 = por %p198, %p199
      %p201 = scmp.ne.s32.totalorder %s189, %s190
      %p202 = scmp.eq.s32.totalorder %s96, 1
      %p203 = por %p201, %p202
      %p205 = scmp.ne.s32.totalorder %s190, %s204
      %p206 = scmp.eq.s32.totalorder %s96, 0
      %p207 = por %p205, %p206
      %s209 = sadd.s32 %s208, 1
      %p212 = scmp.eq.s32.totalorder %s90, 1
      %p213 = scmp.ne.s32.totalorder %s208, %s210
      %p214 = scmp.eq.s32.totalorder %s90, 0
      %p215 = por %p213, %p214
      %p216 = scmp.ne.s32.totalorder %s208, %s210
      %p217 = scmp.eq.s32.totalorder %s95, 1
      %p218 = por %p216, %p217
      %p219 = scmp.ne.s32.totalorder %s210, %s211
      %p220 = scmp.eq.s32.totalorder %s95, 0
      %p221 = por %p219, %p220
      %p222 = scmp.ne.s32.totalorder %s210, %s211
      %p223 = scmp.eq.s32.totalorder %s96, 1
      %p224 = por %p222, %p223
      %p226 = scmp.ne.s32.totalorder %s211, %s225
      %p227 = scmp.eq.s32.totalorder %s96, 0
      %p228 = por %p226, %p227
      %s230 = sadd.s32 %s229, 1
      %p233 = scmp.eq.s32.totalorder %s90, 1
      %p234 = scmp.ne.s32.totalorder %s229, %s231
      %p235 = scmp.eq.s32.totalorder %s90, 0
      %p236 = por %p234, %p235
      %p237 = scmp.ne.s32.totalorder %s229, %s231
      %p238 = scmp.eq.s32.totalorder %s95, 1
      %p239 = por %p237, %p238
      %p240 = scmp.ne.s32.totalorder %s231, %s232
      %p241 = scmp.eq.s32.totalorder %s95, 0
      %p242 = por %p240, %p241
      %p243 = scmp.ne.s32.totalorder %s231, %s232
      %p244 = scmp.eq.s32.totalorder %s96, 1
      %p245 = por %p243, %p244
      %p247 = scmp.ne.s32.totalorder %s232, %s246
      %p248 = scmp.eq.s32.totalorder %s96, 0
      %p249 = por %p247, %p248
      %s251 = sadd.s32 %s250, 1
      %p254 = scmp.eq.s32.totalorder %s90, 1
      %p255 = scmp.ne.s32.totalorder %s250, %s252
      %p256 = scmp.eq.s32.totalorder %s90, 0
      %p257 = por %p255, %p256
      %p258 = scmp.ne.s32.totalorder %s250, %s252
      %p259 = scmp.eq.s32.totalorder %s95, 1
      %p260 = por %p258, %p259
      %p261 = scmp.ne.s32.totalorder %s252, %s253
      %p262 = scmp.eq.s32.totalorder %s95, 0
      %p263 = por %p261, %p262
      %p264 = scmp.ne.s32.totalorder %s252, %s253
      %p265 = scmp.eq.s32.totalorder %s96, 1
      %p266 = por %p264, %p265
      %p268 = scmp.ne.s32.totalorder %s253, %s267
      %p269 = scmp.eq.s32.totalorder %s96, 0
      %p270 = por %p268, %p269
      %s272 = sadd.s32 %s271, 1
      %p275 = scmp.eq.s32.totalorder %s90, 1
      %p276 = scmp.ne.s32.totalorder %s271, %s273
      %p277 = scmp.eq.s32.totalorder %s90, 0
      %p278 = por %p276, %p277
      %p279 = scmp.ne.s32.totalorder %s271, %s273
      %p280 = scmp.eq.s32.totalorder %s95, 1
      %p281 = por %p279, %p280
      %p282 = scmp.ne.s32.totalorder %s273, %s274
      %p283 = scmp.eq.s32.totalorder %s95, 0
      %p284 = por %p282, %p283
      %p285 = scmp.ne.s32.totalorder %s273, %s274
      %p286 = scmp.eq.s32.totalorder %s96, 1
      %p287 = por %p285, %p286
      %p289 = scmp.ne.s32.totalorder %s274, %s288
      %p290 = scmp.eq.s32.totalorder %s96, 0
      %p291 = por %p289, %p290
      %s293 = sadd.s32 %s292, 1
      %p296 = scmp.eq.s32.totalorder %s90, 1
      %p297 = scmp.ne.s32.totalorder %s292, %s294
      %p298 = scmp.eq.s32.totalorder %s90, 0
      %p299 = por %p297, %p298
      %p300 = scmp.ne.s32.totalorder %s292, %s294
      %p301 = scmp.eq.s32.totalorder %s95, 1
      %p302 = por %p300, %p301
      %p303 = scmp.ne.s32.totalorder %s294, %s295
      %p304 = scmp.eq.s32.totalorder %s95, 0
      %p305 = por %p303, %p304
      %p306 = scmp.ne.s32.totalorder %s294, %s295
      %p307 = scmp.eq.s32.totalorder %s96, 1
      %p308 = por %p306, %p307
      %p310 = scmp.ne.s32.totalorder %s295, %s309
      %p311 = scmp.eq.s32.totalorder %s96, 0
      %p312 = por %p310, %p311
      %s314 = sadd.s32 %s313, 1
      %p317 = scmp.eq.s32.totalorder %s90, 1
      %p318 = scmp.ne.s32.totalorder %s313, %s315
      %p319 = scmp.eq.s32.totalorder %s90, 0
      %p320 = por %p318, %p319
      %p321 = scmp.ne.s32.totalorder %s313, %s315
      %p322 = scmp.eq.s32.totalorder %s95, 1
      %p323 = por %p321, %p322
      %p324 = scmp.ne.s32.totalorder %s315, %s316
      %p325 = scmp.eq.s32.totalorder %s95, 0
      %p326 = por %p324, %p325
      %p327 = scmp.ne.s32.totalorder %s315, %s316
      %p328 = scmp.eq.s32.totalorder %s96, 1
      %p329 = por %p327, %p328
      %p331 = scmp.ne.s32.totalorder %s316, %s330
      %p332 = scmp.eq.s32.totalorder %s96, 0
      %p333 = por %p331, %p332
      %s335 = sadd.s32 %s334, 1
      %p338 = scmp.eq.s32.totalorder %s90, 1
      %p339 = scmp.ne.s32.totalorder %s334, %s336
      %p340 = scmp.eq.s32.totalorder %s90, 0
      %p341 = por %p339, %p340
      %p342 = scmp.ne.s32.totalorder %s334, %s336
      %p343 = scmp.eq.s32.totalorder %s95, 1
      %p344 = por %p342, %p343
      %p345 = scmp.ne.s32.totalorder %s336, %s337
      %p346 = scmp.eq.s32.totalorder %s95, 0
      %p347 = por %p345, %p346
      %p348 = scmp.ne.s32.totalorder %s336, %s337
      %p349 = scmp.eq.s32.totalorder %s96, 1
      %p350 = por %p348, %p349
      %p352 = scmp.ne.s32.totalorder %s337, %s351
      %p353 = scmp.eq.s32.totalorder %s96, 0
      %p354 = por %p352, %p353
      %s356 = sadd.s32 %s355, 1
      %p359 = scmp.eq.s32.totalorder %s90, 1
      %p360 = scmp.ne.s32.totalorder %s355, %s357
      %p361 = scmp.eq.s32.totalorder %s90, 0
      %p362 = por %p360, %p361
      %p363 = scmp.ne.s32.totalorder %s355, %s357
      %p364 = scmp.eq.s32.totalorder %s95, 1
      %p365 = por %p363, %p364
      %p366 = scmp.ne.s32.totalorder %s357, %s358
      %p367 = scmp.eq.s32.totalorder %s95, 0
      %p368 = por %p366, %p367
      %p369 = scmp.ne.s32.totalorder %s357, %s358
      %p370 = scmp.eq.s32.totalorder %s96, 1
      %p371 = por %p369, %p370
      %p373 = scmp.ne.s32.totalorder %s358, %s372
      %p374 = scmp.eq.s32.totalorder %s96, 0
      %p375 = por %p373, %p374
      %s377 = sadd.s32 %s376, 1
      %p380 = scmp.eq.s32.totalorder %s90, 1
      %p381 = scmp.ne.s32.totalorder %s376, %s378
      %p382 = scmp.eq.s32.totalorder %s90, 0
      %p383 = por %p381, %p382
      %p384 = scmp.ne.s32.totalorder %s376, %s378
      %p385 = scmp.eq.s32.totalorder %s95, 1
      %p386 = por %p384, %p385
      %p387 = scmp.ne.s32.totalorder %s378, %s379
      %p388 = scmp.eq.s32.totalorder %s95, 0
      %p389 = por %p387, %p388
      %p390 = scmp.ne.s32.totalorder %s378, %s379
      %p391 = scmp.eq.s32.totalorder %s96, 1
      %p392 = por %p390, %p391
      %p394 = scmp.ne.s32.totalorder %s379, %s393
      %p395 = scmp.eq.s32.totalorder %s96, 0
      %p396 = por %p394, %p395
      %s398 = sadd.s32 %s397, 1
      %p401 = scmp.eq.s32.totalorder %s90, 1
      %p402 = scmp.ne.s32.totalorder %s397, %s399
      %p403 = scmp.eq.s32.totalorder %s90, 0
      %p404 = por %p402, %p403
      %p405 = scmp.ne.s32.totalorder %s397, %s399
      %p406 = scmp.eq.s32.totalorder %s95, 1
      %p407 = por %p405, %p406
      %p408 = scmp.ne.s32.totalorder %s399, %s400
      %p409 = scmp.eq.s32.totalorder %s95, 0
      %p410 = por %p408, %p409
      %p411 = scmp.ne.s32.totalorder %s399, %s400
      %p412 = scmp.eq.s32.totalorder %s96, 1
      %p413 = por %p411, %p412
      %p415 = scmp.ne.s32.totalorder %s400, %s414
      %p416 = scmp.eq.s32.totalorder %s96, 0
      %p417 = por %p415, %p416
      %s419 = sadd.s32 %s418, 1
      %p422 = scmp.eq.s32.totalorder %s90, 1
      %p423 = scmp.ne.s32.totalorder %s418, %s420
      %p424 = scmp.eq.s32.totalorder %s90, 0
      %p425 = por %p423, %p424
      %p426 = scmp.ne.s32.totalorder %s418, %s420
      %p427 = scmp.eq.s32.totalorder %s95, 1
      %p428 = por %p426, %p427
      %p429 = scmp.ne.s32.totalorder %s420, %s421
      %p430 = scmp.eq.s32.totalorder %s95, 0
      %p431 = por %p429, %p430
      %p432 = scmp.ne.s32.totalorder %s420, %s421
      %p433 = scmp.eq.s32.totalorder %s96, 1
      %p434 = por %p432, %p433
      %p436 = scmp.ne.s32.totalorder %s421, %s435
      %p437 = scmp.eq.s32.totalorder %s96, 0
      %p438 = por %p436, %p437
      %s440 = sadd.s32 %s439, 1
      %p443 = scmp.eq.s32.totalorder %s90, 1
      %p444 = scmp.ne.s32.totalorder %s439, %s441
      %p445 = scmp.eq.s32.totalorder %s90, 0
      %p446 = por %p444, %p445
      %p447 = scmp.ne.s32.totalorder %s439, %s441
      %p448 = scmp.eq.s32.totalorder %s95, 1
      %p449 = por %p447, %p448
      %p450 = scmp.ne.s32.totalorder %s441, %s442
      %p451 = scmp.eq.s32.totalorder %s95, 0
      %p452 = por %p450, %p451
      %p453 = scmp.ne.s32.totalorder %s441, %s442
      %p454 = scmp.eq.s32.totalorder %s96, 1
      %p455 = por %p453, %p454
      %p457 = scmp.ne.s32.totalorder %s442, %s456
      %p458 = scmp.eq.s32.totalorder %s96, 0
      %p459 = por %p457, %p458
      %s461 = sadd.s32 %s460, 1
      %p464 = scmp.eq.s32.totalorder %s90, 1
      %p465 = scmp.ne.s32.totalorder %s460, %s462
      %p466 = scmp.eq.s32.totalorder %s90, 0
      %p467 = por %p465, %p466
      %p468 = scmp.ne.s32.totalorder %s460, %s462
      %p469 = scmp.eq.s32.totalorder %s95, 1
      %p470 = por %p468, %p469
      %p471 = scmp.ne.s32.totalorder %s462, %s463
      %p472 = scmp.eq.s32.totalorder %s95, 0
      %p473 = por %p471, %p472
      %p474 = scmp.ne.s32.totalorder %s462, %s463
      %p475 = scmp.eq.s32.totalorder %s96, 1
      %p476 = por %p474, %p475
      %p478 = scmp.ne.s32.totalorder %s463, %s477
      %p479 = scmp.eq.s32.totalorder %s96, 0
      %p480 = por %p478, %p479
      %s482 = sadd.s32 %s481, 1
      %p485 = scmp.eq.s32.totalorder %s90, 1
      %p486 = scmp.ne.s32.totalorder %s481, %s483
      %p487 = scmp.eq.s32.totalorder %s90, 0
      %p488 = por %p486, %p487
      %p489 = scmp.ne.s32.totalorder %s481, %s483
      %p490 = scmp.eq.s32.totalorder %s95, 1
      %p491 = por %p489, %p490
      %p492 = scmp.ne.s32.totalorder %s483, %s484
      %p493 = scmp.eq.s32.totalorder %s95, 0
      %p494 = por %p492, %p493
      %p495 = scmp.ne.s32.totalorder %s483, %s484
      %p496 = scmp.eq.s32.totalorder %s96, 1
      %p497 = por %p495, %p496
      %p499 = scmp.ne.s32.totalorder %s484, %s498
      %p500 = scmp.eq.s32.totalorder %s96, 0
      %p501 = por %p499, %p500
      %s503 = sadd.s32 %s502, 1
      %p506 = scmp.eq.s32.totalorder %s90, 1
      %p507 = scmp.ne.s32.totalorder %s502, %s504
      %p508 = scmp.eq.s32.totalorder %s90, 0
      %p509 = por %p507, %p508
      %p510 = scmp.ne.s32.totalorder %s502, %s504
      %p511 = scmp.eq.s32.totalorder %s95, 1
      %p512 = por %p510, %p511
      %p513 = scmp.ne.s32.totalorder %s504, %s505
      %p514 = scmp.eq.s32.totalorder %s95, 0
      %p515 = por %p513, %p514
      %p516 = scmp.ne.s32.totalorder %s504, %s505
      %p517 = scmp.eq.s32.totalorder %s96, 1
      %p518 = por %p516, %p517
      %p520 = scmp.ne.s32.totalorder %s505, %s519
      %p521 = scmp.eq.s32.totalorder %s96, 0
      %p522 = por %p520, %p521
      %s524 = sadd.s32 %s523, 1
      %p527 = scmp.eq.s32.totalorder %s90, 1
      %p528 = scmp.ne.s32.totalorder %s523, %s525
      %p529 = scmp.eq.s32.totalorder %s90, 0
      %p530 = por %p528, %p529
      %p531 = scmp.ne.s32.totalorder %s523, %s525
      %p532 = scmp.eq.s32.totalorder %s95, 1
      %p533 = por %p531, %p532
      %p534 = scmp.ne.s32.totalorder %s525, %s526
      %p535 = scmp.eq.s32.totalorder %s95, 0
      %p536 = por %p534, %p535
      %p537 = scmp.ne.s32.totalorder %s525, %s526
      %p538 = scmp.eq.s32.totalorder %s96, 1
      %p539 = por %p537, %p538
      %p541 = scmp.ne.s32.totalorder %s526, %s540
      %p542 = scmp.eq.s32.totalorder %s96, 0
      %p543 = por %p541, %p542
      %s545 = sadd.s32 %s544, 1
      %p548 = scmp.eq.s32.totalorder %s90, 1
      %p549 = scmp.ne.s32.totalorder %s544, %s546
      %p550 = scmp.eq.s32.totalorder %s90, 0
      %p551 = por %p549, %p550
      %p552 = scmp.ne.s32.totalorder %s544, %s546
      %p553 = scmp.eq.s32.totalorder %s95, 1
      %p554 = por %p552, %p553
      %p555 = scmp.ne.s32.totalorder %s546, %s547
      %p556 = scmp.eq.s32.totalorder %s95, 0
      %p557 = por %p555, %p556
      %p558 = scmp.ne.s32.totalorder %s546, %s547
      %p559 = scmp.eq.s32.totalorder %s96, 1
      %p560 = por %p558, %p559
      %p562 = scmp.ne.s32.totalorder %s547, %s561
      %p563 = scmp.eq.s32.totalorder %s96, 0
      %p564 = por %p562, %p563
      %s566 = sadd.s32 %s565, 1
      %p569 = scmp.eq.s32.totalorder %s90, 1
      %p570 = scmp.ne.s32.totalorder %s565, %s567
      %p571 = scmp.eq.s32.totalorder %s90, 0
      %p572 = por %p570, %p571
      %p573 = scmp.ne.s32.totalorder %s565, %s567
      %p574 = scmp.eq.s32.totalorder %s95, 1
      %p575 = por %p573, %p574
      %p576 = scmp.ne.s32.totalorder %s567, %s568
      %p577 = scmp.eq.s32.totalorder %s95, 0
      %p578 = por %p576, %p577
      %p579 = scmp.ne.s32.totalorder %s567, %s568
      %p580 = scmp.eq.s32.totalorder %s96, 1
      %p581 = por %p579, %p580
      %p583 = scmp.ne.s32.totalorder %s568, %s582
      %p584 = scmp.eq.s32.totalorder %s96, 0
      %p585 = por %p583, %p584
      %s587 = sadd.s32 %s586, 1
      %p590 = scmp.eq.s32.totalorder %s90, 1
      %p591 = scmp.ne.s32.totalorder %s586, %s588
      %p592 = scmp.eq.s32.totalorder %s90, 0
      %p593 = por %p591, %p592
      %p594 = scmp.ne.s32.totalorder %s586, %s588
      %p595 = scmp.eq.s32.totalorder %s95, 1
      %p596 = por %p594, %p595
      %p597 = scmp.ne.s32.totalorder %s588, %s589
      %p598 = scmp.eq.s32.totalorder %s95, 0
      %p599 = por %p597, %p598
      %p600 = scmp.ne.s32.totalorder %s588, %s589
      %p601 = scmp.eq.s32.totalorder %s96, 1
      %p602 = por %p600, %p601
      %p604 = scmp.ne.s32.totalorder %s589, %s603
      %p605 = scmp.eq.s32.totalorder %s96, 0
      %p606 = por %p604, %p605
      %s608 = sadd.s32 %s607, 1
      %p611 = scmp.eq.s32.totalorder %s90, 1
      %p612 = scmp.ne.s32.totalorder %s607, %s609
      %p613 = scmp.eq.s32.totalorder %s90, 0
      %p614 = por %p612, %p613
      %p615 = scmp.ne.s32.totalorder %s607, %s609
      %p616 = scmp.eq.s32.totalorder %s95, 1
      %p617 = por %p615, %p616
      %p618 = scmp.ne.s32.totalorder %s609, %s610
      %p619 = scmp.eq.s32.totalorder %s95, 0
      %p620 = por %p618, %p619
      %p621 = scmp.ne.s32.totalorder %s609, %s610
      %p622 = scmp.eq.s32.totalorder %s96, 1
      %p623 = por %p621, %p622
      %p625 = scmp.ne.s32.totalorder %s610, %s624
      %p626 = scmp.eq.s32.totalorder %s96, 0
      %p627 = por %p625, %p626
      %s629 = sadd.s32 %s628, 1
      %p632 = scmp.eq.s32.totalorder %s90, 1
      %p633 = scmp.ne.s32.totalorder %s628, %s630
      %p634 = scmp.eq.s32.totalorder %s90, 0
      %p635 = por %p633, %p634
      %p636 = scmp.ne.s32.totalorder %s628, %s630
      %p637 = scmp.eq.s32.totalorder %s95, 1
      %p638 = por %p636, %p637
      %p639 = scmp.ne.s32.totalorder %s630, %s631
      %p640 = scmp.eq.s32.totalorder %s95, 0
      %p641 = por %p639, %p640
      %p642 = scmp.ne.s32.totalorder %s630, %s631
      %p643 = scmp.eq.s32.totalorder %s96, 1
      %p644 = por %p642, %p643
      %p646 = scmp.ne.s32.totalorder %s631, %s645
      %p647 = scmp.eq.s32.totalorder %s96, 0
      %p648 = por %p646, %p647
      %s650 = sadd.s32 %s649, 1
      %p653 = scmp.eq.s32.totalorder %s90, 1
      %p654 = scmp.ne.s32.totalorder %s649, %s651
      %p655 = scmp.eq.s32.totalorder %s90, 0
      %p656 = por %p654, %p655
      %p657 = scmp.ne.s32.totalorder %s649, %s651
      %p658 = scmp.eq.s32.totalorder %s95, 1
      %p659 = por %p657, %p658
      %p660 = scmp.ne.s32.totalorder %s651, %s652
      %p661 = scmp.eq.s32.totalorder %s95, 0
      %p662 = por %p660, %p661
      %p663 = scmp.ne.s32.totalorder %s651, %s652
      %p664 = scmp.eq.s32.totalorder %s96, 1
      %p665 = por %p663, %p664
      %p667 = scmp.ne.s32.totalorder %s652, %s666
      %p668 = scmp.eq.s32.totalorder %s96, 0
      %p669 = por %p667, %p668
      %s671 = sadd.s32 %s670, 1
      %p674 = scmp.eq.s32.totalorder %s90, 1
      %p675 = scmp.ne.s32.totalorder %s670, %s672
      %p676 = scmp.eq.s32.totalorder %s90, 0
      %p677 = por %p675, %p676
      %p678 = scmp.ne.s32.totalorder %s670, %s672
      %p679 = scmp.eq.s32.totalorder %s95, 1
      %p680 = por %p678, %p679
      %p681 = scmp.ne.s32.totalorder %s672, %s673
      %p682 = scmp.eq.s32.totalorder %s95, 0
      %p683 = por %p681, %p682
      %p684 = scmp.ne.s32.totalorder %s672, %s673
      %p685 = scmp.eq.s32.totalorder %s96, 1
      %p686 = por %p684, %p685
      %p688 = scmp.ne.s32.totalorder %s673, %s687
      %p689 = scmp.eq.s32.totalorder %s96, 0
      %p690 = por %p688, %p689
      %s692 = sadd.s32 %s691, 1
      %p695 = scmp.eq.s32.totalorder %s90, 1
      %p696 = scmp.ne.s32.totalorder %s691, %s693
      %p697 = scmp.eq.s32.totalorder %s90, 0
      %p698 = por %p696, %p697
      %p699 = scmp.ne.s32.totalorder %s691, %s693
      %p700 = scmp.eq.s32.totalorder %s95, 1
      %p701 = por %p699, %p700
      %p702 = scmp.ne.s32.totalorder %s693, %s694
      %p703 = scmp.eq.s32.totalorder %s95, 0
      %p704 = por %p702, %p703
      %p705 = scmp.ne.s32.totalorder %s693, %s694
      %p706 = scmp.eq.s32.totalorder %s96, 1
      %p707 = por %p705, %p706
      %p709 = scmp.ne.s32.totalorder %s694, %s708
      %p710 = scmp.eq.s32.totalorder %s96, 0
      %p711 = por %p709, %p710
      %s713 = sadd.s32 %s712, 1
      %p716 = scmp.eq.s32.totalorder %s90, 1
      %p717 = scmp.ne.s32.totalorder %s712, %s714
      %p718 = scmp.eq.s32.totalorder %s90, 0
      %p719 = por %p717, %p718
      %p720 = scmp.ne.s32.totalorder %s712, %s714
      %p721 = scmp.eq.s32.totalorder %s95, 1
      %p722 = por %p720, %p721
      %p723 = scmp.ne.s32.totalorder %s714, %s715
      %p724 = scmp.eq.s32.totalorder %s95, 0
      %p725 = por %p723, %p724
      %p726 = scmp.ne.s32.totalorder %s714, %s715
      %p727 = scmp.eq.s32.totalorder %s96, 1
      %p728 = por %p726, %p727
      %p730 = scmp.ne.s32.totalorder %s715, %s729
      %p731 = scmp.eq.s32.totalorder %s96, 0
      %p732 = por %p730, %p731
      %s733 = ssub.s32 %s90, %s97
      %p734 = scmp.eq.s32.totalorder %s733, 0
      %s736 = sadd.s32 %s735, 1
      %s737 = scalar_select %p734, %s735, %s736
      %p740 = pneg %p734
      %p741 = scmp.eq.s32.totalorder %s90, 1
      %p742 = por %p740, %p741
      %p743 = scmp.ne.s32.totalorder %s735, %s738
      %p744 = scmp.eq.s32.totalorder %s90, 0
      %p745 = por %p743, %p744
      %p746 = scmp.ne.s32.totalorder %s735, %s738
      %p747 = scmp.eq.s32.totalorder %s95, 1
      %p748 = por %p746, %p747
      %p749 = scmp.ne.s32.totalorder %s738, %s739
      %p750 = scmp.eq.s32.totalorder %s95, 0
      %p751 = por %p749, %p750
      %p752 = scmp.ne.s32.totalorder %s738, %s739
      %p753 = scmp.eq.s32.totalorder %s96, 1
      %p754 = por %p752, %p753
      %p756 = scmp.ne.s32.totalorder %s739, %s755
      %p757 = scmp.eq.s32.totalorder %s96, 0
      %p758 = por %p756, %p757
      %p759 = scmp.le.s32.totalorder 1, %s90
      %p760 = scmp.lt.s32.totalorder %s90, 3
      %p761 = pnand %p759, %p760
      %p762 = pneg %p761
      // Predicated region
      $region9: #{tpu_custom_call.1} parent=5 // pred_check
        _
      $region10: #{tpu_custom_call.1} parent=5 // pred_check_branch
        %764 = sbr.rel (%p761) target = $region12
      $region11: #{tpu_custom_call.1} parent=5 // pred_region
        %s765 = ssub.s32 %s90, 1
        // Predicated region
        $region13: #{tpu_custom_call.1} parent=11 // pred_check
          %p766 = pneg %p137
        $region14: #{tpu_custom_call.1} parent=11 // pred_check_branch
          %768 = sbr.rel (%p766) target = $region16
        $region15: #{tpu_custom_call.1} parent=11 // pred_region
          _
        $region16: #{tpu_custom_call.1} parent=11 // pred_fallthru
          _
        // Predicated region
        $region17: #{tpu_custom_call.1} parent=11 // pred_check
          %p769 = pneg %p158
        $region18: #{tpu_custom_call.1} parent=11 // pred_check_branch
          %771 = sbr.rel (%p769) target = $region20
        $region19: #{tpu_custom_call.1} parent=11 // pred_region
          %s773 = ssub.s32 16, 16
          %774 = vsyncadd [#allocation13], %s773
          %s776 = sshll.u32 [#allocation12], 4
          %s777 = int_to_ptr.vmem [resolvable:$true] %s776
          %779 = dma.hbm_to_vmem [thread:$0]  %s7, 16, %s777, [#allocation13]
        $region20: #{tpu_custom_call.1} parent=11 // pred_fallthru
          _
        // Predicated region
        $region21: #{tpu_custom_call.1} parent=11 // pred_check
          %p780 = pneg %p179
        $region22: #{tpu_custom_call.1} parent=11 // pred_check_branch
          %782 = sbr.rel (%p780) target = $region24
        $region23: #{tpu_custom_call.1} parent=11 // pred_region
          %s784 = ssub.s32 16, 16
          %785 = vsyncadd [#allocation13], %s784
          %s787 = sshll.u32 [#allocation14], 4
          %s788 = int_to_ptr.vmem [resolvable:$true] %s787
          %790 = dma.hbm_to_vmem [thread:$0]  %s9, 16, %s788, [#allocation13]
        $region24: #{tpu_custom_call.1} parent=11 // pred_fallthru
          _
        // Predicated region
        $region25: #{tpu_custom_call.1} parent=11 // pred_check
          %p791 = pneg %p200
        $region26: #{tpu_custom_call.1} parent=11 // pred_check_branch
          %793 = sbr.rel (%p791) target = $region28
        $region27: #{tpu_custom_call.1} parent=11 // pred_region
          _
        $region28: #{tpu_custom_call.1} parent=11 // pred_fallthru
          _
        // Predicated region
        $region29: #{tpu_custom_call.1} parent=11 // pred_check
          %p794 = pneg %p221
        $region30: #{tpu_custom_call.1} parent=11 // pred_check_branch
          %796 = sbr.rel (%p794) target = $region32
        $region31: #{tpu_custom_call.1} parent=11 // pred_region
          %s798 = ssub.s32 32, 32
          %799 = vsyncadd [#allocation16], %s798
          %s801 = sshll.u32 [#allocation15], 4
          %s802 = int_to_ptr.vmem [resolvable:$true] %s801
          %804 = dma.hbm_to_vmem [thread:$0]  %s13, 32, %s802, [#allocation16]
        $region32: #{tpu_custom_call.1} parent=11 // pred_fallthru
          _
        // Predicated region
        $region33: #{tpu_custom_call.1} parent=11 // pred_check
          %p805 = pneg %p242
        $region34: #{tpu_custom_call.1} parent=11 // pred_check_branch
          %807 = sbr.rel (%p805) target = $region36
        $region35: #{tpu_custom_call.1} parent=11 // pred_region
          %s809 = ssub.s32 2048, 2048
          %810 = vsyncadd [#allocation16], %s809
          %s811 = sshll.u32 [#allocation17], 4
          %s812 = int_to_ptr.vmem [resolvable:$true] %s811
          %817 = dma.hbm_to_vmem [thread:$0]  %s15, 2048, %s812, [#allocation16], 64, 64, 4
        $region36: #{tpu_custom_call.1} parent=11 // pred_fallthru
          _
        // Predicated region
        $region37: #{tpu_custom_call.1} parent=11 // pred_check
          %p818 = pneg %p263
        $region38: #{tpu_custom_call.1} parent=11 // pred_check_branch
          %820 = sbr.rel (%p818) target = $region40
        $region39: #{tpu_custom_call.1} parent=11 // pred_region
          %s822 = ssub.s32 16, 16
          %823 = vsyncadd [#allocation19], %s822
          %s825 = sshll.u32 [#allocation18], 4
          %s826 = int_to_ptr.vmem [resolvable:$true] %s825
          %828 = dma.hbm_to_vmem [thread:$0]  %s17, 16, %s826, [#allocation19]
        $region40: #{tpu_custom_call.1} parent=11 // pred_fallthru
          _
        // Predicated region
        $region41: #{tpu_custom_call.1} parent=11 // pred_check
          %p829 = pneg %p284
        $region42: #{tpu_custom_call.1} parent=11 // pred_check_branch
          %831 = sbr.rel (%p829) target = $region44
        $region43: #{tpu_custom_call.1} parent=11 // pred_region
          %s833 = ssub.s32 16, 16
          %834 = vsyncadd [#allocation19], %s833
          %s836 = sshll.u32 [#allocation20], 4
          %s837 = int_to_ptr.vmem [resolvable:$true] %s836
          %839 = dma.hbm_to_vmem [thread:$0]  %s19, 16, %s837, [#allocation19]
        $region44: #{tpu_custom_call.1} parent=11 // pred_fallthru
          _
        // Predicated region
        $region45: #{tpu_custom_call.1} parent=11 // pred_check
          %p840 = pneg %p305
        $region46: #{tpu_custom_call.1} parent=11 // pred_check_branch
          %842 = sbr.rel (%p840) target = $region48
        $region47: #{tpu_custom_call.1} parent=11 // pred_region
          %s844 = ssub.s32 16, 16
          %845 = vsyncadd [#allocation22], %s844
          %s847 = sshll.u32 [#allocation21], 4
          %s848 = int_to_ptr.vmem [resolvable:$true] %s847
          %850 = dma.hbm_to_vmem [thread:$0]  %s21, 16, %s848, [#allocation22]
        $region48: #{tpu_custom_call.1} parent=11 // pred_fallthru
          _
        // Predicated region
        $region49: #{tpu_custom_call.1} parent=11 // pred_check
          %p851 = pneg %p326
        $region50: #{tpu_custom_call.1} parent=11 // pred_check_branch
          %853 = sbr.rel (%p851) target = $region52
        $region51: #{tpu_custom_call.1} parent=11 // pred_region
          _
        $region52: #{tpu_custom_call.1} parent=11 // pred_fallthru
          _
        // Predicated region
        $region53: #{tpu_custom_call.1} parent=11 // pred_check
          %p854 = pneg %p347
        $region54: #{tpu_custom_call.1} parent=11 // pred_check_branch
          %856 = sbr.rel (%p854) target = $region56
        $region55: #{tpu_custom_call.1} parent=11 // pred_region
          %s858 = ssub.s32 48, 48
          %859 = vsyncadd [#allocation22], %s858
          %s861 = sshll.u32 [#allocation23], 4
          %s862 = int_to_ptr.vmem [resolvable:$true] %s861
          %864 = dma.hbm_to_vmem [thread:$0]  %s25, 48, %s862, [#allocation22]
        $region56: #{tpu_custom_call.1} parent=11 // pred_fallthru
          _
        // Predicated region
        $region57: #{tpu_custom_call.1} parent=11 // pred_check
          %p865 = pneg %p368
        $region58: #{tpu_custom_call.1} parent=11 // pred_check_branch
          %867 = sbr.rel (%p865) target = $region60
        $region59: #{tpu_custom_call.1} parent=11 // pred_region
          %s869 = ssub.s32 1024, 1024
          %870 = vsyncadd [#allocation25], %s869
          %s871 = sshll.u32 [#allocation24], 4
          %s872 = int_to_ptr.vmem [resolvable:$true] %s871
          %877 = dma.hbm_to_vmem [thread:$0]  %s27, 1024, %s872, [#allocation25], 64, 64, 4
        $region60: #{tpu_custom_call.1} parent=11 // pred_fallthru
          _
        // Predicated region
        $region61: #{tpu_custom_call.1} parent=11 // pred_check
          %p878 = pneg %p389
        $region62: #{tpu_custom_call.1} parent=11 // pred_check_branch
          %880 = sbr.rel (%p878) target = $region64
        $region63: #{tpu_custom_call.1} parent=11 // pred_region
          %s882 = ssub.s32 16, 16
          %883 = vsyncadd [#allocation25], %s882
          %s885 = sshll.u32 [#allocation26], 4
          %s886 = int_to_ptr.vmem [resolvable:$true] %s885
          %888 = dma.hbm_to_vmem [thread:$0]  %s29, 16, %s886, [#allocation25]
        $region64: #{tpu_custom_call.1} parent=11 // pred_fallthru
          _
        // Predicated region
        $region65: #{tpu_custom_call.1} parent=11 // pred_check
          %p889 = pneg %p410
        $region66: #{tpu_custom_call.1} parent=11 // pred_check_branch
          %891 = sbr.rel (%p889) target = $region68
        $region67: #{tpu_custom_call.1} parent=11 // pred_region
          %s893 = ssub.s32 16, 16
          %894 = vsyncadd [#allocation28], %s893
          %s896 = sshll.u32 [#allocation27], 4
          %s897 = int_to_ptr.vmem [resolvable:$true] %s896
          %899 = dma.hbm_to_vmem [thread:$0]  %s31, 16, %s897, [#allocation28]
        $region68: #{tpu_custom_call.1} parent=11 // pred_fallthru
          _
        // Predicated region
        $region69: #{tpu_custom_call.1} parent=11 // pred_check
          %p900 = pneg %p431
        $region70: #{tpu_custom_call.1} parent=11 // pred_check_branch
          %902 = sbr.rel (%p900) target = $region72
        $region71: #{tpu_custom_call.1} parent=11 // pred_region
          %s904 = ssub.s32 16, 16
          %905 = vsyncadd [#allocation28], %s904
          %s907 = sshll.u32 [#allocation29], 4
          %s908 = int_to_ptr.vmem [resolvable:$true] %s907
          %910 = dma.hbm_to_vmem [thread:$0]  %s33, 16, %s908, [#allocation28]
        $region72: #{tpu_custom_call.1} parent=11 // pred_fallthru
          _
        // Predicated region
        $region73: #{tpu_custom_call.1} parent=11 // pred_check
          %p911 = pneg %p452
        $region74: #{tpu_custom_call.1} parent=11 // pred_check_branch
          %913 = sbr.rel (%p911) target = $region76
        $region75: #{tpu_custom_call.1} parent=11 // pred_region
          %s915 = ssub.s32 16, 16
          %916 = vsyncadd [#allocation10], %s915
          %919 = dma.hbm_to_smem %s35, 16, [#allocation30], [#allocation10]
        $region76: #{tpu_custom_call.1} parent=11 // pred_fallthru
          _
        // Predicated region
        $region77: #{tpu_custom_call.1} parent=11 // pred_check
          %p920 = pneg %p473
        $region78: #{tpu_custom_call.1} parent=11 // pred_check_branch
          %922 = sbr.rel (%p920) target = $region80
        $region79: #{tpu_custom_call.1} parent=11 // pred_region
          %s924 = ssub.s32 16, 16
          %925 = vsyncadd [#allocation11], %s924
          %s927 = sshll.u32 %s37, 4
          %s928 = int_to_ptr.vmem [resolvable:$true] %s927
          %930 = dma.vmem_to_smem %s928, 16, [#allocation31], [#allocation11]
        $region80: #{tpu_custom_call.1} parent=11 // pred_fallthru
          _
        // Predicated region
        $region81: #{tpu_custom_call.1} parent=11 // pred_check
          %p931 = pneg %p494
        $region82: #{tpu_custom_call.1} parent=11 // pred_check_branch
          %933 = sbr.rel (%p931) target = $region84
        $region83: #{tpu_custom_call.1} parent=11 // pred_region
          _
        $region84: #{tpu_custom_call.1} parent=11 // pred_fallthru
          _
        // Predicated region
        $region85: #{tpu_custom_call.1} parent=11 // pred_check
          %p934 = pneg %p515
        $region86: #{tpu_custom_call.1} parent=11 // pred_check_branch
          %936 = sbr.rel (%p934) target = $region88
        $region87: #{tpu_custom_call.1} parent=11 // pred_region
          _
        $region88: #{tpu_custom_call.1} parent=11 // pred_fallthru
          _
        // Predicated region
        $region89: #{tpu_custom_call.1} parent=11 // pred_check
          %p937 = pneg %p536
        $region90: #{tpu_custom_call.1} parent=11 // pred_check_branch
          %939 = sbr.rel (%p937) target = $region92
        $region91: #{tpu_custom_call.1} parent=11 // pred_region
          _
        $region92: #{tpu_custom_call.1} parent=11 // pred_fallthru
          _
        // Predicated region
        $region93: #{tpu_custom_call.1} parent=11 // pred_check
          %p940 = pneg %p557
        $region94: #{tpu_custom_call.1} parent=11 // pred_check_branch
          %942 = sbr.rel (%p940) target = $region96
        $region95: #{tpu_custom_call.1} parent=11 // pred_region
          _
        $region96: #{tpu_custom_call.1} parent=11 // pred_fallthru
          _
        // Predicated region
        $region97: #{tpu_custom_call.1} parent=11 // pred_check
          %p943 = pneg %p578
        $region98: #{tpu_custom_call.1} parent=11 // pred_check_branch
          %945 = sbr.rel (%p943) target = $region100
        $region99: #{tpu_custom_call.1} parent=11 // pred_region
          _
        $region100: #{tpu_custom_call.1} parent=11 // pred_fallthru
          _
        // Predicated region
        $region101: #{tpu_custom_call.1} parent=11 // pred_check
          %p946 = pneg %p599
        $region102: #{tpu_custom_call.1} parent=11 // pred_check_branch
          %948 = sbr.rel (%p946) target = $region104
        $region103: #{tpu_custom_call.1} parent=11 // pred_region
          _
        $region104: #{tpu_custom_call.1} parent=11 // pred_fallthru
          _
        // Predicated region
        $region105: #{tpu_custom_call.1} parent=11 // pred_check
          %p949 = pneg %p620
        $region106: #{tpu_custom_call.1} parent=11 // pred_check_branch
          %951 = sbr.rel (%p949) target = $region108
        $region107: #{tpu_custom_call.1} parent=11 // pred_region
          _
        $region108: #{tpu_custom_call.1} parent=11 // pred_fallthru
          _
        // Predicated region
        $region109: #{tpu_custom_call.1} parent=11 // pred_check
          %p952 = pneg %p641
        $region110: #{tpu_custom_call.1} parent=11 // pred_check_branch
          %954 = sbr.rel (%p952) target = $region112
        $region111: #{tpu_custom_call.1} parent=11 // pred_region
          _
        $region112: #{tpu_custom_call.1} parent=11 // pred_fallthru
          _
        // Predicated region
        $region113: #{tpu_custom_call.1} parent=11 // pred_check
          %p955 = pneg %p662
        $region114: #{tpu_custom_call.1} parent=11 // pred_check_branch
          %957 = sbr.rel (%p955) target = $region116
        $region115: #{tpu_custom_call.1} parent=11 // pred_region
          %s959 = ssub.s32 2048, 2048
          %960 = vsyncadd [#allocation33], %s959
          %s961 = sshll.u32 [#allocation32], 4
          %s962 = int_to_ptr.vmem [resolvable:$true] %s961
          %967 = dma.hbm_to_vmem [thread:$0]  %s55, 2048, %s962, [#allocation33], 64, 64, 4
        $region116: #{tpu_custom_call.1} parent=11 // pred_fallthru
          _
        // Predicated region
        $region117: #{tpu_custom_call.1} parent=11 // pred_check
          %p968 = pneg %p683
        $region118: #{tpu_custom_call.1} parent=11 // pred_check_branch
          %970 = sbr.rel (%p968) target = $region120
        $region119: #{tpu_custom_call.1} parent=11 // pred_region
          _
        $region120: #{tpu_custom_call.1} parent=11 // pred_fallthru
          _
        // Predicated region
        $region121: #{tpu_custom_call.1} parent=11 // pred_check
          %p971 = pneg %p704
        $region122: #{tpu_custom_call.1} parent=11 // pred_check_branch
          %973 = sbr.rel (%p971) target = $region124
        $region123: #{tpu_custom_call.1} parent=11 // pred_region
          _
        $region124: #{tpu_custom_call.1} parent=11 // pred_fallthru
          _
        // Predicated region
        $region125: #{tpu_custom_call.1} parent=11 // pred_check
          %p974 = pneg %p725
        $region126: #{tpu_custom_call.1} parent=11 // pred_check_branch
          %976 = sbr.rel (%p974) target = $region128
        $region127: #{tpu_custom_call.1} parent=11 // pred_region
          _
        $region128: #{tpu_custom_call.1} parent=11 // pred_fallthru
          _
      $region12: #{tpu_custom_call.1} parent=5 // pred_fallthru
        _
      %p977 = scmp.lt.s32.totalorder %s90, 2
      // Predicated region
      $region129: #{tpu_custom_call.1} parent=5 // pred_check
        %p978 = pneg %p977
      $region130: #{tpu_custom_call.1} parent=5 // pred_check_branch
        %980 = sbr.rel (%p978) target = $region132
      $region131: #{tpu_custom_call.1} parent=5 // pred_region
        // Predicated region
        $region133: #{tpu_custom_call.1} parent=131 // pred_check
          %p981 = pneg %p110
        $region134: #{tpu_custom_call.1} parent=131 // pred_check_branch
          %983 = sbr.rel (%p981) target = $region136
        $region135: #{tpu_custom_call.1} parent=131 // pred_region
          %s984 = sand.u32 %s100, 1
          %s985 = scalar_lea.sflag [#allocation8], %s984
          %s986 = sand.u32 %s100, 1
          %s987 = smul.addr %s986, 16
          %s988 = scalar_lea.vmem [#allocation7], %s987
          %s990 = ssub.s32 256, 256
          %991 = vsyncadd %s985, %s990
          %s992 = smul.addr %s90, 2
          %s993 = smul.addr %s992, 128
          %s994 = scalar_lea.hbm %s3, %s993
          %s995 = sshll.u32 %s988, 4
          %s996 = int_to_ptr.vmem [resolvable:$true] %s995
          %1001 = dma.hbm_to_vmem [thread:$0]  %s994, 256, %s996, %s985, 128, 128, 8
        $region136: #{tpu_custom_call.1} parent=131 // pred_fallthru
          _
      $region132: #{tpu_custom_call.1} parent=5 // pred_fallthru
        _
      %p1002 = scmp.le.s32.totalorder 1, %s90
      %p1003 = scmp.lt.s32.totalorder %s90, 3
      %p1004 = pnand %p1002, %p1003
      %p1005 = pneg %p1004
      // Predicated region
      $region137: #{tpu_custom_call.1} parent=5 // pred_check
        _
      $region138: #{tpu_custom_call.1} parent=5 // pred_check_branch
        %1007 = sbr.rel (%p1004) target = $region140
      $region139: #{tpu_custom_call.1} parent=5 // pred_region
        %s1008 = ssub.s32 %s90, 1
        %s1009 = sand.u32 %s103, 1
        %s1010 = scalar_lea.sflag [#allocation8], %s1009
        %s1011 = sand.u32 %s103, 1
        %s1012 = smul.addr %s1011, 16
        %s1013 = scalar_lea.vmem [#allocation7], %s1012
        // Predicated region
        $region141: #{tpu_custom_call.1} parent=139 // pred_check
          %p1014 = pneg %p116
        $region142: #{tpu_custom_call.1} parent=139 // pred_check_branch
          %1016 = sbr.rel (%p1014) target = $region144
        $region143: #{tpu_custom_call.1} parent=139 // pred_region
          %1017 = dma.done %s1010, 256
        $region144: #{tpu_custom_call.1} parent=139 // pred_fallthru
          _
        // Predicated region
        $region145: #{tpu_custom_call.1} parent=139 // pred_check
          %p1018 = pneg %p158
        $region146: #{tpu_custom_call.1} parent=139 // pred_check_branch
          %1020 = sbr.rel (%p1018) target = $region148
        $region147: #{tpu_custom_call.1} parent=139 // pred_region
          %1021 = dma.done [#allocation13], 16
        $region148: #{tpu_custom_call.1} parent=139 // pred_fallthru
          _
        // Predicated region
        $region149: #{tpu_custom_call.1} parent=139 // pred_check
          %p1022 = pneg %p179
        $region150: #{tpu_custom_call.1} parent=139 // pred_check_branch
          %1024 = sbr.rel (%p1022) target = $region152
        $region151: #{tpu_custom_call.1} parent=139 // pred_region
          %1025 = dma.done [#allocation13], 16
        $region152: #{tpu_custom_call.1} parent=139 // pred_fallthru
          _
        // Predicated region
        $region153: #{tpu_custom_call.1} parent=139 // pred_check
          %p1026 = pneg %p221
        $region154: #{tpu_custom_call.1} parent=139 // pred_check_branch
          %1028 = sbr.rel (%p1026) target = $region156
        $region155: #{tpu_custom_call.1} parent=139 // pred_region
          %1029 = dma.done [#allocation16], 32
        $region156: #{tpu_custom_call.1} parent=139 // pred_fallthru
          _
        // Predicated region
        $region157: #{tpu_custom_call.1} parent=139 // pred_check
          %p1030 = pneg %p242
        $region158: #{tpu_custom_call.1} parent=139 // pred_check_branch
          %1032 = sbr.rel (%p1030) target = $region160
        $region159: #{tpu_custom_call.1} parent=139 // pred_region
          %1033 = dma.done [#allocation16], 2048
        $region160: #{tpu_custom_call.1} parent=139 // pred_fallthru
          _
        // Predicated region
        $region161: #{tpu_custom_call.1} parent=139 // pred_check
          %p1034 = pneg %p263
        $region162: #{tpu_custom_call.1} parent=139 // pred_check_branch
          %1036 = sbr.rel (%p1034) target = $region164
        $region163: #{tpu_custom_call.1} parent=139 // pred_region
          %1037 = dma.done [#allocation19], 16
        $region164: #{tpu_custom_call.1} parent=139 // pred_fallthru
          _
        // Predicated region
        $region165: #{tpu_custom_call.1} parent=139 // pred_check
          %p1038 = pneg %p284
        $region166: #{tpu_custom_call.1} parent=139 // pred_check_branch
          %1040 = sbr.rel (%p1038) target = $region168
        $region167: #{tpu_custom_call.1} parent=139 // pred_region
          %1041 = dma.done [#allocation19], 16
        $region168: #{tpu_custom_call.1} parent=139 // pred_fallthru
          _
        // Predicated region
        $region169: #{tpu_custom_call.1} parent=139 // pred_check
          %p1042 = pneg %p305
        $region170: #{tpu_custom_call.1} parent=139 // pred_check_branch
          %1044 = sbr.rel (%p1042) target = $region172
        $region171: #{tpu_custom_call.1} parent=139 // pred_region
          %1045 = dma.done [#allocation22], 16
        $region172: #{tpu_custom_call.1} parent=139 // pred_fallthru
          _
        // Predicated region
        $region173: #{tpu_custom_call.1} parent=139 // pred_check
          %p1046 = pneg %p347
        $region174: #{tpu_custom_call.1} parent=139 // pred_check_branch
          %1048 = sbr.rel (%p1046) target = $region176
        $region175: #{tpu_custom_call.1} parent=139 // pred_region
          %1049 = dma.done [#allocation22], 48
        $region176: #{tpu_custom_call.1} parent=139 // pred_fallthru
          _
        // Predicated region
        $region177: #{tpu_custom_call.1} parent=139 // pred_check
          %p1050 = pneg %p368
        $region178: #{tpu_custom_call.1} parent=139 // pred_check_branch
          %1052 = sbr.rel (%p1050) target = $region180
        $region179: #{tpu_custom_call.1} parent=139 // pred_region
          %1053 = dma.done [#allocation25], 1024
        $region180: #{tpu_custom_call.1} parent=139 // pred_fallthru
          _
        // Predicated region
        $region181: #{tpu_custom_call.1} parent=139 // pred_check
          %p1054 = pneg %p389
        $region182: #{tpu_custom_call.1} parent=139 // pred_check_branch
          %1056 = sbr.rel (%p1054) target = $region184
        $region183: #{tpu_custom_call.1} parent=139 // pred_region
          %1057 = dma.done [#allocation25], 16
        $region184: #{tpu_custom_call.1} parent=139 // pred_fallthru
          _
        // Predicated region
        $region185: #{tpu_custom_call.1} parent=139 // pred_check
          %p1058 = pneg %p410
        $region186: #{tpu_custom_call.1} parent=139 // pred_check_branch
          %1060 = sbr.rel (%p1058) target = $region188
        $region187: #{tpu_custom_call.1} parent=139 // pred_region
          %1061 = dma.done [#allocation28], 16
        $region188: #{tpu_custom_call.1} parent=139 // pred_fallthru
          _
        // Predicated region
        $region189: #{tpu_custom_call.1} parent=139 // pred_check
          %p1062 = pneg %p431
        $region190: #{tpu_custom_call.1} parent=139 // pred_check_branch
          %1064 = sbr.rel (%p1062) target = $region192
        $region191: #{tpu_custom_call.1} parent=139 // pred_region
          %1065 = dma.done [#allocation28], 16
        $region192: #{tpu_custom_call.1} parent=139 // pred_fallthru
          _
        // Predicated region
        $region193: #{tpu_custom_call.1} parent=139 // pred_check
          %p1066 = pneg %p452
        $region194: #{tpu_custom_call.1} parent=139 // pred_check_branch
          %1068 = sbr.rel (%p1066) target = $region196
        $region195: #{tpu_custom_call.1} parent=139 // pred_region
          %1069 = dma.done [#allocation10], 16
        $region196: #{tpu_custom_call.1} parent=139 // pred_fallthru
          _
        // Predicated region
        $region197: #{tpu_custom_call.1} parent=139 // pred_check
          %p1070 = pneg %p473
        $region198: #{tpu_custom_call.1} parent=139 // pred_check_branch
          %1072 = sbr.rel (%p1070) target = $region200
        $region199: #{tpu_custom_call.1} parent=139 // pred_region
          %1073 = dma.done [#allocation11], 16
        $region200: #{tpu_custom_call.1} parent=139 // pred_fallthru
          _
        // Predicated region
        $region201: #{tpu_custom_call.1} parent=139 // pred_check
          %p1074 = pneg %p662
        $region202: #{tpu_custom_call.1} parent=139 // pred_check_branch
          %1076 = sbr.rel (%p1074) target = $region204
        $region203: #{tpu_custom_call.1} parent=139 // pred_region
          %1077 = dma.done [#allocation33], 2048
        $region204: #{tpu_custom_call.1} parent=139 // pred_fallthru
          _
        %1078 = sfence
        %s1079 = sand.u32 %s103, 1
        %s1080 = scalar_lea.sflag [#allocation8], %s1079
        %s1081 = sand.u32 %s103, 1
        %s1082 = smul.addr %s1081, 16
        %s1083 = scalar_lea.vmem [#allocation7], %s1082
        %p1084 = pneg %p116
        %p1085 = pneg %p113
        %p1086 = pneg %p137
        %p1087 = pneg %p134
        %p1088 = pneg %p158
        %p1089 = pneg %p155
        %p1090 = pneg %p179
        %p1091 = pneg %p176
        %p1092 = pneg %p200
        %p1093 = pneg %p197
        %p1094 = pneg %p221
        %p1095 = pneg %p218
        %p1096 = pneg %p242
        %p1097 = pneg %p239
        %p1098 = pneg %p263
        %p1099 = pneg %p260
        %p1100 = pneg %p284
        %p1101 = pneg %p281
        %p1102 = pneg %p305
        %p1103 = pneg %p302
        %p1104 = pneg %p326
        %p1105 = pneg %p323
        %p1106 = pneg %p347
        %p1107 = pneg %p344
        %p1108 = pneg %p368
        %p1109 = pneg %p365
        %p1110 = pneg %p389
        %p1111 = pneg %p386
        %p1112 = pneg %p410
        %p1113 = pneg %p407
        %p1114 = pneg %p431
        %p1115 = pneg %p428
        %p1116 = pneg %p452
        %p1117 = pneg %p449
        %p1118 = pneg %p473
        %p1119 = pneg %p470
        %p1120 = pneg %p494
        %p1121 = pneg %p491
        %p1122 = pneg %p515
        %p1123 = pneg %p512
        %p1124 = pneg %p536
        %p1125 = pneg %p533
        %p1126 = pneg %p557
        %p1127 = pneg %p554
        %p1128 = pneg %p578
        %p1129 = pneg %p575
        %p1130 = pneg %p599
        %p1131 = pneg %p596
        %p1132 = pneg %p620
        %p1133 = pneg %p617
        %p1134 = pneg %p641
        %p1135 = pneg %p638
        %p1136 = pneg %p662
        %p1137 = pneg %p659
        %p1138 = pneg %p683
        %p1139 = pneg %p680
        %p1140 = pneg %p704
        %p1141 = pneg %p701
        %p1142 = pneg %p725
        %p1143 = pneg %p722
        %p1144 = pneg %p751
        %p1145 = pneg %p748
        %s1146 = sand.u32 %s738, 1
        %s1147 = scalar_lea.sflag [#allocation9], %s1146
        %s1148 = sand.u32 %s738, 1
        %s1149 = smul.addr %s1148, 16
        %s1150 = scalar_lea.vmem [#allocation34], %s1149
        %v1152 = vld [vmem:[%s1013] sm:$0xff]
        %v1153 = vld [vmem:[%s1013 + $0x8] sm:$0xff]
        %s1154 = sld [smem:[#allocation4 + %s95]]
        %v1155 = vld [vmem:[#allocation12] sm:$0x1]
        %v1156 = vld [vmem:[#allocation14] sm:$0x1]
        %1157 = vadd.xlane.f32.xlu0 %v1152
        %v1158 = vpop.xlane.xlu0 %1157
        %1159 = vadd.xlane.f32.xlu0 %v1153
        %v1160 = vpop.xlane.xlu0 %1159
        %v1161 = vrcp.pop 128.0
        %v1162 = vmul.f32 %v1158, %v1161
        %v1163 = vmul.f32 %v1160, %v1161
        %v1164 = vsub.f32 %v1152, %v1162
        %v1165 = vsub.f32 %v1153, %v1163
        %v1166 = vmul.f32 %v1164, %v1164
        %v1167 = vmul.f32 %v1165, %v1165
        %1168 = vadd.xlane.f32.xlu0 %v1166
        %v1169 = vpop.xlane.xlu0 %1168
        %1170 = vadd.xlane.f32.xlu0 %v1167
        %v1171 = vpop.xlane.xlu0 %1170
        %v1172 = vmul.f32 %v1169, %v1161
        %v1173 = vmul.f32 %v1171, %v1161
        %v1174 = vadd.f32 %v1172, 1e-05
        %v1175 = vadd.f32 %v1173, 1e-05
        %v1176 = vrsqrt.pop %v1174
        %v1177 = vrsqrt.pop %v1175
        %v1178 = vmul.f32 %v1164, %v1176
        %v1179 = vmul.f32 %v1165, %v1177
        %v1181 = vlaneseq
        %v1182 = vshrl.u32 %v1181, 7
        %v1183 = vsub.s32 0, %v1182
        %v1184 = vrot.slane %v1155, %v1183
        %v1186 = vmul.f32 %v1178, %v1184
        %v1187 = vmul.f32 %v1179, %v1184
        %v1189 = vlaneseq
        %v1190 = vshrl.u32 %v1189, 7
        %v1191 = vsub.s32 0, %v1190
        %v1192 = vrot.slane %v1156, %v1191
        %v1194 = vadd.f32 %v1186, %v1192
        %v1195 = vadd.f32 %v1187, %v1192
        %v1196 = vpack.c.bf16 %v1195, %v1194
        %v1197 = vld [vmem:[%s11] sm:$0xff]
        %v1198 = vld [vmem:[%s11 + $0x8] sm:$0xff]
        %v1199 = vld [vmem:[%s11 + $0x10] sm:$0xff]
        %v1200 = vld [vmem:[%s11 + $0x18] sm:$0xff]
        %v1201 = vld [vmem:[%s11 + $0x20] sm:$0xff]
        %v1202 = vld [vmem:[%s11 + $0x28] sm:$0xff]
        %v1203 = vld [vmem:[%s11 + $0x30] sm:$0xff]
        %v1204 = vld [vmem:[%s11 + $0x38] sm:$0xff]
        %v1205 = vld [vmem:[%s11 + $0x40] sm:$0xff]
        %v1206 = vld [vmem:[%s11 + $0x48] sm:$0xff]
        %v1207 = vld [vmem:[%s11 + $0x50] sm:$0xff]
        %v1208 = vld [vmem:[%s11 + $0x58] sm:$0xff]
        %v1209 = vld [vmem:[%s11 + $0x60] sm:$0xff]
        %v1210 = vld [vmem:[%s11 + $0x68] sm:$0xff]
        %v1211 = vld [vmem:[%s11 + $0x70] sm:$0xff]
        %v1212 = vld [vmem:[%s11 + $0x78] sm:$0xff]
        %v1213 = vld [vmem:[#allocation15] sm:$0x3]
        %v1215 = vlaneseq
        %v1216 = vshrl.u32 %v1215, 7
        %v1217 = vsub.s32 0, %v1216
        %v1218 = vrot.slane %v1213, %v1217
        %v1219 = vlaneseq
        %v1220 = vshrl.u32 %v1219, 7
        %v1221 = vsub.s32 1, %v1220
        %v1222 = vrot.slane %v1213, %v1221
        %v1241 = vunpack.c.l.b16 %v1197
        %v1242 = vunpack.c.h.b16 %v1197
        %v1243 = vunpack.c.l.b16 %v1198
        %v1244 = vunpack.c.h.b16 %v1198
        %v1245 = vunpack.c.l.b16 %v1199
        %v1246 = vunpack.c.h.b16 %v1199
        %v1247 = vunpack.c.l.b16 %v1200
        %v1248 = vunpack.c.h.b16 %v1200
        %v1249 = vunpack.c.l.b16 %v1201
        %v1250 = vunpack.c.h.b16 %v1201
        %v1251 = vunpack.c.l.b16 %v1202
        %v1252 = vunpack.c.h.b16 %v1202
        %v1253 = vunpack.c.l.b16 %v1203
        %v1254 = vunpack.c.h.b16 %v1203
        %v1255 = vunpack.c.l.b16 %v1204
        %v1256 = vunpack.c.h.b16 %v1204
        %v1257 = vunpack.c.l.b16 %v1205
        %v1258 = vunpack.c.h.b16 %v1205
        %v1259 = vunpack.c.l.b16 %v1206
        %v1260 = vunpack.c.h.b16 %v1206
        %v1261 = vunpack.c.l.b16 %v1207
        %v1262 = vunpack.c.h.b16 %v1207
        %v1263 = vunpack.c.l.b16 %v1208
        %v1264 = vunpack.c.h.b16 %v1208
        %v1265 = vunpack.c.l.b16 %v1209
        %v1266 = vunpack.c.h.b16 %v1209
        %v1267 = vunpack.c.l.b16 %v1210
        %v1268 = vunpack.c.h.b16 %v1210
        %v1269 = vunpack.c.l.b16 %v1211
        %v1270 = vunpack.c.h.b16 %v1211
        %v1271 = vunpack.c.l.b16 %v1212
        %v1272 = vunpack.c.h.b16 %v1212
        %v1273 = vpack.c.b16 %v1243, %v1241
        %v1274 = vpack.c.b16 %v1244, %v1242
        %v1275 = vpack.c.b16 %v1247, %v1245
        %v1276 = vpack.c.b16 %v1248, %v1246
        %v1277 = vpack.c.b16 %v1251, %v1249
        %v1278 = vpack.c.b16 %v1252, %v1250
        %v1279 = vpack.c.b16 %v1255, %v1253
        %v1280 = vpack.c.b16 %v1256, %v1254
        %v1281 = vpack.c.b16 %v1259, %v1257
        %v1282 = vpack.c.b16 %v1260, %v1258
        %v1283 = vpack.c.b16 %v1263, %v1261
        %v1284 = vpack.c.b16 %v1264, %v1262
        %v1285 = vpack.c.b16 %v1267, %v1265
        %v1286 = vpack.c.b16 %v1268, %v1266
        %v1287 = vpack.c.b16 %v1271, %v1269
        %v1288 = vpack.c.b16 %v1272, %v1270
        %1305 = vmatprep.subr.bf16.mxu0 %v1274
        %1306 = vmatpush1.bf16.msra.mxu0 %v1273
        %1307 = vmatprep.subr.bf16.mxu0 %v1276
        %1308 = vmatpush1.bf16.msra.mxu0 %v1275
        %1309 = vmatprep.subr.bf16.mxu0 %v1278
        %1310 = vmatpush1.bf16.msra.mxu0 %v1277
        %1311 = vmatprep.subr.bf16.mxu0 %v1280
        %1312 = vmatpush1.bf16.msra.mxu0 %v1279
        %1313 = vmatprep.subr.bf16.mxu0 %v1282
        %1314 = vmatpush1.bf16.msra.mxu0 %v1281
        %1315 = vmatprep.subr.bf16.mxu0 %v1284
        %1316 = vmatpush1.bf16.msra.mxu0 %v1283
        %1317 = vmatprep.subr.bf16.mxu0 %v1286
        %1318 = vmatpush1.bf16.msra.mxu0 %v1285
        %1319 = vmatprep.subr.bf16.mxu0 %v1288
        %1320 = vmatpush1.bf16.msra.mxu0 %v1287
        %1321 = vmatprep.subr.bf16.mxu0 0
        %1322 = vmatpush1.bf16.msra.mxu0 0
        %1323 = vmatprep.subr.bf16.mxu0 0
        %1324 = vmatpush1.bf16.msra.mxu0 0
        %1325 = vmatprep.subr.bf16.mxu0 0
        %1326 = vmatpush1.bf16.msra.mxu0 0
        %1327 = vmatprep.subr.bf16.mxu0 0
        %1328 = vmatpush1.bf16.msra.mxu0 0
        %1329 = vmatprep.subr.bf16.mxu0 0
        %1330 = vmatpush1.bf16.msra.mxu0 0
        %1331 = vmatprep.subr.bf16.mxu0 0
        %1332 = vmatpush1.bf16.msra.mxu0 0
        %1333 = vmatprep.subr.bf16.mxu0 0
        %1334 = vmatpush1.bf16.msra.mxu0 0
        %1335 = vmatprep.subr.bf16.mxu0 0
        %1336 = vmatpush1.bf16.msra.mxu0 0
        %1337 = vmatprep.mubr.bf16.mxu0 0
        %1338 = vmatmul.mubr.bf16.gmra.mrb[0].mxu0 %v1196
        %v1339 = vpop.f32.mrb[0].mxu0
        %v1340 = vadd.f32 %v1218, %v1339
        %v1341 = vpop.f32.mrb[0].mxu0
        %v1342 = vadd.f32 %v1222, %v1341
        %v1343 = vpop.f32.mrb[0].mxu0
        %v1344 = vadd.f32 %v1218, %v1343
        %v1345 = vpop.f32.mrb[0].mxu0
        %v1346 = vadd.f32 %v1222, %v1345
        %1347 = vdwg.mxu0
        %v1348 = vmax.f32 %v1340, 0.0
        %v1349 = vmax.f32 %v1342, 0.0
        %v1350 = vmax.f32 %v1344, 0.0
        %v1351 = vmax.f32 %v1346, 0.0
        %v1352 = vpack.c.bf16 %v1350, %v1348
        %v1353 = vpack.c.bf16 %v1351, %v1349
        %v1354 = vld [vmem:[#allocation17] sm:$0xf]
        %v1355 = vld [vmem:[#allocation17 + $0x4] sm:$0xf]
        %v1356 = vld [vmem:[#allocation17 + $0x8] sm:$0xf]
        %v1357 = vld [vmem:[#allocation17 + $0xc] sm:$0xf]
        %v1358 = vld [vmem:[#allocation17 + $0x10] sm:$0xf]
        %v1359 = vld [vmem:[#allocation17 + $0x14] sm:$0xf]
        %v1360 = vld [vmem:[#allocation17 + $0x18] sm:$0xf]
        %v1361 = vld [vmem:[#allocation17 + $0x1c] sm:$0xf]
        %v1362 = vld [vmem:[#allocation17 + $0x20] sm:$0xf]
        %v1363 = vld [vmem:[#allocation17 + $0x24] sm:$0xf]
        %v1364 = vld [vmem:[#allocation17 + $0x28] sm:$0xf]
        %v1365 = vld [vmem:[#allocation17 + $0x2c] sm:$0xf]
        %v1366 = vld [vmem:[#allocation17 + $0x30] sm:$0xf]
        %v1367 = vld [vmem:[#allocation17 + $0x34] sm:$0xf]
        %v1368 = vld [vmem:[#allocation17 + $0x38] sm:$0xf]
        %v1369 = vld [vmem:[#allocation17 + $0x3c] sm:$0xf]
        %v1370 = vld [vmem:[#allocation17 + $0x40] sm:$0xf]
        %v1371 = vld [vmem:[#allocation17 + $0x44] sm:$0xf]
        %v1372 = vld [vmem:[#allocation17 + $0x48] sm:$0xf]
        %v1373 = vld [vmem:[#allocation17 + $0x4c] sm:$0xf]
        %v1374 = vld [vmem:[#allocation17 + $0x50] sm:$0xf]
        %v1375 = vld [vmem:[#allocation17 + $0x54] sm:$0xf]
        %v1376 = vld [vmem:[#allocation17 + $0x58] sm:$0xf]
        %v1377 = vld [vmem:[#allocation17 + $0x5c] sm:$0xf]
        %v1378 = vld [vmem:[#allocation17 + $0x60] sm:$0xf]
        %v1379 = vld [vmem:[#allocation17 + $0x64] sm:$0xf]
        %v1380 = vld [vmem:[#allocation17 + $0x68] sm:$0xf]
        %v1381 = vld [vmem:[#allocation17 + $0x6c] sm:$0xf]
        %v1382 = vld [vmem:[#allocation17 + $0x70] sm:$0xf]
        %v1383 = vld [vmem:[#allocation17 + $0x74] sm:$0xf]
        %v1384 = vld [vmem:[#allocation17 + $0x78] sm:$0xf]
        %v1385 = vld [vmem:[#allocation17 + $0x7c] sm:$0xf]
        %v1386 = vld [vmem:[#allocation18] sm:$0x1]
        %v1388 = vlaneseq
        %v1389 = vshrl.u32 %v1388, 7
        %v1390 = vsub.s32 0, %v1389
        %v1391 = vrot.slane %v1386, %v1390
        %v1425 = vunpack.c.l.b16 %v1354
        %v1426 = vunpack.c.l.b16 %v1355
        %v1427 = vunpack.c.l.b16 %v1356
        %v1428 = vunpack.c.l.b16 %v1357
        %v1429 = vunpack.c.l.b16 %v1358
        %v1430 = vunpack.c.l.b16 %v1359
        %v1431 = vunpack.c.l.b16 %v1360
        %v1432 = vunpack.c.l.b16 %v1361
        %v1433 = vunpack.c.l.b16 %v1362
        %v1434 = vunpack.c.l.b16 %v1363
        %v1435 = vunpack.c.l.b16 %v1364
        %v1436 = vunpack.c.l.b16 %v1365
        %v1437 = vunpack.c.l.b16 %v1366
        %v1438 = vunpack.c.l.b16 %v1367
        %v1439 = vunpack.c.l.b16 %v1368
        %v1440 = vunpack.c.l.b16 %v1369
        %v1441 = vunpack.c.l.b16 %v1370
        %v1442 = vunpack.c.l.b16 %v1371
        %v1443 = vunpack.c.l.b16 %v1372
        %v1444 = vunpack.c.l.b16 %v1373
        %v1445 = vunpack.c.l.b16 %v1374
        %v1446 = vunpack.c.l.b16 %v1375
        %v1447 = vunpack.c.l.b16 %v1376
        %v1448 = vunpack.c.l.b16 %v1377
        %v1449 = vunpack.c.l.b16 %v1378
        %v1450 = vunpack.c.l.b16 %v1379
        %v1451 = vunpack.c.l.b16 %v1380
        %v1452 = vunpack.c.l.b16 %v1381
        %v1453 = vunpack.c.l.b16 %v1382
        %v1454 = vunpack.c.l.b16 %v1383
        %v1455 = vunpack.c.l.b16 %v1384
        %v1456 = vunpack.c.l.b16 %v1385
        %v1457 = vpack.c.b16 %v1426, %v1425
        %v1458 = vpack.c.b16 %v1428, %v1427
        %v1459 = vpack.c.b16 %v1430, %v1429
        %v1460 = vpack.c.b16 %v1432, %v1431
        %v1461 = vpack.c.b16 %v1434, %v1433
        %v1462 = vpack.c.b16 %v1436, %v1435
        %v1463 = vpack.c.b16 %v1438, %v1437
        %v1464 = vpack.c.b16 %v1440, %v1439
        %v1465 = vpack.c.b16 %v1442, %v1441
        %v1466 = vpack.c.b16 %v1444, %v1443
        %v1467 = vpack.c.b16 %v1446, %v1445
        %v1468 = vpack.c.b16 %v1448, %v1447
        %v1469 = vpack.c.b16 %v1450, %v1449
        %v1470 = vpack.c.b16 %v1452, %v1451
        %v1471 = vpack.c.b16 %v1454, %v1453
        %v1472 = vpack.c.b16 %v1456, %v1455
        %1489 = vmatprep.subr.bf16.mxu0 0
        %1490 = vmatpush1.bf16.msra.mxu0 %v1457
        %1491 = vmatprep.subr.bf16.mxu0 0
        %1492 = vmatpush1.bf16.msra.mxu0 %v1458
        %1493 = vmatprep.subr.bf16.mxu0 0
        %1494 = vmatpush1.bf16.msra.mxu0 %v1459
        %1495 = vmatprep.subr.bf16.mxu0 0
        %1496 = vmatpush1.bf16.msra.mxu0 %v1460
        %1497 = vmatprep.subr.bf16.mxu0 0
        %1498 = vmatpush1.bf16.msra.mxu0 %v1461
        %1499 = vmatprep.subr.bf16.mxu0 0
        %1500 = vmatpush1.bf16.msra.mxu0 %v1462
        %1501 = vmatprep.subr.bf16.mxu0 0
        %1502 = vmatpush1.bf16.msra.mxu0 %v1463
        %1503 = vmatprep.subr.bf16.mxu0 0
        %1504 = vmatpush1.bf16.msra.mxu0 %v1464
        %1505 = vmatprep.subr.bf16.mxu0 0
        %1506 = vmatpush1.bf16.msra.mxu0 %v1465
        %1507 = vmatprep.subr.bf16.mxu0 0
        %1508 = vmatpush1.bf16.msra.mxu0 %v1466
        %1509 = vmatprep.subr.bf16.mxu0 0
        %1510 = vmatpush1.bf16.msra.mxu0 %v1467
        %1511 = vmatprep.subr.bf16.mxu0 0
        %1512 = vmatpush1.bf16.msra.mxu0 %v1468
        %1513 = vmatprep.subr.bf16.mxu0 0
        %1514 = vmatpush1.bf16.msra.mxu0 %v1469
        %1515 = vmatprep.subr.bf16.mxu0 0
        %1516 = vmatpush1.bf16.msra.mxu0 %v1470
        %1517 = vmatprep.subr.bf16.mxu0 0
        %1518 = vmatpush1.bf16.msra.mxu0 %v1471
        %1519 = vmatprep.subr.bf16.mxu0 0
        %1520 = vmatpush1.bf16.msra.mxu0 %v1472
        %1521 = vmatprep.mubr.bf16.mxu0 %v1353
        %1522 = vmatmul.mubr.bf16.gmra.mrb[0].mxu0 %v1352
        %v1523 = vpop.f32.mrb[0].mxu0
        %v1524 = vadd.f32 %v1391, %v1523
        %v1525 = vpop.f32.mrb[0].mxu0
        %v1526 = vpop.f32.mrb[0].mxu0
        %v1527 = vadd.f32 %v1391, %v1526
        %v1528 = vpop.f32.mrb[0].mxu0
        %1529 = vdwg.mxu0
        %v1530 = vmul.f32 %v1524, 0.5
        %v1531 = vmul.f32 %v1527, 0.5
        %v1532 = vadd.f32 %v1152, %v1530
        %v1533 = vadd.f32 %v1153, %v1531
        %v1534 = vld [vmem:[#allocation20] sm:$0x1]
        %v1535 = vld [vmem:[#allocation21] sm:$0x1]
        %1536 = vadd.xlane.f32.xlu0 %v1532
        %v1537 = vpop.xlane.xlu0 %1536
        %1538 = vadd.xlane.f32.xlu0 %v1533
        %v1539 = vpop.xlane.xlu0 %1538
        %v1540 = vmul.f32 %v1537, %v1161
        %v1541 = vmul.f32 %v1539, %v1161
        %v1542 = vsub.f32 %v1532, %v1540
        %v1543 = vsub.f32 %v1533, %v1541
        %v1544 = vmul.f32 %v1542, %v1542
        %v1545 = vmul.f32 %v1543, %v1543
        %1546 = vadd.xlane.f32.xlu0 %v1544
        %v1547 = vpop.xlane.xlu0 %1546
        %1548 = vadd.xlane.f32.xlu0 %v1545
        %v1549 = vpop.xlane.xlu0 %1548
        %v1550 = vmul.f32 %v1547, %v1161
        %v1551 = vmul.f32 %v1549, %v1161
        %v1552 = vadd.f32 %v1550, 1e-05
        %v1553 = vadd.f32 %v1551, 1e-05
        %v1554 = vrsqrt.pop %v1552
        %v1555 = vrsqrt.pop %v1553
        %v1556 = vmul.f32 %v1542, %v1554
        %v1557 = vmul.f32 %v1543, %v1555
        %v1559 = vlaneseq
        %v1560 = vshrl.u32 %v1559, 7
        %v1561 = vsub.s32 0, %v1560
        %v1562 = vrot.slane %v1534, %v1561
        %v1564 = vmul.f32 %v1556, %v1562
        %v1565 = vmul.f32 %v1557, %v1562
        %v1567 = vlaneseq
        %v1568 = vshrl.u32 %v1567, 7
        %v1569 = vsub.s32 0, %v1568
        %v1570 = vrot.slane %v1535, %v1569
        %v1572 = vadd.f32 %v1564, %v1570
        %v1573 = vadd.f32 %v1565, %v1570
        %v1574 = vpack.c.bf16 %v1573, %v1572
        %v1575 = vld [vmem:[%s23] sm:$0xff]
        %v1576 = vld [vmem:[%s23 + $0x8] sm:$0xf]
        %v1577 = vld [vmem:[%s23 + $0xc] sm:$0xff]
        %v1578 = vld [vmem:[%s23 + $0x14] sm:$0xf]
        %v1579 = vld [vmem:[%s23 + $0x18] sm:$0xff]
        %v1580 = vld [vmem:[%s23 + $0x20] sm:$0xf]
        %v1581 = vld [vmem:[%s23 + $0x24] sm:$0xff]
        %v1582 = vld [vmem:[%s23 + $0x2c] sm:$0xf]
        %v1583 = vld [vmem:[%s23 + $0x30] sm:$0xff]
        %v1584 = vld [vmem:[%s23 + $0x38] sm:$0xf]
        %v1585 = vld [vmem:[%s23 + $0x3c] sm:$0xff]
        %v1586 = vld [vmem:[%s23 + $0x44] sm:$0xf]
        %v1587 = vld [vmem:[%s23 + $0x48] sm:$0xff]
        %v1588 = vld [vmem:[%s23 + $0x50] sm:$0xf]
        %v1589 = vld [vmem:[%s23 + $0x54] sm:$0xff]
        %v1590 = vld [vmem:[%s23 + $0x5c] sm:$0xf]
        %v1591 = vld [vmem:[%s23 + $0x60] sm:$0xff]
        %v1592 = vld [vmem:[%s23 + $0x68] sm:$0xf]
        %v1593 = vld [vmem:[%s23 + $0x6c] sm:$0xff]
        %v1594 = vld [vmem:[%s23 + $0x74] sm:$0xf]
        %v1595 = vld [vmem:[%s23 + $0x78] sm:$0xff]
        %v1596 = vld [vmem:[%s23 + $0x80] sm:$0xf]
        %v1597 = vld [vmem:[%s23 + $0x84] sm:$0xff]
        %v1598 = vld [vmem:[%s23 + $0x8c] sm:$0xf]
        %v1599 = vld [vmem:[%s23 + $0x90] sm:$0xff]
        %v1600 = vld [vmem:[%s23 + $0x98] sm:$0xf]
        %v1601 = vld [vmem:[%s23 + $0x9c] sm:$0xff]
        %v1602 = vld [vmem:[%s23 + $0xa4] sm:$0xf]
        %v1603 = vld [vmem:[%s23 + $0xa8] sm:$0xff]
        %v1604 = vld [vmem:[%s23 + $0xb0] sm:$0xf]
        %v1605 = vld [vmem:[%s23 + $0xb4] sm:$0xff]
        %v1606 = vld [vmem:[%s23 + $0xbc] sm:$0xf]
        %v1607 = vld [vmem:[#allocation23] sm:$0x7]
        %v1609 = vlaneseq
        %v1610 = vshrl.u32 %v1609, 7
        %v1611 = vsub.s32 0, %v1610
        %v1612 = vrot.slane %v1607, %v1611
        %v1613 = vlaneseq
        %v1614 = vshrl.u32 %v1613, 7
        %v1615 = vsub.s32 1, %v1614
        %v1616 = vrot.slane %v1607, %v1615
        %v1617 = vlaneseq
        %v1618 = vshrl.u32 %v1617, 7
        %v1619 = vsub.s32 2, %v1618
        %v1620 = vrot.slane %v1607, %v1619
        %v1656 = vunpack.c.l.b16 %v1575
        %v1657 = vunpack.c.h.b16 %v1575
        %v1658 = vunpack.c.l.b16 %v1576
        %v1659 = vunpack.c.l.b16 %v1577
        %v1660 = vunpack.c.h.b16 %v1577
        %v1661 = vunpack.c.l.b16 %v1578
        %v1662 = vunpack.c.l.b16 %v1579
        %v1663 = vunpack.c.h.b16 %v1579
        %v1664 = vunpack.c.l.b16 %v1580
        %v1665 = vunpack.c.l.b16 %v1581
        %v1666 = vunpack.c.h.b16 %v1581
        %v1667 = vunpack.c.l.b16 %v1582
        %v1668 = vunpack.c.l.b16 %v1583
        %v1669 = vunpack.c.h.b16 %v1583
        %v1670 = vunpack.c.l.b16 %v1584
        %v1671 = vunpack.c.l.b16 %v1585
        %v1672 = vunpack.c.h.b16 %v1585
        %v1673 = vunpack.c.l.b16 %v1586
        %v1674 = vunpack.c.l.b16 %v1587
        %v1675 = vunpack.c.h.b16 %v1587
        %v1676 = vunpack.c.l.b16 %v1588
        %v1677 = vunpack.c.l.b16 %v1589
        %v1678 = vunpack.c.h.b16 %v1589
        %v1679 = vunpack.c.l.b16 %v1590
        %v1680 = vunpack.c.l.b16 %v1591
        %v1681 = vunpack.c.h.b16 %v1591
        %v1682 = vunpack.c.l.b16 %v1592
        %v1683 = vunpack.c.l.b16 %v1593
        %v1684 = vunpack.c.h.b16 %v1593
        %v1685 = vunpack.c.l.b16 %v1594
        %v1686 = vunpack.c.l.b16 %v1595
        %v1687 = vunpack.c.h.b16 %v1595
        %v1688 = vunpack.c.l.b16 %v1596
        %v1689 = vunpack.c.l.b16 %v1597
        %v1690 = vunpack.c.h.b16 %v1597
        %v1691 = vunpack.c.l.b16 %v1598
        %v1692 = vunpack.c.l.b16 %v1599
        %v1693 = vunpack.c.h.b16 %v1599
        %v1694 = vunpack.c.l.b16 %v1600
        %v1695 = vunpack.c.l.b16 %v1601
        %v1696 = vunpack.c.h.b16 %v1601
        %v1697 = vunpack.c.l.b16 %v1602
        %v1698 = vunpack.c.l.b16 %v1603
        %v1699 = vunpack.c.h.b16 %v1603
        %v1700 = vunpack.c.l.b16 %v1604
        %v1701 = vunpack.c.l.b16 %v1605
        %v1702 = vunpack.c.h.b16 %v1605
        %v1703 = vunpack.c.l.b16 %v1606
        %v1704 = vpack.c.b16 %v1659, %v1656
        %v1705 = vpack.c.b16 %v1660, %v1657
        %v1706 = vpack.c.b16 %v1661, %v1658
        %v1707 = vpack.c.b16 %v1665, %v1662
        %v1708 = vpack.c.b16 %v1666, %v1663
        %v1709 = vpack.c.b16 %v1667, %v1664
        %v1710 = vpack.c.b16 %v1671, %v1668
        %v1711 = vpack.c.b16 %v1672, %v1669
        %v1712 = vpack.c.b16 %v1673, %v1670
        %v1713 = vpack.c.b16 %v1677, %v1674
        %v1714 = vpack.c.b16 %v1678, %v1675
        %v1715 = vpack.c.b16 %v1679, %v1676
        %v1716 = vpack.c.b16 %v1683, %v1680
        %v1717 = vpack.c.b16 %v1684, %v1681
        %v1718 = vpack.c.b16 %v1685, %v1682
        %v1719 = vpack.c.b16 %v1689, %v1686
        %v1720 = vpack.c.b16 %v1690, %v1687
        %v1721 = vpack.c.b16 %v1691, %v1688
        %v1722 = vpack.c.b16 %v1695, %v1692
        %v1723 = vpack.c.b16 %v1696, %v1693
        %v1724 = vpack.c.b16 %v1697, %v1694
        %v1725 = vpack.c.b16 %v1701, %v1698
        %v1726 = vpack.c.b16 %v1702, %v1699
        %v1727 = vpack.c.b16 %v1703, %v1700
        %1752 = vmatprep.subr.bf16.mxu0 %v1705
        %1753 = vmatpush1.bf16.msra.mxu0 %v1704
        %1754 = vmatprep.subr.bf16.mxu0 %v1708
        %1755 = vmatpush1.bf16.msra.mxu0 %v1707
        %1756 = vmatprep.subr.bf16.mxu0 %v1711
        %1757 = vmatpush1.bf16.msra.mxu0 %v1710
        %1758 = vmatprep.subr.bf16.mxu0 %v1714
        %1759 = vmatpush1.bf16.msra.mxu0 %v1713
        %1760 = vmatprep.subr.bf16.mxu0 %v1717
        %1761 = vmatpush1.bf16.msra.mxu0 %v1716
        %1762 = vmatprep.subr.bf16.mxu0 %v1720
        %1763 = vmatpush1.bf16.msra.mxu0 %v1719
        %1764 = vmatprep.subr.bf16.mxu0 %v1723
        %1765 = vmatpush1.bf16.msra.mxu0 %v1722
        %1766 = vmatprep.subr.bf16.mxu0 %v1726
        %1767 = vmatpush1.bf16.msra.mxu0 %v1725
        %1768 = vmatprep.subr.bf16.mxu0 0
        %1769 = vmatpush1.bf16.msra.mxu0 0
        %1770 = vmatprep.subr.bf16.mxu0 0
        %1771 = vmatpush1.bf16.msra.mxu0 0
        %1772 = vmatprep.subr.bf16.mxu0 0
        %1773 = vmatpush1.bf16.msra.mxu0 0
        %1774 = vmatprep.subr.bf16.mxu0 0
        %1775 = vmatpush1.bf16.msra.mxu0 0
        %1776 = vmatprep.subr.bf16.mxu0 0
        %1777 = vmatpush1.bf16.msra.mxu0 0
        %1778 = vmatprep.subr.bf16.mxu0 0
        %1779 = vmatpush1.bf16.msra.mxu0 0
        %1780 = vmatprep.subr.bf16.mxu0 0
        %1781 = vmatpush1.bf16.msra.mxu0 0
        %1782 = vmatprep.subr.bf16.mxu0 0
        %1783 = vmatpush1.bf16.msra.mxu0 0
        %1784 = vmatprep.mubr.bf16.mxu0 0
        %1785 = vmatmul.mubr.bf16.gmra.mrb[0].mxu0 %v1574
        %v1786 = vpop.f32.mrb[0].mxu0
        %v1787 = vadd.f32 %v1612, %v1786
        %v1788 = vpop.f32.mrb[0].mxu0
        %v1789 = vadd.f32 %v1616, %v1788
        %v1790 = vpop.f32.mrb[0].mxu0
        %v1791 = vadd.f32 %v1612, %v1790
        %v1792 = vpop.f32.mrb[0].mxu0
        %v1793 = vadd.f32 %v1616, %v1792
        %1794 = vdwg.mxu0
        %1795 = vmatprep.subr.bf16.mxu0 0
        %1796 = vmatpush1.bf16.msra.mxu0 %v1706
        %1797 = vmatprep.subr.bf16.mxu0 0
        %1798 = vmatpush1.bf16.msra.mxu0 %v1709
        %1799 = vmatprep.subr.bf16.mxu0 0
        %1800 = vmatpush1.bf16.msra.mxu0 %v1712
        %1801 = vmatprep.subr.bf16.mxu0 0
        %1802 = vmatpush1.bf16.msra.mxu0 %v1715
        %1803 = vmatprep.subr.bf16.mxu0 0
        %1804 = vmatpush1.bf16.msra.mxu0 %v1718
        %1805 = vmatprep.subr.bf16.mxu0 0
        %1806 = vmatpush1.bf16.msra.mxu0 %v1721
        %1807 = vmatprep.subr.bf16.mxu0 0
        %1808 = vmatpush1.bf16.msra.mxu0 %v1724
        %1809 = vmatprep.subr.bf16.mxu0 0
        %1810 = vmatpush1.bf16.msra.mxu0 %v1727
        %1811 = vmatprep.subr.bf16.mxu0 0
        %1812 = vmatpush1.bf16.msra.mxu0 0
        %1813 = vmatprep.subr.bf16.mxu0 0
        %1814 = vmatpush1.bf16.msra.mxu0 0
        %1815 = vmatprep.subr.bf16.mxu0 0
        %1816 = vmatpush1.bf16.msra.mxu0 0
        %1817 = vmatprep.subr.bf16.mxu0 0
        %1818 = vmatpush1.bf16.msra.mxu0 0
        %1819 = vmatprep.subr.bf16.mxu0 0
        %1820 = vmatpush1.bf16.msra.mxu0 0
        %1821 = vmatprep.subr.bf16.mxu0 0
        %1822 = vmatpush1.bf16.msra.mxu0 0
        %1823 = vmatprep.subr.bf16.mxu0 0
        %1824 = vmatpush1.bf16.msra.mxu0 0
        %1825 = vmatprep.subr.bf16.mxu0 0
        %1826 = vmatpush1.bf16.msra.mxu0 0
        %1827 = vmatprep.mubr.bf16.mxu0 0
        %1828 = vmatmul.mubr.bf16.gmra.mrb[0].mxu0 %v1574
        %v1829 = vpop.f32.mrb[0].mxu0
        %v1830 = vadd.f32 %v1620, %v1829
        %v1831 = vpop.f32.mrb[0].mxu0
        %v1832 = vpop.f32.mrb[0].mxu0
        %v1833 = vadd.f32 %v1620, %v1832
        %v1834 = vpop.f32.mrb[0].mxu0
        %1835 = vdwg.mxu0
        %v1836 = vpack.c.bf16 %v1791, %v1787
        %v1837 = vpack.c.bf16 %v1793, %v1789
        %v1838 = vpack.c.bf16 %v1833, %v1830
        %1840 = vrot.lane.b32.xlu0 %v1836, 96
        %v1841 = vpop.permute.xlu0 %1840
        %1842 = vrot.lane.b32.xlu0 %v1836, 64
        %v1843 = vpop.permute.xlu0 %1842
        %1844 = vrot.lane.b32.xlu0 %v1836, 32
        %v1845 = vpop.permute.xlu0 %1844
        %1847 = vrot.lane.b32.xlu0 %v1837, 96
        %v1848 = vpop.permute.xlu0 %1847
        %1849 = vrot.lane.b32.xlu0 %v1837, 64
        %v1850 = vpop.permute.xlu0 %1849
        %1851 = vrot.lane.b32.xlu0 %v1837, 32
        %v1852 = vpop.permute.xlu0 %1851
        %1854 = vrot.lane.b32.xlu0 %v1838, 96
        %v1855 = vpop.permute.xlu0 %1854
        %1857 = vrot.lane.b32.xlu0 %v1838, 64
        %v1858 = vpop.permute.xlu0 %1857
        %1860 = vrot.lane.b32.xlu0 %v1838, 32
        %v1861 = vpop.permute.xlu0 %1860
        %v1865 = vpack.i.b16 %v1841, %v1836
        %v1867 = vshrl.u32 %v1836, 16
        %v1868 = vshrl.u32 %v1841, 16
        %v1869 = vpack.i.b16 %v1868, %v1867
        %v1873 = vpack.i.b16 %v1845, %v1843
        %v1875 = vshrl.u32 %v1843, 16
        %v1876 = vshrl.u32 %v1845, 16
        %v1877 = vpack.i.b16 %v1876, %v1875
        %v1880 = vpack.i.b16 0, 0
        %v1882 = vshrl.u32 0, 16
        %v1883 = vpack.i.b16 %v1882, %v1882
        %v1885 = vcombine.high %v1865, %v1880
        %v1887 = vunpack.c.l.s4 1983009808
        %v1888 = vunpack.c.0.s8 %v1887
        %v1889 = vlaneseq
        %v1890 = vshrl.u32 %v1889, 7
        %v1891 = vsub.s32 %v1888, %v1890
        %v1892 = vrot.slane %v1865, %v1891
        %v1894 = vunpack.c.l.s4 1983009808
        %v1895 = vunpack.c.0.s8 %v1894
        %v1896 = vlaneseq
        %v1897 = vshrl.u32 %v1896, 7
        %v1898 = vsub.s32 %v1895, %v1897
        %v1899 = vrot.slane %v1885, %v1898
        %v1900 = vcombine.high %v1873, %v1880
        %v1902 = vunpack.c.l.s4 1983009808
        %v1903 = vunpack.c.0.s8 %v1902
        %v1904 = vlaneseq
        %v1905 = vshrl.u32 %v1904, 7
        %v1906 = vsub.s32 %v1903, %v1905
        %v1907 = vrot.slane %v1873, %v1906
        %v1909 = vunpack.c.l.s4 1983009808
        %v1910 = vunpack.c.0.s8 %v1909
        %v1911 = vlaneseq
        %v1912 = vshrl.u32 %v1911, 7
        %v1913 = vsub.s32 %v1910, %v1912
        %v1914 = vrot.slane %v1900, %v1913
        %v1915 = vcombine.low %v1892, %v1907
        %v1916 = vcombine.high %v1892, %v1907
        %v1918 = vunpack.c.l.s4 1934713408
        %v1919 = vunpack.c.0.s8 %v1918
        %v1920 = vlaneseq
        %v1921 = vshrl.u32 %v1920, 7
        %v1922 = vsub.s32 %v1919, %v1921
        %v1923 = vrot.slane %v1915, %v1922
        %v1925 = vunpack.c.l.s4 1934713408
        %v1926 = vunpack.c.0.s8 %v1925
        %v1927 = vlaneseq
        %v1928 = vshrl.u32 %v1927, 7
        %v1929 = vsub.s32 %v1926, %v1928
        %v1930 = vrot.slane %v1916, %v1929
        %v1931 = vcombine.low %v1899, %v1914
        %v1932 = vcombine.high %v1899, %v1914
        %v1934 = vunpack.c.l.s4 1934713408
        %v1935 = vunpack.c.0.s8 %v1934
        %v1936 = vlaneseq
        %v1937 = vshrl.u32 %v1936, 7
        %v1938 = vsub.s32 %v1935, %v1937
        %v1939 = vrot.slane %v1931, %v1938
        %v1941 = vunpack.c.l.s4 1934713408
        %v1942 = vunpack.c.0.s8 %v1941
        %v1943 = vlaneseq
        %v1944 = vshrl.u32 %v1943, 7
        %v1945 = vsub.s32 %v1942, %v1944
        %v1946 = vrot.slane %v1932, %v1945
        %v1947 = vcombine.high %v1923, 0
        %v1948 = vcombine.high %v1930, 0
        %v1949 = vcombine.high %v1939, 0
        %v1950 = vcombine.high %v1946, 0
        %v1951 = vcombine.high %v1869, %v1883
        %v1953 = vunpack.c.l.s4 1983009808
        %v1954 = vunpack.c.0.s8 %v1953
        %v1955 = vlaneseq
        %v1956 = vshrl.u32 %v1955, 7
        %v1957 = vsub.s32 %v1954, %v1956
        %v1958 = vrot.slane %v1869, %v1957
        %v1960 = vunpack.c.l.s4 1983009808
        %v1961 = vunpack.c.0.s8 %v1960
        %v1962 = vlaneseq
        %v1963 = vshrl.u32 %v1962, 7
        %v1964 = vsub.s32 %v1961, %v1963
        %v1965 = vrot.slane %v1951, %v1964
        %v1966 = vcombine.high %v1877, %v1883
        %v1968 = vunpack.c.l.s4 1983009808
        %v1969 = vunpack.c.0.s8 %v1968
        %v1970 = vlaneseq
        %v1971 = vshrl.u32 %v1970, 7
        %v1972 = vsub.s32 %v1969, %v1971
        %v1973 = vrot.slane %v1877, %v1972
        %v1975 = vunpack.c.l.s4 1983009808
        %v1976 = vunpack.c.0.s8 %v1975
        %v1977 = vlaneseq
        %v1978 = vshrl.u32 %v1977, 7
        %v1979 = vsub.s32 %v1976, %v1978
        %v1980 = vrot.slane %v1966, %v1979
        %v1981 = vcombine.low %v1958, %v1973
        %v1982 = vcombine.high %v1958, %v1973
        %v1984 = vunpack.c.l.s4 1934713408
        %v1985 = vunpack.c.0.s8 %v1984
        %v1986 = vlaneseq
        %v1987 = vshrl.u32 %v1986, 7
        %v1988 = vsub.s32 %v1985, %v1987
        %v1989 = vrot.slane %v1981, %v1988
        %v1991 = vunpack.c.l.s4 1934713408
        %v1992 = vunpack.c.0.s8 %v1991
        %v1993 = vlaneseq
        %v1994 = vshrl.u32 %v1993, 7
        %v1995 = vsub.s32 %v1992, %v1994
        %v1996 = vrot.slane %v1982, %v1995
        %v1997 = vcombine.low %v1965, %v1980
        %v1998 = vcombine.high %v1965, %v1980
        %v2000 = vunpack.c.l.s4 1934713408
        %v2001 = vunpack.c.0.s8 %v2000
        %v2002 = vlaneseq
        %v2003 = vshrl.u32 %v2002, 7
        %v2004 = vsub.s32 %v2001, %v2003
        %v2005 = vrot.slane %v1997, %v2004
        %v2007 = vunpack.c.l.s4 1934713408
        %v2008 = vunpack.c.0.s8 %v2007
        %v2009 = vlaneseq
        %v2010 = vshrl.u32 %v2009, 7
        %v2011 = vsub.s32 %v2008, %v2010
        %v2012 = vrot.slane %v1998, %v2011
        %v2013 = vcombine.high %v1989, 0
        %v2014 = vcombine.high %v1996, 0
        %v2015 = vcombine.high %v2005, 0
        %v2016 = vcombine.high %v2012, 0
        %v2017 = vld [vmem:[%s5] sm:$0xf]
        %v2018 = vld [vmem:[%s5 + $0x4] sm:$0xf]
        %v2019 = vld [vmem:[%s5 + $0x8] sm:$0xf]
        %v2020 = vld [vmem:[%s5 + $0xc] sm:$0xf]
        %v2021 = vld [vmem:[%s5 + $0x10] sm:$0xf]
        %v2022 = vld [vmem:[%s5 + $0x14] sm:$0xf]
        %v2023 = vld [vmem:[%s5 + $0x18] sm:$0xf]
        %v2024 = vld [vmem:[%s5 + $0x1c] sm:$0xf]
        %v2025 = vld [vmem:[%s5 + $0x20] sm:$0xf]
        %v2026 = vld [vmem:[%s5 + $0x24] sm:$0xf]
        %v2027 = vld [vmem:[%s5 + $0x28] sm:$0xf]
        %v2028 = vld [vmem:[%s5 + $0x2c] sm:$0xf]
        %v2029 = vld [vmem:[%s5 + $0x30] sm:$0xf]
        %v2030 = vld [vmem:[%s5 + $0x34] sm:$0xf]
        %v2031 = vld [vmem:[%s5 + $0x38] sm:$0xf]
        %v2032 = vld [vmem:[%s5 + $0x3c] sm:$0xf]
        %v2033 = vld [vmem:[%s5 + $0x40] sm:$0xf]
        %v2034 = vld [vmem:[%s5 + $0x44] sm:$0xf]
        %v2035 = vld [vmem:[%s5 + $0x48] sm:$0xf]
        %v2036 = vld [vmem:[%s5 + $0x4c] sm:$0xf]
        %v2037 = vld [vmem:[%s5 + $0x50] sm:$0xf]
        %v2038 = vld [vmem:[%s5 + $0x54] sm:$0xf]
        %v2039 = vld [vmem:[%s5 + $0x58] sm:$0xf]
        %v2040 = vld [vmem:[%s5 + $0x5c] sm:$0xf]
        %v2041 = vld [vmem:[%s5 + $0x60] sm:$0xf]
        %v2042 = vld [vmem:[%s5 + $0x64] sm:$0xf]
        %v2043 = vld [vmem:[%s5 + $0x68] sm:$0xf]
        %v2044 = vld [vmem:[%s5 + $0x6c] sm:$0xf]
        %v2045 = vld [vmem:[%s5 + $0x70] sm:$0xf]
        %v2046 = vld [vmem:[%s5 + $0x74] sm:$0xf]
        %v2047 = vld [vmem:[%s5 + $0x78] sm:$0xf]
        %v2048 = vld [vmem:[%s5 + $0x7c] sm:$0xf]
        %v2049 = vld [vmem:[%s5 + $0x80] sm:$0xf]
        %v2050 = vld [vmem:[%s5 + $0x84] sm:$0xf]
        %v2051 = vld [vmem:[%s5 + $0x88] sm:$0xf]
        %v2052 = vld [vmem:[%s5 + $0x8c] sm:$0xf]
        %v2053 = vld [vmem:[%s5 + $0x90] sm:$0xf]
        %v2054 = vld [vmem:[%s5 + $0x94] sm:$0xf]
        %v2055 = vld [vmem:[%s5 + $0x98] sm:$0xf]
        %v2056 = vld [vmem:[%s5 + $0x9c] sm:$0xf]
        %v2057 = vld [vmem:[%s5 + $0xa0] sm:$0xf]
        %v2058 = vld [vmem:[%s5 + $0xa4] sm:$0xf]
        %v2059 = vld [vmem:[%s5 + $0xa8] sm:$0xf]
        %v2060 = vld [vmem:[%s5 + $0xac] sm:$0xf]
        %v2061 = vld [vmem:[%s5 + $0xb0] sm:$0xf]
        %v2062 = vld [vmem:[%s5 + $0xb4] sm:$0xf]
        %v2063 = vld [vmem:[%s5 + $0xb8] sm:$0xf]
        %v2064 = vld [vmem:[%s5 + $0xbc] sm:$0xf]
        %v2065 = vld [vmem:[%s5 + $0xc0] sm:$0xf]
        %v2066 = vld [vmem:[%s5 + $0xc4] sm:$0xf]
        %v2067 = vld [vmem:[%s5 + $0xc8] sm:$0xf]
        %v2068 = vld [vmem:[%s5 + $0xcc] sm:$0xf]
        %v2069 = vld [vmem:[%s5 + $0xd0] sm:$0xf]
        %v2070 = vld [vmem:[%s5 + $0xd4] sm:$0xf]
        %v2071 = vld [vmem:[%s5 + $0xd8] sm:$0xf]
        %v2072 = vld [vmem:[%s5 + $0xdc] sm:$0xf]
        %v2073 = vld [vmem:[%s5 + $0xe0] sm:$0xf]
        %v2074 = vld [vmem:[%s5 + $0xe4] sm:$0xf]
        %v2075 = vld [vmem:[%s5 + $0xe8] sm:$0xf]
        %v2076 = vld [vmem:[%s5 + $0xec] sm:$0xf]
        %v2077 = vld [vmem:[%s5 + $0xf0] sm:$0xf]
        %v2078 = vld [vmem:[%s5 + $0xf4] sm:$0xf]
        %v2079 = vld [vmem:[%s5 + $0xf8] sm:$0xf]
        %v2080 = vld [vmem:[%s5 + $0xfc] sm:$0xf]
        %v2085 = vunpack.c.l.b16 %v2017
        %v2086 = vunpack.c.l.b16 %v2018
        %v2087 = vunpack.c.l.b16 %v2019
        %v2088 = vunpack.c.l.b16 %v2020
        %v2089 = vpack.c.b16 %v2086, %v2085
        %v2090 = vpack.c.b16 %v2088, %v2087
        %vm2093 = vcmask 261120
        %v2095 = vsel %vm2093, %v1923, 0
        %2097 = vmatprep.subr.bf16.mxu0 0
        %2098 = vmatpush1.bf16.msra.mxu0 %v2089
        %2099 = vmatprep.subr.bf16.mxu0 0
        %2100 = vmatpush1.bf16.msra.mxu0 %v2090
        %2101 = vmatprep.subr.bf16.mxu0 0
        %2102 = vmatpush1.bf16.msra.mxu0 0
        %2103 = vmatprep.subr.bf16.mxu0 0
        %2104 = vmatpush1.bf16.msra.mxu0 0
        %2105 = vmatprep.subr.bf16.mxu0 0
        %2106 = vmatpush1.bf16.msra.mxu0 0
        %2107 = vmatprep.subr.bf16.mxu0 0
        %2108 = vmatpush1.bf16.msra.mxu0 0
        %2109 = vmatprep.subr.bf16.mxu0 0
        %2110 = vmatpush1.bf16.msra.mxu0 0
        %2111 = vmatprep.subr.bf16.mxu0 0
        %2112 = vmatpush1.bf16.msra.mxu0 0
        %2113 = vmatprep.subr.bf16.mxu0 0
        %2114 = vmatpush1.bf16.msra.mxu0 0
        %2115 = vmatprep.subr.bf16.mxu0 0
        %2116 = vmatpush1.bf16.msra.mxu0 0
        %2117 = vmatprep.subr.bf16.mxu0 0
        %2118 = vmatpush1.bf16.msra.mxu0 0
        %2119 = vmatprep.subr.bf16.mxu0 0
        %2120 = vmatpush1.bf16.msra.mxu0 0
        %2121 = vmatprep.subr.bf16.mxu0 0
        %2122 = vmatpush1.bf16.msra.mxu0 0
        %2123 = vmatprep.subr.bf16.mxu0 0
        %2124 = vmatpush1.bf16.msra.mxu0 0
        %2125 = vmatprep.subr.bf16.mxu0 0
        %2126 = vmatpush1.bf16.msra.mxu0 0
        %2127 = vmatprep.subr.bf16.mxu0 0
        %2128 = vmatpush1.bf16.msra.mxu0 0
        %2129 = vmatprep.mubr.bf16.mxu0 0
        %2130 = vmatmul.mubr.bf16.gmra.mrb[0].mxu0 %v2095
        %v2131 = vpop.f32.mrb[0].mxu0
        %v2132 = vadd.f32 0.0, %v2131
        %v2133 = vpop.f32.mrb[0].mxu0
        %v2134 = vpop.f32.mrb[0].mxu0
        %v2135 = vpop.f32.mrb[0].mxu0
        %2136 = vdwg.mxu0
        %v2141 = vunpack.c.l.b16 %v2021
        %v2142 = vunpack.c.l.b16 %v2022
        %v2143 = vunpack.c.l.b16 %v2023
        %v2144 = vunpack.c.l.b16 %v2024
        %v2145 = vpack.c.b16 %v2142, %v2141
        %v2146 = vpack.c.b16 %v2144, %v2143
        %v2150 = vsel %vm2093, %v1989, 0
        %2152 = vmatprep.subr.bf16.mxu0 0
        %2153 = vmatpush1.bf16.msra.mxu0 %v2145
        %2154 = vmatprep.subr.bf16.mxu0 0
        %2155 = vmatpush1.bf16.msra.mxu0 %v2146
        %2156 = vmatprep.subr.bf16.mxu0 0
        %2157 = vmatpush1.bf16.msra.mxu0 0
        %2158 = vmatprep.subr.bf16.mxu0 0
        %2159 = vmatpush1.bf16.msra.mxu0 0
        %2160 = vmatprep.subr.bf16.mxu0 0
        %2161 = vmatpush1.bf16.msra.mxu0 0
        %2162 = vmatprep.subr.bf16.mxu0 0
        %2163 = vmatpush1.bf16.msra.mxu0 0
        %2164 = vmatprep.subr.bf16.mxu0 0
        %2165 = vmatpush1.bf16.msra.mxu0 0
        %2166 = vmatprep.subr.bf16.mxu0 0
        %2167 = vmatpush1.bf16.msra.mxu0 0
        %2168 = vmatprep.subr.bf16.mxu0 0
        %2169 = vmatpush1.bf16.msra.mxu0 0
        %2170 = vmatprep.subr.bf16.mxu0 0
        %2171 = vmatpush1.bf16.msra.mxu0 0
        %2172 = vmatprep.subr.bf16.mxu0 0
        %2173 = vmatpush1.bf16.msra.mxu0 0
        %2174 = vmatprep.subr.bf16.mxu0 0
        %2175 = vmatpush1.bf16.msra.mxu0 0
        %2176 = vmatprep.subr.bf16.mxu0 0
        %2177 = vmatpush1.bf16.msra.mxu0 0
        %2178 = vmatprep.subr.bf16.mxu0 0
        %2179 = vmatpush1.bf16.msra.mxu0 0
        %2180 = vmatprep.subr.bf16.mxu0 0
        %2181 = vmatpush1.bf16.msra.mxu0 0
        %2182 = vmatprep.subr.bf16.mxu0 0
        %2183 = vmatpush1.bf16.msra.mxu0 0
        %2184 = vmatprep.mubr.bf16.mxu0 0
        %2185 = vmatmul.mubr.bf16.gmra.mrb[0].mxu0 %v2150
        %v2186 = vpop.f32.mrb[0].mxu0
        %v2187 = vadd.f32 0.0, %v2186
        %v2188 = vpop.f32.mrb[0].mxu0
        %v2189 = vpop.f32.mrb[0].mxu0
        %v2190 = vpop.f32.mrb[0].mxu0
        %2191 = vdwg.mxu0
        %v2196 = vunpack.c.l.b16 %v2025
        %v2197 = vunpack.c.l.b16 %v2026
        %v2198 = vunpack.c.l.b16 %v2027
        %v2199 = vunpack.c.l.b16 %v2028
        %v2200 = vpack.c.b16 %v2197, %v2196
        %v2201 = vpack.c.b16 %v2199, %v2198
        %v2205 = vsel %vm2093, %v1947, 0
        %2207 = vmatprep.subr.bf16.mxu0 0
        %2208 = vmatpush1.bf16.msra.mxu0 %v2200
        %2209 = vmatprep.subr.bf16.mxu0 0
        %2210 = vmatpush1.bf16.msra.mxu0 %v2201
        %2211 = vmatprep.subr.bf16.mxu0 0
        %2212 = vmatpush1.bf16.msra.mxu0 0
        %2213 = vmatprep.subr.bf16.mxu0 0
        %2214 = vmatpush1.bf16.msra.mxu0 0
        %2215 = vmatprep.subr.bf16.mxu0 0
        %2216 = vmatpush1.bf16.msra.mxu0 0
        %2217 = vmatprep.subr.bf16.mxu0 0
        %2218 = vmatpush1.bf16.msra.mxu0 0
        %2219 = vmatprep.subr.bf16.mxu0 0
        %2220 = vmatpush1.bf16.msra.mxu0 0
        %2221 = vmatprep.subr.bf16.mxu0 0
        %2222 = vmatpush1.bf16.msra.mxu0 0
        %2223 = vmatprep.subr.bf16.mxu0 0
        %2224 = vmatpush1.bf16.msra.mxu0 0
        %2225 = vmatprep.subr.bf16.mxu0 0
        %2226 = vmatpush1.bf16.msra.mxu0 0
        %2227 = vmatprep.subr.bf16.mxu0 0
        %2228 = vmatpush1.bf16.msra.mxu0 0
        %2229 = vmatprep.subr.bf16.mxu0 0
        %2230 = vmatpush1.bf16.msra.mxu0 0
        %2231 = vmatprep.subr.bf16.mxu0 0
        %2232 = vmatpush1.bf16.msra.mxu0 0
        %2233 = vmatprep.subr.bf16.mxu0 0
        %2234 = vmatpush1.bf16.msra.mxu0 0
        %2235 = vmatprep.subr.bf16.mxu0 0
        %2236 = vmatpush1.bf16.msra.mxu0 0
        %2237 = vmatprep.subr.bf16.mxu0 0
        %2238 = vmatpush1.bf16.msra.mxu0 0
        %2239 = vmatprep.mubr.bf16.mxu0 0
        %2240 = vmatmul.mubr.bf16.gmra.mrb[0].mxu0 %v2205
        %v2241 = vpop.f32.mrb[0].mxu0
        %v2242 = vadd.f32 0.0, %v2241
        %v2243 = vpop.f32.mrb[0].mxu0
        %v2244 = vpop.f32.mrb[0].mxu0
        %v2245 = vpop.f32.mrb[0].mxu0
        %2246 = vdwg.mxu0
        %v2251 = vunpack.c.l.b16 %v2029
        %v2252 = vunpack.c.l.b16 %v2030
        %v2253 = vunpack.c.l.b16 %v2031
        %v2254 = vunpack.c.l.b16 %v2032
        %v2255 = vpack.c.b16 %v2252, %v2251
        %v2256 = vpack.c.b16 %v2254, %v2253
        %v2260 = vsel %vm2093, %v2013, 0
        %2262 = vmatprep.subr.bf16.mxu0 0
        %2263 = vmatpush1.bf16.msra.mxu0 %v2255
        %2264 = vmatprep.subr.bf16.mxu0 0
        %2265 = vmatpush1.bf16.msra.mxu0 %v2256
        %2266 = vmatprep.subr.bf16.mxu0 0
        %2267 = vmatpush1.bf16.msra.mxu0 0
        %2268 = vmatprep.subr.bf16.mxu0 0
        %2269 = vmatpush1.bf16.msra.mxu0 0
        %2270 = vmatprep.subr.bf16.mxu0 0
        %2271 = vmatpush1.bf16.msra.mxu0 0
        %2272 = vmatprep.subr.bf16.mxu0 0
        %2273 = vmatpush1.bf16.msra.mxu0 0
        %2274 = vmatprep.subr.bf16.mxu0 0
        %2275 = vmatpush1.bf16.msra.mxu0 0
        %2276 = vmatprep.subr.bf16.mxu0 0
        %2277 = vmatpush1.bf16.msra.mxu0 0
        %2278 = vmatprep.subr.bf16.mxu0 0
        %2279 = vmatpush1.bf16.msra.mxu0 0
        %2280 = vmatprep.subr.bf16.mxu0 0
        %2281 = vmatpush1.bf16.msra.mxu0 0
        %2282 = vmatprep.subr.bf16.mxu0 0
        %2283 = vmatpush1.bf16.msra.mxu0 0
        %2284 = vmatprep.subr.bf16.mxu0 0
        %2285 = vmatpush1.bf16.msra.mxu0 0
        %2286 = vmatprep.subr.bf16.mxu0 0
        %2287 = vmatpush1.bf16.msra.mxu0 0
        %2288 = vmatprep.subr.bf16.mxu0 0
        %2289 = vmatpush1.bf16.msra.mxu0 0
        %2290 = vmatprep.subr.bf16.mxu0 0
        %2291 = vmatpush1.bf16.msra.mxu0 0
        %2292 = vmatprep.subr.bf16.mxu0 0
        %2293 = vmatpush1.bf16.msra.mxu0 0
        %2294 = vmatprep.mubr.bf16.mxu0 0
        %2295 = vmatmul.mubr.bf16.gmra.mrb[0].mxu0 %v2260
        %v2296 = vpop.f32.mrb[0].mxu0
        %v2297 = vadd.f32 0.0, %v2296
        %v2298 = vpop.f32.mrb[0].mxu0
        %v2299 = vpop.f32.mrb[0].mxu0
        %v2300 = vpop.f32.mrb[0].mxu0
        %2301 = vdwg.mxu0
        %v2306 = vunpack.c.l.b16 %v2033
        %v2307 = vunpack.c.l.b16 %v2034
        %v2308 = vunpack.c.l.b16 %v2035
        %v2309 = vunpack.c.l.b16 %v2036
        %v2310 = vpack.c.b16 %v2307, %v2306
        %v2311 = vpack.c.b16 %v2309, %v2308
        %v2315 = vsel %vm2093, %v1930, 0
        %2317 = vmatprep.subr.bf16.mxu0 0
        %2318 = vmatpush1.bf16.msra.mxu0 %v2310
        %2319 = vmatprep.subr.bf16.mxu0 0
        %2320 = vmatpush1.bf16.msra.mxu0 %v2311
        %2321 = vmatprep.subr.bf16.mxu0 0
        %2322 = vmatpush1.bf16.msra.mxu0 0
        %2323 = vmatprep.subr.bf16.mxu0 0
        %2324 = vmatpush1.bf16.msra.mxu0 0
        %2325 = vmatprep.subr.bf16.mxu0 0
        %2326 = vmatpush1.bf16.msra.mxu0 0
        %2327 = vmatprep.subr.bf16.mxu0 0
        %2328 = vmatpush1.bf16.msra.mxu0 0
        %2329 = vmatprep.subr.bf16.mxu0 0
        %2330 = vmatpush1.bf16.msra.mxu0 0
        %2331 = vmatprep.subr.bf16.mxu0 0
        %2332 = vmatpush1.bf16.msra.mxu0 0
        %2333 = vmatprep.subr.bf16.mxu0 0
        %2334 = vmatpush1.bf16.msra.mxu0 0
        %2335 = vmatprep.subr.bf16.mxu0 0
        %2336 = vmatpush1.bf16.msra.mxu0 0
        %2337 = vmatprep.subr.bf16.mxu0 0
        %2338 = vmatpush1.bf16.msra.mxu0 0
        %2339 = vmatprep.subr.bf16.mxu0 0
        %2340 = vmatpush1.bf16.msra.mxu0 0
        %2341 = vmatprep.subr.bf16.mxu0 0
        %2342 = vmatpush1.bf16.msra.mxu0 0
        %2343 = vmatprep.subr.bf16.mxu0 0
        %2344 = vmatpush1.bf16.msra.mxu0 0
        %2345 = vmatprep.subr.bf16.mxu0 0
        %2346 = vmatpush1.bf16.msra.mxu0 0
        %2347 = vmatprep.subr.bf16.mxu0 0
        %2348 = vmatpush1.bf16.msra.mxu0 0
        %2349 = vmatprep.mubr.bf16.mxu0 0
        %2350 = vmatmul.mubr.bf16.gmra.mrb[0].mxu0 %v2315
        %v2351 = vpop.f32.mrb[0].mxu0
        %v2352 = vadd.f32 0.0, %v2351
        %v2353 = vpop.f32.mrb[0].mxu0
        %v2354 = vpop.f32.mrb[0].mxu0
        %v2355 = vpop.f32.mrb[0].mxu0
        %2356 = vdwg.mxu0
        %v2361 = vunpack.c.l.b16 %v2037
        %v2362 = vunpack.c.l.b16 %v2038
        %v2363 = vunpack.c.l.b16 %v2039
        %v2364 = vunpack.c.l.b16 %v2040
        %v2365 = vpack.c.b16 %v2362, %v2361
        %v2366 = vpack.c.b16 %v2364, %v2363
        %v2370 = vsel %vm2093, %v1996, 0
        %2372 = vmatprep.subr.bf16.mxu0 0
        %2373 = vmatpush1.bf16.msra.mxu0 %v2365
        %2374 = vmatprep.subr.bf16.mxu0 0
        %2375 = vmatpush1.bf16.msra.mxu0 %v2366
        %2376 = vmatprep.subr.bf16.mxu0 0
        %2377 = vmatpush1.bf16.msra.mxu0 0
        %2378 = vmatprep.subr.bf16.mxu0 0
        %2379 = vmatpush1.bf16.msra.mxu0 0
        %2380 = vmatprep.subr.bf16.mxu0 0
        %2381 = vmatpush1.bf16.msra.mxu0 0
        %2382 = vmatprep.subr.bf16.mxu0 0
        %2383 = vmatpush1.bf16.msra.mxu0 0
        %2384 = vmatprep.subr.bf16.mxu0 0
        %2385 = vmatpush1.bf16.msra.mxu0 0
        %2386 = vmatprep.subr.bf16.mxu0 0
        %2387 = vmatpush1.bf16.msra.mxu0 0
        %2388 = vmatprep.subr.bf16.mxu0 0
        %2389 = vmatpush1.bf16.msra.mxu0 0
        %2390 = vmatprep.subr.bf16.mxu0 0
        %2391 = vmatpush1.bf16.msra.mxu0 0
        %2392 = vmatprep.subr.bf16.mxu0 0
        %2393 = vmatpush1.bf16.msra.mxu0 0
        %2394 = vmatprep.subr.bf16.mxu0 0
        %2395 = vmatpush1.bf16.msra.mxu0 0
        %2396 = vmatprep.subr.bf16.mxu0 0
        %2397 = vmatpush1.bf16.msra.mxu0 0
        %2398 = vmatprep.subr.bf16.mxu0 0
        %2399 = vmatpush1.bf16.msra.mxu0 0
        %2400 = vmatprep.subr.bf16.mxu0 0
        %2401 = vmatpush1.bf16.msra.mxu0 0
        %2402 = vmatprep.subr.bf16.mxu0 0
        %2403 = vmatpush1.bf16.msra.mxu0 0
        %2404 = vmatprep.mubr.bf16.mxu0 0
        %2405 = vmatmul.mubr.bf16.gmra.mrb[0].mxu0 %v2370
        %v2406 = vpop.f32.mrb[0].mxu0
        %v2407 = vadd.f32 0.0, %v2406
        %v2408 = vpop.f32.mrb[0].mxu0
        %v2409 = vpop.f32.mrb[0].mxu0
        %v2410 = vpop.f32.mrb[0].mxu0
        %2411 = vdwg.mxu0
        %v2416 = vunpack.c.l.b16 %v2041
        %v2417 = vunpack.c.l.b16 %v2042
        %v2418 = vunpack.c.l.b16 %v2043
        %v2419 = vunpack.c.l.b16 %v2044
        %v2420 = vpack.c.b16 %v2417, %v2416
        %v2421 = vpack.c.b16 %v2419, %v2418
        %v2425 = vsel %vm2093, %v1948, 0
        %2427 = vmatprep.subr.bf16.mxu0 0
        %2428 = vmatpush1.bf16.msra.mxu0 %v2420
        %2429 = vmatprep.subr.bf16.mxu0 0
        %2430 = vmatpush1.bf16.msra.mxu0 %v2421
        %2431 = vmatprep.subr.bf16.mxu0 0
        %2432 = vmatpush1.bf16.msra.mxu0 0
        %2433 = vmatprep.subr.bf16.mxu0 0
        %2434 = vmatpush1.bf16.msra.mxu0 0
        %2435 = vmatprep.subr.bf16.mxu0 0
        %2436 = vmatpush1.bf16.msra.mxu0 0
        %2437 = vmatprep.subr.bf16.mxu0 0
        %2438 = vmatpush1.bf16.msra.mxu0 0
        %2439 = vmatprep.subr.bf16.mxu0 0
        %2440 = vmatpush1.bf16.msra.mxu0 0
        %2441 = vmatprep.subr.bf16.mxu0 0
        %2442 = vmatpush1.bf16.msra.mxu0 0
        %2443 = vmatprep.subr.bf16.mxu0 0
        %2444 = vmatpush1.bf16.msra.mxu0 0
        %2445 = vmatprep.subr.bf16.mxu0 0
        %2446 = vmatpush1.bf16.msra.mxu0 0
        %2447 = vmatprep.subr.bf16.mxu0 0
        %2448 = vmatpush1.bf16.msra.mxu0 0
        %2449 = vmatprep.subr.bf16.mxu0 0
        %2450 = vmatpush1.bf16.msra.mxu0 0
        %2451 = vmatprep.subr.bf16.mxu0 0
        %2452 = vmatpush1.bf16.msra.mxu0 0
        %2453 = vmatprep.subr.bf16.mxu0 0
        %2454 = vmatpush1.bf16.msra.mxu0 0
        %2455 = vmatprep.subr.bf16.mxu0 0
        %2456 = vmatpush1.bf16.msra.mxu0 0
        %2457 = vmatprep.subr.bf16.mxu0 0
        %2458 = vmatpush1.bf16.msra.mxu0 0
        %2459 = vmatprep.mubr.bf16.mxu0 0
        %2460 = vmatmul.mubr.bf16.gmra.mrb[0].mxu0 %v2425
        %v2461 = vpop.f32.mrb[0].mxu0
        %v2462 = vadd.f32 0.0, %v2461
        %v2463 = vpop.f32.mrb[0].mxu0
        %v2464 = vpop.f32.mrb[0].mxu0
        %v2465 = vpop.f32.mrb[0].mxu0
        %2466 = vdwg.mxu0
        %v2471 = vunpack.c.l.b16 %v2045
        %v2472 = vunpack.c.l.b16 %v2046
        %v2473 = vunpack.c.l.b16 %v2047
        %v2474 = vunpack.c.l.b16 %v2048
        %v2475 = vpack.c.b16 %v2472, %v2471
        %v2476 = vpack.c.b16 %v2474, %v2473
        %v2480 = vsel %vm2093, %v2014, 0
        %2482 = vmatprep.subr.bf16.mxu0 0
        %2483 = vmatpush1.bf16.msra.mxu0 %v2475
        %2484 = vmatprep.subr.bf16.mxu0 0
        %2485 = vmatpush1.bf16.msra.mxu0 %v2476
        %2486 = vmatprep.subr.bf16.mxu0 0
        %2487 = vmatpush1.bf16.msra.mxu0 0
        %2488 = vmatprep.subr.bf16.mxu0 0
        %2489 = vmatpush1.bf16.msra.mxu0 0
        %2490 = vmatprep.subr.bf16.mxu0 0
        %2491 = vmatpush1.bf16.msra.mxu0 0
        %2492 = vmatprep.subr.bf16.mxu0 0
        %2493 = vmatpush1.bf16.msra.mxu0 0
        %2494 = vmatprep.subr.bf16.mxu0 0
        %2495 = vmatpush1.bf16.msra.mxu0 0
        %2496 = vmatprep.subr.bf16.mxu0 0
        %2497 = vmatpush1.bf16.msra.mxu0 0
        %2498 = vmatprep.subr.bf16.mxu0 0
        %2499 = vmatpush1.bf16.msra.mxu0 0
        %2500 = vmatprep.subr.bf16.mxu0 0
        %2501 = vmatpush1.bf16.msra.mxu0 0
        %2502 = vmatprep.subr.bf16.mxu0 0
        %2503 = vmatpush1.bf16.msra.mxu0 0
        %2504 = vmatprep.subr.bf16.mxu0 0
        %2505 = vmatpush1.bf16.msra.mxu0 0
        %2506 = vmatprep.subr.bf16.mxu0 0
        %2507 = vmatpush1.bf16.msra.mxu0 0
        %2508 = vmatprep.subr.bf16.mxu0 0
        %2509 = vmatpush1.bf16.msra.mxu0 0
        %2510 = vmatprep.subr.bf16.mxu0 0
        %2511 = vmatpush1.bf16.msra.mxu0 0
        %2512 = vmatprep.subr.bf16.mxu0 0
        %2513 = vmatpush1.bf16.msra.mxu0 0
        %2514 = vmatprep.mubr.bf16.mxu0 0
        %2515 = vmatmul.mubr.bf16.gmra.mrb[0].mxu0 %v2480
        %v2516 = vpop.f32.mrb[0].mxu0
        %v2517 = vadd.f32 0.0, %v2516
        %v2518 = vpop.f32.mrb[0].mxu0
        %v2519 = vpop.f32.mrb[0].mxu0
        %v2520 = vpop.f32.mrb[0].mxu0
        %2521 = vdwg.mxu0
        %v2526 = vunpack.c.l.b16 %v2049
        %v2527 = vunpack.c.l.b16 %v2050
        %v2528 = vunpack.c.l.b16 %v2051
        %v2529 = vunpack.c.l.b16 %v2052
        %v2530 = vpack.c.b16 %v2527, %v2526
        %v2531 = vpack.c.b16 %v2529, %v2528
        %v2535 = vsel %vm2093, %v1939, 0
        %2537 = vmatprep.subr.bf16.mxu0 0
        %2538 = vmatpush1.bf16.msra.mxu0 %v2530
        %2539 = vmatprep.subr.bf16.mxu0 0
        %2540 = vmatpush1.bf16.msra.mxu0 %v2531
        %2541 = vmatprep.subr.bf16.mxu0 0
        %2542 = vmatpush1.bf16.msra.mxu0 0
        %2543 = vmatprep.subr.bf16.mxu0 0
        %2544 = vmatpush1.bf16.msra.mxu0 0
        %2545 = vmatprep.subr.bf16.mxu0 0
        %2546 = vmatpush1.bf16.msra.mxu0 0
        %2547 = vmatprep.subr.bf16.mxu0 0
        %2548 = vmatpush1.bf16.msra.mxu0 0
        %2549 = vmatprep.subr.bf16.mxu0 0
        %2550 = vmatpush1.bf16.msra.mxu0 0
        %2551 = vmatprep.subr.bf16.mxu0 0
        %2552 = vmatpush1.bf16.msra.mxu0 0
        %2553 = vmatprep.subr.bf16.mxu0 0
        %2554 = vmatpush1.bf16.msra.mxu0 0
        %2555 = vmatprep.subr.bf16.mxu0 0
        %2556 = vmatpush1.bf16.msra.mxu0 0
        %2557 = vmatprep.subr.bf16.mxu0 0
        %2558 = vmatpush1.bf16.msra.mxu0 0
        %2559 = vmatprep.subr.bf16.mxu0 0
        %2560 = vmatpush1.bf16.msra.mxu0 0
        %2561 = vmatprep.subr.bf16.mxu0 0
        %2562 = vmatpush1.bf16.msra.mxu0 0
        %2563 = vmatprep.subr.bf16.mxu0 0
        %2564 = vmatpush1.bf16.msra.mxu0 0
        %2565 = vmatprep.subr.bf16.mxu0 0
        %2566 = vmatpush1.bf16.msra.mxu0 0
        %2567 = vmatprep.subr.bf16.mxu0 0
        %2568 = vmatpush1.bf16.msra.mxu0 0
        %2569 = vmatprep.mubr.bf16.mxu0 0
        %2570 = vmatmul.mubr.bf16.gmra.mrb[0].mxu0 %v2535
        %v2571 = vpop.f32.mrb[0].mxu0
        %v2572 = vadd.f32 0.0, %v2571
        %v2573 = vpop.f32.mrb[0].mxu0
        %v2574 = vpop.f32.mrb[0].mxu0
        %v2575 = vpop.f32.mrb[0].mxu0
        %2576 = vdwg.mxu0
        %v2581 = vunpack.c.l.b16 %v2053
        %v2582 = vunpack.c.l.b16 %v2054
        %v2583 = vunpack.c.l.b16 %v2055
        %v2584 = vunpack.c.l.b16 %v2056
        %v2585 = vpack.c.b16 %v2582, %v2581
        %v2586 = vpack.c.b16 %v2584, %v2583
        %v2590 = vsel %vm2093, %v2005, 0
        %2592 = vmatprep.subr.bf16.mxu0 0
        %2593 = vmatpush1.bf16.msra.mxu0 %v2585
        %2594 = vmatprep.subr.bf16.mxu0 0
        %2595 = vmatpush1.bf16.msra.mxu0 %v2586
        %2596 = vmatprep.subr.bf16.mxu0 0
        %2597 = vmatpush1.bf16.msra.mxu0 0
        %2598 = vmatprep.subr.bf16.mxu0 0
        %2599 = vmatpush1.bf16.msra.mxu0 0
        %2600 = vmatprep.subr.bf16.mxu0 0
        %2601 = vmatpush1.bf16.msra.mxu0 0
        %2602 = vmatprep.subr.bf16.mxu0 0
        %2603 = vmatpush1.bf16.msra.mxu0 0
        %2604 = vmatprep.subr.bf16.mxu0 0
        %2605 = vmatpush1.bf16.msra.mxu0 0
        %2606 = vmatprep.subr.bf16.mxu0 0
        %2607 = vmatpush1.bf16.msra.mxu0 0
        %2608 = vmatprep.subr.bf16.mxu0 0
        %2609 = vmatpush1.bf16.msra.mxu0 0
        %2610 = vmatprep.subr.bf16.mxu0 0
        %2611 = vmatpush1.bf16.msra.mxu0 0
        %2612 = vmatprep.subr.bf16.mxu0 0
        %2613 = vmatpush1.bf16.msra.mxu0 0
        %2614 = vmatprep.subr.bf16.mxu0 0
        %2615 = vmatpush1.bf16.msra.mxu0 0
        %2616 = vmatprep.subr.bf16.mxu0 0
        %2617 = vmatpush1.bf16.msra.mxu0 0
        %2618 = vmatprep.subr.bf16.mxu0 0
        %2619 = vmatpush1.bf16.msra.mxu0 0
        %2620 = vmatprep.subr.bf16.mxu0 0
        %2621 = vmatpush1.bf16.msra.mxu0 0
        %2622 = vmatprep.subr.bf16.mxu0 0
        %2623 = vmatpush1.bf16.msra.mxu0 0
        %2624 = vmatprep.mubr.bf16.mxu0 0
        %2625 = vmatmul.mubr.bf16.gmra.mrb[0].mxu0 %v2590
        %v2626 = vpop.f32.mrb[0].mxu0
        %v2627 = vadd.f32 0.0, %v2626
        %v2628 = vpop.f32.mrb[0].mxu0
        %v2629 = vpop.f32.mrb[0].mxu0
        %v2630 = vpop.f32.mrb[0].mxu0
        %2631 = vdwg.mxu0
        %v2636 = vunpack.c.l.b16 %v2057
        %v2637 = vunpack.c.l.b16 %v2058
        %v2638 = vunpack.c.l.b16 %v2059
        %v2639 = vunpack.c.l.b16 %v2060
        %v2640 = vpack.c.b16 %v2637, %v2636
        %v2641 = vpack.c.b16 %v2639, %v2638
        %v2645 = vsel %vm2093, %v1949, 0
        %2647 = vmatprep.subr.bf16.mxu0 0
        %2648 = vmatpush1.bf16.msra.mxu0 %v2640
        %2649 = vmatprep.subr.bf16.mxu0 0
        %2650 = vmatpush1.bf16.msra.mxu0 %v2641
        %2651 = vmatprep.subr.bf16.mxu0 0
        %2652 = vmatpush1.bf16.msra.mxu0 0
        %2653 = vmatprep.subr.bf16.mxu0 0
        %2654 = vmatpush1.bf16.msra.mxu0 0
        %2655 = vmatprep.subr.bf16.mxu0 0
        %2656 = vmatpush1.bf16.msra.mxu0 0
        %2657 = vmatprep.subr.bf16.mxu0 0
        %2658 = vmatpush1.bf16.msra.mxu0 0
        %2659 = vmatprep.subr.bf16.mxu0 0
        %2660 = vmatpush1.bf16.msra.mxu0 0
        %2661 = vmatprep.subr.bf16.mxu0 0
        %2662 = vmatpush1.bf16.msra.mxu0 0
        %2663 = vmatprep.subr.bf16.mxu0 0
        %2664 = vmatpush1.bf16.msra.mxu0 0
        %2665 = vmatprep.subr.bf16.mxu0 0
        %2666 = vmatpush1.bf16.msra.mxu0 0
        %2667 = vmatprep.subr.bf16.mxu0 0
        %2668 = vmatpush1.bf16.msra.mxu0 0
        %2669 = vmatprep.subr.bf16.mxu0 0
        %2670 = vmatpush1.bf16.msra.mxu0 0
        %2671 = vmatprep.subr.bf16.mxu0 0
        %2672 = vmatpush1.bf16.msra.mxu0 0
        %2673 = vmatprep.subr.bf16.mxu0 0
        %2674 = vmatpush1.bf16.msra.mxu0 0
        %2675 = vmatprep.subr.bf16.mxu0 0
        %2676 = vmatpush1.bf16.msra.mxu0 0
        %2677 = vmatprep.subr.bf16.mxu0 0
        %2678 = vmatpush1.bf16.msra.mxu0 0
        %2679 = vmatprep.mubr.bf16.mxu0 0
        %2680 = vmatmul.mubr.bf16.gmra.mrb[0].mxu0 %v2645
        %v2681 = vpop.f32.mrb[0].mxu0
        %v2682 = vadd.f32 0.0, %v2681
        %v2683 = vpop.f32.mrb[0].mxu0
        %v2684 = vpop.f32.mrb[0].mxu0
        %v2685 = vpop.f32.mrb[0].mxu0
        %2686 = vdwg.mxu0
        %v2691 = vunpack.c.l.b16 %v2061
        %v2692 = vunpack.c.l.b16 %v2062
        %v2693 = vunpack.c.l.b16 %v2063
        %v2694 = vunpack.c.l.b16 %v2064
        %v2695 = vpack.c.b16 %v2692, %v2691
        %v2696 = vpack.c.b16 %v2694, %v2693
        %v2700 = vsel %vm2093, %v2015, 0
        %2702 = vmatprep.subr.bf16.mxu0 0
        %2703 = vmatpush1.bf16.msra.mxu0 %v2695
        %2704 = vmatprep.subr.bf16.mxu0 0
        %2705 = vmatpush1.bf16.msra.mxu0 %v2696
        %2706 = vmatprep.subr.bf16.mxu0 0
        %2707 = vmatpush1.bf16.msra.mxu0 0
        %2708 = vmatprep.subr.bf16.mxu0 0
        %2709 = vmatpush1.bf16.msra.mxu0 0
        %2710 = vmatprep.subr.bf16.mxu0 0
        %2711 = vmatpush1.bf16.msra.mxu0 0
        %2712 = vmatprep.subr.bf16.mxu0 0
        %2713 = vmatpush1.bf16.msra.mxu0 0
        %2714 = vmatprep.subr.bf16.mxu0 0
        %2715 = vmatpush1.bf16.msra.mxu0 0
        %2716 = vmatprep.subr.bf16.mxu0 0
        %2717 = vmatpush1.bf16.msra.mxu0 0
        %2718 = vmatprep.subr.bf16.mxu0 0
        %2719 = vmatpush1.bf16.msra.mxu0 0
        %2720 = vmatprep.subr.bf16.mxu0 0
        %2721 = vmatpush1.bf16.msra.mxu0 0
        %2722 = vmatprep.subr.bf16.mxu0 0
        %2723 = vmatpush1.bf16.msra.mxu0 0
        %2724 = vmatprep.subr.bf16.mxu0 0
        %2725 = vmatpush1.bf16.msra.mxu0 0
        %2726 = vmatprep.subr.bf16.mxu0 0
        %2727 = vmatpush1.bf16.msra.mxu0 0
        %2728 = vmatprep.subr.bf16.mxu0 0
        %2729 = vmatpush1.bf16.msra.mxu0 0
        %2730 = vmatprep.subr.bf16.mxu0 0
        %2731 = vmatpush1.bf16.msra.mxu0 0
        %2732 = vmatprep.subr.bf16.mxu0 0
        %2733 = vmatpush1.bf16.msra.mxu0 0
        %2734 = vmatprep.mubr.bf16.mxu0 0
        %2735 = vmatmul.mubr.bf16.gmra.mrb[0].mxu0 %v2700
        %v2736 = vpop.f32.mrb[0].mxu0
        %v2737 = vadd.f32 0.0, %v2736
        %v2738 = vpop.f32.mrb[0].mxu0
        %v2739 = vpop.f32.mrb[0].mxu0
        %v2740 = vpop.f32.mrb[0].mxu0
        %2741 = vdwg.mxu0
        %v2746 = vunpack.c.l.b16 %v2065
        %v2747 = vunpack.c.l.b16 %v2066
        %v2748 = vunpack.c.l.b16 %v2067
        %v2749 = vunpack.c.l.b16 %v2068
        %v2750 = vpack.c.b16 %v2747, %v2746
        %v2751 = vpack.c.b16 %v2749, %v2748
        %v2755 = vsel %vm2093, %v1946, 0
        %2757 = vmatprep.subr.bf16.mxu0 0
        %2758 = vmatpush1.bf16.msra.mxu0 %v2750
        %2759 = vmatprep.subr.bf16.mxu0 0
        %2760 = vmatpush1.bf16.msra.mxu0 %v2751
        %2761 = vmatprep.subr.bf16.mxu0 0
        %2762 = vmatpush1.bf16.msra.mxu0 0
        %2763 = vmatprep.subr.bf16.mxu0 0
        %2764 = vmatpush1.bf16.msra.mxu0 0
        %2765 = vmatprep.subr.bf16.mxu0 0
        %2766 = vmatpush1.bf16.msra.mxu0 0
        %2767 = vmatprep.subr.bf16.mxu0 0
        %2768 = vmatpush1.bf16.msra.mxu0 0
        %2769 = vmatprep.subr.bf16.mxu0 0
        %2770 = vmatpush1.bf16.msra.mxu0 0
        %2771 = vmatprep.subr.bf16.mxu0 0
        %2772 = vmatpush1.bf16.msra.mxu0 0
        %2773 = vmatprep.subr.bf16.mxu0 0
        %2774 = vmatpush1.bf16.msra.mxu0 0
        %2775 = vmatprep.subr.bf16.mxu0 0
        %2776 = vmatpush1.bf16.msra.mxu0 0
        %2777 = vmatprep.subr.bf16.mxu0 0
        %2778 = vmatpush1.bf16.msra.mxu0 0
        %2779 = vmatprep.subr.bf16.mxu0 0
        %2780 = vmatpush1.bf16.msra.mxu0 0
        %2781 = vmatprep.subr.bf16.mxu0 0
        %2782 = vmatpush1.bf16.msra.mxu0 0
        %2783 = vmatprep.subr.bf16.mxu0 0
        %2784 = vmatpush1.bf16.msra.mxu0 0
        %2785 = vmatprep.subr.bf16.mxu0 0
        %2786 = vmatpush1.bf16.msra.mxu0 0
        %2787 = vmatprep.subr.bf16.mxu0 0
        %2788 = vmatpush1.bf16.msra.mxu0 0
        %2789 = vmatprep.mubr.bf16.mxu0 0
        %2790 = vmatmul.mubr.bf16.gmra.mrb[0].mxu0 %v2755
        %v2791 = vpop.f32.mrb[0].mxu0
        %v2792 = vadd.f32 0.0, %v2791
        %v2793 = vpop.f32.mrb[0].mxu0
        %v2794 = vpop.f32.mrb[0].mxu0
        %v2795 = vpop.f32.mrb[0].mxu0
        %2796 = vdwg.mxu0
        %v2801 = vunpack.c.l.b16 %v2069
        %v2802 = vunpack.c.l.b16 %v2070
        %v2803 = vunpack.c.l.b16 %v2071
        %v2804 = vunpack.c.l.b16 %v2072
        %v2805 = vpack.c.b16 %v2802, %v2801
        %v2806 = vpack.c.b16 %v2804, %v2803
        %v2810 = vsel %vm2093, %v2012, 0
        %2812 = vmatprep.subr.bf16.mxu0 0
        %2813 = vmatpush1.bf16.msra.mxu0 %v2805
        %2814 = vmatprep.subr.bf16.mxu0 0
        %2815 = vmatpush1.bf16.msra.mxu0 %v2806
        %2816 = vmatprep.subr.bf16.mxu0 0
        %2817 = vmatpush1.bf16.msra.mxu0 0
        %2818 = vmatprep.subr.bf16.mxu0 0
        %2819 = vmatpush1.bf16.msra.mxu0 0
        %2820 = vmatprep.subr.bf16.mxu0 0
        %2821 = vmatpush1.bf16.msra.mxu0 0
        %2822 = vmatprep.subr.bf16.mxu0 0
        %2823 = vmatpush1.bf16.msra.mxu0 0
        %2824 = vmatprep.subr.bf16.mxu0 0
        %2825 = vmatpush1.bf16.msra.mxu0 0
        %2826 = vmatprep.subr.bf16.mxu0 0
        %2827 = vmatpush1.bf16.msra.mxu0 0
        %2828 = vmatprep.subr.bf16.mxu0 0
        %2829 = vmatpush1.bf16.msra.mxu0 0
        %2830 = vmatprep.subr.bf16.mxu0 0
        %2831 = vmatpush1.bf16.msra.mxu0 0
        %2832 = vmatprep.subr.bf16.mxu0 0
        %2833 = vmatpush1.bf16.msra.mxu0 0
        %2834 = vmatprep.subr.bf16.mxu0 0
        %2835 = vmatpush1.bf16.msra.mxu0 0
        %2836 = vmatprep.subr.bf16.mxu0 0
        %2837 = vmatpush1.bf16.msra.mxu0 0
        %2838 = vmatprep.subr.bf16.mxu0 0
        %2839 = vmatpush1.bf16.msra.mxu0 0
        %2840 = vmatprep.subr.bf16.mxu0 0
        %2841 = vmatpush1.bf16.msra.mxu0 0
        %2842 = vmatprep.subr.bf16.mxu0 0
        %2843 = vmatpush1.bf16.msra.mxu0 0
        %2844 = vmatprep.mubr.bf16.mxu0 0
        %2845 = vmatmul.mubr.bf16.gmra.mrb[0].mxu0 %v2810
        %v2846 = vpop.f32.mrb[0].mxu0
        %v2847 = vadd.f32 0.0, %v2846
        %v2848 = vpop.f32.mrb[0].mxu0
        %v2849 = vpop.f32.mrb[0].mxu0
        %v2850 = vpop.f32.mrb[0].mxu0
        %2851 = vdwg.mxu0
        %v2856 = vunpack.c.l.b16 %v2073
        %v2857 = vunpack.c.l.b16 %v2074
        %v2858 = vunpack.c.l.b16 %v2075
        %v2859 = vunpack.c.l.b16 %v2076
        %v2860 = vpack.c.b16 %v2857, %v2856
        %v2861 = vpack.c.b16 %v2859, %v2858
        %v2865 = vsel %vm2093, %v1950, 0
        %2867 = vmatprep.subr.bf16.mxu0 0
        %2868 = vmatpush1.bf16.msra.mxu0 %v2860
        %2869 = vmatprep.subr.bf16.mxu0 0
        %2870 = vmatpush1.bf16.msra.mxu0 %v2861
        %2871 = vmatprep.subr.bf16.mxu0 0
        %2872 = vmatpush1.bf16.msra.mxu0 0
        %2873 = vmatprep.subr.bf16.mxu0 0
        %2874 = vmatpush1.bf16.msra.mxu0 0
        %2875 = vmatprep.subr.bf16.mxu0 0
        %2876 = vmatpush1.bf16.msra.mxu0 0
        %2877 = vmatprep.subr.bf16.mxu0 0
        %2878 = vmatpush1.bf16.msra.mxu0 0
        %2879 = vmatprep.subr.bf16.mxu0 0
        %2880 = vmatpush1.bf16.msra.mxu0 0
        %2881 = vmatprep.subr.bf16.mxu0 0
        %2882 = vmatpush1.bf16.msra.mxu0 0
        %2883 = vmatprep.subr.bf16.mxu0 0
        %2884 = vmatpush1.bf16.msra.mxu0 0
        %2885 = vmatprep.subr.bf16.mxu0 0
        %2886 = vmatpush1.bf16.msra.mxu0 0
        %2887 = vmatprep.subr.bf16.mxu0 0
        %2888 = vmatpush1.bf16.msra.mxu0 0
        %2889 = vmatprep.subr.bf16.mxu0 0
        %2890 = vmatpush1.bf16.msra.mxu0 0
        %2891 = vmatprep.subr.bf16.mxu0 0
        %2892 = vmatpush1.bf16.msra.mxu0 0
        %2893 = vmatprep.subr.bf16.mxu0 0
        %2894 = vmatpush1.bf16.msra.mxu0 0
        %2895 = vmatprep.subr.bf16.mxu0 0
        %2896 = vmatpush1.bf16.msra.mxu0 0
        %2897 = vmatprep.subr.bf16.mxu0 0
        %2898 = vmatpush1.bf16.msra.mxu0 0
        %2899 = vmatprep.mubr.bf16.mxu0 0
        %2900 = vmatmul.mubr.bf16.gmra.mrb[0].mxu0 %v2865
        %v2901 = vpop.f32.mrb[0].mxu0
        %v2902 = vadd.f32 0.0, %v2901
        %v2903 = vpop.f32.mrb[0].mxu0
        %v2904 = vpop.f32.mrb[0].mxu0
        %v2905 = vpop.f32.mrb[0].mxu0
        %2906 = vdwg.mxu0
        %v2911 = vunpack.c.l.b16 %v2077
        %v2912 = vunpack.c.l.b16 %v2078
        %v2913 = vunpack.c.l.b16 %v2079
        %v2914 = vunpack.c.l.b16 %v2080
        %v2915 = vpack.c.b16 %v2912, %v2911
        %v2916 = vpack.c.b16 %v2914, %v2913
        %v2920 = vsel %vm2093, %v2016, 0
        %2922 = vmatprep.subr.bf16.mxu0 0
        %2923 = vmatpush1.bf16.msra.mxu0 %v2915
        %2924 = vmatprep.subr.bf16.mxu0 0
        %2925 = vmatpush1.bf16.msra.mxu0 %v2916
        %2926 = vmatprep.subr.bf16.mxu0 0
        %2927 = vmatpush1.bf16.msra.mxu0 0
        %2928 = vmatprep.subr.bf16.mxu0 0
        %2929 = vmatpush1.bf16.msra.mxu0 0
        %2930 = vmatprep.subr.bf16.mxu0 0
        %2931 = vmatpush1.bf16.msra.mxu0 0
        %2932 = vmatprep.subr.bf16.mxu0 0
        %2933 = vmatpush1.bf16.msra.mxu0 0
        %2934 = vmatprep.subr.bf16.mxu0 0
        %2935 = vmatpush1.bf16.msra.mxu0 0
        %2936 = vmatprep.subr.bf16.mxu0 0
        %2937 = vmatpush1.bf16.msra.mxu0 0
        %2938 = vmatprep.subr.bf16.mxu0 0
        %2939 = vmatpush1.bf16.msra.mxu0 0
        %2940 = vmatprep.subr.bf16.mxu0 0
        %2941 = vmatpush1.bf16.msra.mxu0 0
        %2942 = vmatprep.subr.bf16.mxu0 0
        %2943 = vmatpush1.bf16.msra.mxu0 0
        %2944 = vmatprep.subr.bf16.mxu0 0
        %2945 = vmatpush1.bf16.msra.mxu0 0
        %2946 = vmatprep.subr.bf16.mxu0 0
        %2947 = vmatpush1.bf16.msra.mxu0 0
        %2948 = vmatprep.subr.bf16.mxu0 0
        %2949 = vmatpush1.bf16.msra.mxu0 0
        %2950 = vmatprep.subr.bf16.mxu0 0
        %2951 = vmatpush1.bf16.msra.mxu0 0
        %2952 = vmatprep.subr.bf16.mxu0 0
        %2953 = vmatpush1.bf16.msra.mxu0 0
        %2954 = vmatprep.mubr.bf16.mxu0 0
        %2955 = vmatmul.mubr.bf16.gmra.mrb[0].mxu0 %v2920
        %v2956 = vpop.f32.mrb[0].mxu0
        %v2957 = vadd.f32 0.0, %v2956
        %v2958 = vpop.f32.mrb[0].mxu0
        %v2959 = vpop.f32.mrb[0].mxu0
        %v2960 = vpop.f32.mrb[0].mxu0
        %2961 = vdwg.mxu0
        %v2978 = vrot.slane %v2132, 1
        %v2979 = vrot.slane %v2187, 1
        %v2980 = vrot.slane %v2242, 1
        %v2981 = vrot.slane %v2297, 1
        %v2982 = vrot.slane %v2352, 1
        %v2983 = vrot.slane %v2407, 1
        %v2984 = vrot.slane %v2462, 1
        %v2985 = vrot.slane %v2517, 1
        %v2986 = vrot.slane %v2572, 1
        %v2987 = vrot.slane %v2627, 1
        %v2988 = vrot.slane %v2682, 1
        %v2989 = vrot.slane %v2737, 1
        %v2990 = vrot.slane %v2792, 1
        %v2991 = vrot.slane %v2847, 1
        %v2992 = vrot.slane %v2902, 1
        %v2993 = vrot.slane %v2957, 1
        %v2994 = vrot.slane %v2132, 2
        %v2995 = vrot.slane %v2187, 2
        %v2996 = vrot.slane %v2242, 2
        %v2997 = vrot.slane %v2297, 2
        %v2998 = vrot.slane %v2352, 2
        %v2999 = vrot.slane %v2407, 2
        %v3000 = vrot.slane %v2462, 2
        %v3001 = vrot.slane %v2517, 2
        %v3002 = vrot.slane %v2572, 2
        %v3003 = vrot.slane %v2627, 2
        %v3004 = vrot.slane %v2682, 2
        %v3005 = vrot.slane %v2737, 2
        %v3006 = vrot.slane %v2792, 2
        %v3007 = vrot.slane %v2847, 2
        %v3008 = vrot.slane %v2902, 2
        %v3009 = vrot.slane %v2957, 2
        %v3010 = vrot.slane %v2132, 3
        %v3011 = vrot.slane %v2187, 3
        %v3012 = vrot.slane %v2242, 3
        %v3013 = vrot.slane %v2297, 3
        %v3014 = vrot.slane %v2352, 3
        %v3015 = vrot.slane %v2407, 3
        %v3016 = vrot.slane %v2462, 3
        %v3017 = vrot.slane %v2517, 3
        %v3018 = vrot.slane %v2572, 3
        %v3019 = vrot.slane %v2627, 3
        %v3020 = vrot.slane %v2682, 3
        %v3021 = vrot.slane %v2737, 3
        %v3022 = vrot.slane %v2792, 3
        %v3023 = vrot.slane %v2847, 3
        %v3024 = vrot.slane %v2902, 3
        %v3025 = vrot.slane %v2957, 3
        %v3026 = vlaneseq
        %v3027 = vand.u32 %v3026, 127
        %v3028 = vstv %s1154
        %vm3029 = vcmp.lt.s32.totalorder %v3027, %v3028
        %v3030 = vsel %vm3029, 1, 0
        %v3031 = vcvt.s32.f32 %v3030
        %v3032 = vsel %vm3029, 0.0, -3.4028235e+38
        %v3033 = vrot.slane %v2187, 7
        %vm3034 = vcmask 1041409
        %v3035 = vsel %vm3034, %v3033, %v2132
        %v3036 = vrot.slane %v2242, 6
        %vm3037 = vcmask 1042434
        %v3038 = vsel %vm3037, %v3036, %v3035
        %v3039 = vrot.slane %v2297, 5
        %vm3040 = vcmask 1043459
        %v3041 = vsel %vm3040, %v3039, %v3038
        %v3042 = vrot.slane %v2352, 4
        %vm3043 = vcmask 1044484
        %v3044 = vsel %vm3043, %v3042, %v3041
        %vm3045 = vcmask 1045509
        %v3046 = vsel %vm3045, %v3015, %v3044
        %vm3047 = vcmask 1046534
        %v3048 = vsel %vm3047, %v3000, %v3046
        %vm3049 = vcmask 1047559
        %v3050 = vsel %vm3049, %v2985, %v3048
        %v3051 = vrot.slane %v2627, 7
        %v3052 = vsel %vm3034, %v3051, %v2572
        %v3053 = vrot.slane %v2682, 6
        %v3054 = vsel %vm3037, %v3053, %v3052
        %v3055 = vrot.slane %v2737, 5
        %v3056 = vsel %vm3040, %v3055, %v3054
        %v3057 = vrot.slane %v2792, 4
        %v3058 = vsel %vm3043, %v3057, %v3056
        %v3059 = vsel %vm3045, %v3023, %v3058
        %v3060 = vsel %vm3047, %v3008, %v3059
        %v3061 = vsel %vm3049, %v2993, %v3060
        %v3064 = vsel %vm2093, %v1836, 0
        %v3067 = vsel %vm2093, %v1837, 0
        %3069 = vmatprep.subr.bf16.mxu0 0
        %3070 = vmatpush1.bf16.xpose.msra.mxu0 %v3067
        %3071 = vmatprep.subr.bf16.mxu0 0
        %3072 = vmatpush1.bf16.xpose.msra.mxu0 0
        %3073 = vmatprep.subr.bf16.mxu0 0
        %3074 = vmatpush1.bf16.xpose.msra.mxu0 0
        %3075 = vmatprep.subr.bf16.mxu0 0
        %3076 = vmatpush1.bf16.xpose.msra.mxu0 0
        %3077 = vmatprep.subr.bf16.mxu0 0
        %3078 = vmatpush1.bf16.xpose.msra.mxu0 0
        %3079 = vmatprep.subr.bf16.mxu0 0
        %3080 = vmatpush1.bf16.xpose.msra.mxu0 0
        %3081 = vmatprep.subr.bf16.mxu0 0
        %3082 = vmatpush1.bf16.xpose.msra.mxu0 0
        %3083 = vmatprep.subr.bf16.mxu0 0
        %3084 = vmatpush1.bf16.xpose.msra.mxu0 0
        %3085 = vmatprep.subr.bf16.mxu0 0
        %3086 = vmatpush1.bf16.xpose.msra.mxu0 0
        %3087 = vmatprep.subr.bf16.mxu0 0
        %3088 = vmatpush1.bf16.xpose.msra.mxu0 0
        %3089 = vmatprep.subr.bf16.mxu0 0
        %3090 = vmatpush1.bf16.xpose.msra.mxu0 0
        %3091 = vmatprep.subr.bf16.mxu0 0
        %3092 = vmatpush1.bf16.xpose.msra.mxu0 0
        %3093 = vmatprep.subr.bf16.mxu0 0
        %3094 = vmatpush1.bf16.xpose.msra.mxu0 0
        %3095 = vmatprep.subr.bf16.mxu0 0
        %3096 = vmatpush1.bf16.xpose.msra.mxu0 0
        %3097 = vmatprep.subr.bf16.mxu0 0
        %3098 = vmatpush1.bf16.xpose.msra.mxu0 0
        %3099 = vmatprep.subr.bf16.mxu0 0
        %3100 = vmatpush1.bf16.xpose.msra.mxu0 0
        %3101 = vmatprep.mubr.bf16.mxu0 0
        %3102 = vmatmul.mubr.bf16.gmra.mrb[0].mxu0 %v3064
        %v3103 = vpop.f32.mrb[0].mxu0
        %v3104 = vadd.f32 %v3050, %v3103
        %v3105 = vpop.f32.mrb[0].mxu0
        %v3106 = vpop.f32.mrb[0].mxu0
        %v3107 = vadd.f32 %v3061, %v3106
        %v3108 = vpop.f32.mrb[0].mxu0
        %3109 = vdwg.mxu0
        %v3110 = vrot.slane %v2979, 7
        %v3111 = vsel %vm3034, %v3110, %v2978
        %v3112 = vrot.slane %v2980, 6
        %v3113 = vsel %vm3037, %v3112, %v3111
        %v3114 = vrot.slane %v2981, 5
        %v3115 = vsel %vm3040, %v3114, %v3113
        %v3116 = vrot.slane %v2982, 4
        %v3117 = vsel %vm3043, %v3116, %v3115
        %v3118 = vrot.slane %v2983, 3
        %v3119 = vsel %vm3045, %v3118, %v3117
        %v3120 = vrot.slane %v2984, 2
        %v3121 = vsel %vm3047, %v3120, %v3119
        %v3122 = vrot.slane %v2985, 1
        %v3123 = vsel %vm3049, %v3122, %v3121
        %v3124 = vrot.slane %v2987, 7
        %v3125 = vsel %vm3034, %v3124, %v2986
        %v3126 = vrot.slane %v2988, 6
        %v3127 = vsel %vm3037, %v3126, %v3125
        %v3128 = vrot.slane %v2989, 5
        %v3129 = vsel %vm3040, %v3128, %v3127
        %v3130 = vrot.slane %v2990, 4
        %v3131 = vsel %vm3043, %v3130, %v3129
        %v3132 = vrot.slane %v2991, 3
        %v3133 = vsel %vm3045, %v3132, %v3131
        %v3134 = vrot.slane %v2992, 2
        %v3135 = vsel %vm3047, %v3134, %v3133
        %v3136 = vrot.slane %v2993, 1
        %v3137 = vsel %vm3049, %v3136, %v3135
        %v3140 = vsel %vm2093, %v1841, 0
        %v3143 = vsel %vm2093, %v1848, 0
        %3145 = vmatprep.subr.bf16.mxu0 0
        %3146 = vmatpush1.bf16.xpose.msra.mxu0 %v3143
        %3147 = vmatprep.subr.bf16.mxu0 0
        %3148 = vmatpush1.bf16.xpose.msra.mxu0 0
        %3149 = vmatprep.subr.bf16.mxu0 0
        %3150 = vmatpush1.bf16.xpose.msra.mxu0 0
        %3151 = vmatprep.subr.bf16.mxu0 0
        %3152 = vmatpush1.bf16.xpose.msra.mxu0 0
        %3153 = vmatprep.subr.bf16.mxu0 0
        %3154 = vmatpush1.bf16.xpose.msra.mxu0 0
        %3155 = vmatprep.subr.bf16.mxu0 0
        %3156 = vmatpush1.bf16.xpose.msra.mxu0 0
        %3157 = vmatprep.subr.bf16.mxu0 0
        %3158 = vmatpush1.bf16.xpose.msra.mxu0 0
        %3159 = vmatprep.subr.bf16.mxu0 0
        %3160 = vmatpush1.bf16.xpose.msra.mxu0 0
        %3161 = vmatprep.subr.bf16.mxu0 0
        %3162 = vmatpush1.bf16.xpose.msra.mxu0 0
        %3163 = vmatprep.subr.bf16.mxu0 0
        %3164 = vmatpush1.bf16.xpose.msra.mxu0 0
        %3165 = vmatprep.subr.bf16.mxu0 0
        %3166 = vmatpush1.bf16.xpose.msra.mxu0 0
        %3167 = vmatprep.subr.bf16.mxu0 0
        %3168 = vmatpush1.bf16.xpose.msra.mxu0 0
        %3169 = vmatprep.subr.bf16.mxu0 0
        %3170 = vmatpush1.bf16.xpose.msra.mxu0 0
        %3171 = vmatprep.subr.bf16.mxu0 0
        %3172 = vmatpush1.bf16.xpose.msra.mxu0 0
        %3173 = vmatprep.subr.bf16.mxu0 0
        %3174 = vmatpush1.bf16.xpose.msra.mxu0 0
        %3175 = vmatprep.subr.bf16.mxu0 0
        %3176 = vmatpush1.bf16.xpose.msra.mxu0 0
        %3177 = vmatprep.mubr.bf16.mxu0 0
        %3178 = vmatmul.mubr.bf16.gmra.mrb[0].mxu0 %v3140
        %v3179 = vpop.f32.mrb[0].mxu0
        %v3180 = vadd.f32 %v3123, %v3179
        %v3181 = vpop.f32.mrb[0].mxu0
        %v3182 = vpop.f32.mrb[0].mxu0
        %v3183 = vadd.f32 %v3137, %v3182
        %v3184 = vpop.f32.mrb[0].mxu0
        %3185 = vdwg.mxu0
        %v3186 = vrot.slane %v2995, 7
        %v3187 = vsel %vm3034, %v3186, %v2994
        %v3188 = vrot.slane %v2996, 6
        %v3189 = vsel %vm3037, %v3188, %v3187
        %v3190 = vrot.slane %v2997, 5
        %v3191 = vsel %vm3040, %v3190, %v3189
        %v3192 = vrot.slane %v2998, 4
        %v3193 = vsel %vm3043, %v3192, %v3191
        %v3194 = vrot.slane %v2999, 3
        %v3195 = vsel %vm3045, %v3194, %v3193
        %v3196 = vrot.slane %v3000, 2
        %v3197 = vsel %vm3047, %v3196, %v3195
        %v3198 = vrot.slane %v3001, 1
        %v3199 = vsel %vm3049, %v3198, %v3197
        %v3200 = vrot.slane %v3003, 7
        %v3201 = vsel %vm3034, %v3200, %v3002
        %v3202 = vrot.slane %v3004, 6
        %v3203 = vsel %vm3037, %v3202, %v3201
        %v3204 = vrot.slane %v3005, 5
        %v3205 = vsel %vm3040, %v3204, %v3203
        %v3206 = vrot.slane %v3006, 4
        %v3207 = vsel %vm3043, %v3206, %v3205
        %v3208 = vrot.slane %v3007, 3
        %v3209 = vsel %vm3045, %v3208, %v3207
        %v3210 = vrot.slane %v3008, 2
        %v3211 = vsel %vm3047, %v3210, %v3209
        %v3212 = vrot.slane %v3009, 1
        %v3213 = vsel %vm3049, %v3212, %v3211
        %v3216 = vsel %vm2093, %v1843, 0
        %v3219 = vsel %vm2093, %v1850, 0
        %3221 = vmatprep.subr.bf16.mxu0 0
        %3222 = vmatpush1.bf16.xpose.msra.mxu0 %v3219
        %3223 = vmatprep.subr.bf16.mxu0 0
        %3224 = vmatpush1.bf16.xpose.msra.mxu0 0
        %3225 = vmatprep.subr.bf16.mxu0 0
        %3226 = vmatpush1.bf16.xpose.msra.mxu0 0
        %3227 = vmatprep.subr.bf16.mxu0 0
        %3228 = vmatpush1.bf16.xpose.msra.mxu0 0
        %3229 = vmatprep.subr.bf16.mxu0 0
        %3230 = vmatpush1.bf16.xpose.msra.mxu0 0
        %3231 = vmatprep.subr.bf16.mxu0 0
        %3232 = vmatpush1.bf16.xpose.msra.mxu0 0
        %3233 = vmatprep.subr.bf16.mxu0 0
        %3234 = vmatpush1.bf16.xpose.msra.mxu0 0
        %3235 = vmatprep.subr.bf16.mxu0 0
        %3236 = vmatpush1.bf16.xpose.msra.mxu0 0
        %3237 = vmatprep.subr.bf16.mxu0 0
        %3238 = vmatpush1.bf16.xpose.msra.mxu0 0
        %3239 = vmatprep.subr.bf16.mxu0 0
        %3240 = vmatpush1.bf16.xpose.msra.mxu0 0
        %3241 = vmatprep.subr.bf16.mxu0 0
        %3242 = vmatpush1.bf16.xpose.msra.mxu0 0
        %3243 = vmatprep.subr.bf16.mxu0 0
        %3244 = vmatpush1.bf16.xpose.msra.mxu0 0
        %3245 = vmatprep.subr.bf16.mxu0 0
        %3246 = vmatpush1.bf16.xpose.msra.mxu0 0
        %3247 = vmatprep.subr.bf16.mxu0 0
        %3248 = vmatpush1.bf16.xpose.msra.mxu0 0
        %3249 = vmatprep.subr.bf16.mxu0 0
        %3250 = vmatpush1.bf16.xpose.msra.mxu0 0
        %3251 = vmatprep.subr.bf16.mxu0 0
        %3252 = vmatpush1.bf16.xpose.msra.mxu0 0
        %3253 = vmatprep.mubr.bf16.mxu0 0
        %3254 = vmatmul.mubr.bf16.gmra.mrb[0].mxu0 %v3216
        %v3255 = vpop.f32.mrb[0].mxu0
        %v3256 = vadd.f32 %v3199, %v3255
        %v3257 = vpop.f32.mrb[0].mxu0
        %v3258 = vpop.f32.mrb[0].mxu0
        %v3259 = vadd.f32 %v3213, %v3258
        %v3260 = vpop.f32.mrb[0].mxu0
        %3261 = vdwg.mxu0
        %v3262 = vrot.slane %v3011, 7
        %v3263 = vsel %vm3034, %v3262, %v3010
        %v3264 = vrot.slane %v3012, 6
        %v3265 = vsel %vm3037, %v3264, %v3263
        %v3266 = vrot.slane %v3013, 5
        %v3267 = vsel %vm3040, %v3266, %v3265
        %v3268 = vrot.slane %v3014, 4
        %v3269 = vsel %vm3043, %v3268, %v3267
        %v3270 = vrot.slane %v3015, 3
        %v3271 = vsel %vm3045, %v3270, %v3269
        %v3272 = vrot.slane %v3016, 2
        %v3273 = vsel %vm3047, %v3272, %v3271
        %v3274 = vrot.slane %v3017, 1
        %v3275 = vsel %vm3049, %v3274, %v3273
        %v3276 = vrot.slane %v3019, 7
        %v3277 = vsel %vm3034, %v3276, %v3018
        %v3278 = vrot.slane %v3020, 6
        %v3279 = vsel %vm3037, %v3278, %v3277
        %v3280 = vrot.slane %v3021, 5
        %v3281 = vsel %vm3040, %v3280, %v3279
        %v3282 = vrot.slane %v3022, 4
        %v3283 = vsel %vm3043, %v3282, %v3281
        %v3284 = vrot.slane %v3023, 3
        %v3285 = vsel %vm3045, %v3284, %v3283
        %v3286 = vrot.slane %v3024, 2
        %v3287 = vsel %vm3047, %v3286, %v3285
        %v3288 = vrot.slane %v3025, 1
        %v3289 = vsel %vm3049, %v3288, %v3287
        %v3292 = vsel %vm2093, %v1845, 0
        %v3295 = vsel %vm2093, %v1852, 0
        %3297 = vmatprep.subr.bf16.mxu0 0
        %3298 = vmatpush1.bf16.xpose.msra.mxu0 %v3295
        %3299 = vmatprep.subr.bf16.mxu0 0
        %3300 = vmatpush1.bf16.xpose.msra.mxu0 0
        %3301 = vmatprep.subr.bf16.mxu0 0
        %3302 = vmatpush1.bf16.xpose.msra.mxu0 0
        %3303 = vmatprep.subr.bf16.mxu0 0
        %3304 = vmatpush1.bf16.xpose.msra.mxu0 0
        %3305 = vmatprep.subr.bf16.mxu0 0
        %3306 = vmatpush1.bf16.xpose.msra.mxu0 0
        %3307 = vmatprep.subr.bf16.mxu0 0
        %3308 = vmatpush1.bf16.xpose.msra.mxu0 0
        %3309 = vmatprep.subr.bf16.mxu0 0
        %3310 = vmatpush1.bf16.xpose.msra.mxu0 0
        %3311 = vmatprep.subr.bf16.mxu0 0
        %3312 = vmatpush1.bf16.xpose.msra.mxu0 0
        %3313 = vmatprep.subr.bf16.mxu0 0
        %3314 = vmatpush1.bf16.xpose.msra.mxu0 0
        %3315 = vmatprep.subr.bf16.mxu0 0
        %3316 = vmatpush1.bf16.xpose.msra.mxu0 0
        %3317 = vmatprep.subr.bf16.mxu0 0
        %3318 = vmatpush1.bf16.xpose.msra.mxu0 0
        %3319 = vmatprep.subr.bf16.mxu0 0
        %3320 = vmatpush1.bf16.xpose.msra.mxu0 0
        %3321 = vmatprep.subr.bf16.mxu0 0
        %3322 = vmatpush1.bf16.xpose.msra.mxu0 0
        %3323 = vmatprep.subr.bf16.mxu0 0
        %3324 = vmatpush1.bf16.xpose.msra.mxu0 0
        %3325 = vmatprep.subr.bf16.mxu0 0
        %3326 = vmatpush1.bf16.xpose.msra.mxu0 0
        %3327 = vmatprep.subr.bf16.mxu0 0
        %3328 = vmatpush1.bf16.xpose.msra.mxu0 0
        %3329 = vmatprep.mubr.bf16.mxu0 0
        %3330 = vmatmul.mubr.bf16.gmra.mrb[0].mxu0 %v3292
        %v3331 = vpop.f32.mrb[0].mxu0
        %v3332 = vadd.f32 %v3275, %v3331
        %v3333 = vpop.f32.mrb[0].mxu0
        %v3334 = vpop.f32.mrb[0].mxu0
        %v3335 = vadd.f32 %v3289, %v3334
        %v3336 = vpop.f32.mrb[0].mxu0
        %3337 = vdwg.mxu0
        %v3338 = vmul.f32 %v3104, 0.17677669
        %v3339 = vmul.f32 %v3107, 0.17677669
        %v3340 = vmul.f32 %v3180, 0.17677669
        %v3341 = vmul.f32 %v3183, 0.17677669
        %v3342 = vmul.f32 %v3256, 0.17677669
        %v3343 = vmul.f32 %v3259, 0.17677669
        %v3344 = vmul.f32 %v3332, 0.17677669
        %v3345 = vmul.f32 %v3335, 0.17677669
        %v3346 = vadd.f32 %v3338, %v3032
        %v3347 = vadd.f32 %v3339, %v3032
        %v3348 = vadd.f32 %v3340, %v3032
        %v3349 = vadd.f32 %v3341, %v3032
        %v3350 = vadd.f32 %v3342, %v3032
        %v3351 = vadd.f32 %v3343, %v3032
        %v3352 = vadd.f32 %v3344, %v3032
        %v3353 = vadd.f32 %v3345, %v3032
        %vm3354 = vcmask 130048
        %v3355 = vsel %vm3354, %v3346, -inf
        %3356 = vmax.xlane.f32.xlu0 %v3355
        %v3357 = vpop.xlane.xlu0 %3356
        %v3358 = vsel %vm3354, %v3347, -inf
        %3359 = vmax.xlane.f32.xlu0 %v3358
        %v3360 = vpop.xlane.xlu0 %3359
        %v3361 = vsel %vm3354, %v3348, -inf
        %3362 = vmax.xlane.f32.xlu0 %v3361
        %v3363 = vpop.xlane.xlu0 %3362
        %v3364 = vsel %vm3354, %v3349, -inf
        %3365 = vmax.xlane.f32.xlu0 %v3364
        %v3366 = vpop.xlane.xlu0 %3365
        %v3367 = vsel %vm3354, %v3350, -inf
        %3368 = vmax.xlane.f32.xlu0 %v3367
        %v3369 = vpop.xlane.xlu0 %3368
        %v3370 = vsel %vm3354, %v3351, -inf
        %3371 = vmax.xlane.f32.xlu0 %v3370
        %v3372 = vpop.xlane.xlu0 %3371
        %v3373 = vsel %vm3354, %v3352, -inf
        %3374 = vmax.xlane.f32.xlu0 %v3373
        %v3375 = vpop.xlane.xlu0 %3374
        %v3376 = vsel %vm3354, %v3353, -inf
        %3377 = vmax.xlane.f32.xlu0 %v3376
        %v3378 = vpop.xlane.xlu0 %3377
        %v3379 = vsub.f32 %v3346, %v3357
        %v3380 = vsub.f32 %v3347, %v3360
        %v3381 = vsub.f32 %v3348, %v3363
        %v3382 = vsub.f32 %v3349, %v3366
        %v3383 = vsub.f32 %v3350, %v3369
        %v3384 = vsub.f32 %v3351, %v3372
        %v3385 = vsub.f32 %v3352, %v3375
        %v3386 = vsub.f32 %v3353, %v3378
        %v3387 = vpack.c.bf16 %v3380, %v3379
        %v3388 = vpack.c.bf16 %v3382, %v3381
        %v3389 = vpack.c.bf16 %v3384, %v3383
        %v3390 = vpack.c.bf16 %v3386, %v3385
        %v3392 = vmul.bf16 %v3387, 1069105081
        %v3393 = vpow.bf16.pop %v3392
        %v3395 = vmul.bf16 %v3388, 1069105081
        %v3396 = vpow.bf16.pop %v3395
        %v3398 = vmul.bf16 %v3389, 1069105081
        %v3399 = vpow.bf16.pop %v3398
        %v3401 = vmul.bf16 %v3390, 1069105081
        %v3402 = vpow.bf16.pop %v3401
        %v3403 = vunpack.c.l.bf16 %v3393
        %v3404 = vunpack.c.h.bf16 %v3393
        %v3405 = vunpack.c.l.bf16 %v3396
        %v3406 = vunpack.c.h.bf16 %v3396
        %v3407 = vunpack.c.l.bf16 %v3399
        %v3408 = vunpack.c.h.bf16 %v3399
        %v3409 = vunpack.c.l.bf16 %v3402
        %v3410 = vunpack.c.h.bf16 %v3402
        %v3411 = vsel %vm3354, %v3403, 0.0
        %3412 = vadd.xlane.f32.xlu0 %v3411
        %v3413 = vpop.xlane.xlu0 %3412
        %v3414 = vsel %vm3354, %v3404, 0.0
        %3415 = vadd.xlane.f32.xlu0 %v3414
        %v3416 = vpop.xlane.xlu0 %3415
        %v3417 = vsel %vm3354, %v3405, 0.0
        %3418 = vadd.xlane.f32.xlu0 %v3417
        %v3419 = vpop.xlane.xlu0 %3418
        %v3420 = vsel %vm3354, %v3406, 0.0
        %3421 = vadd.xlane.f32.xlu0 %v3420
        %v3422 = vpop.xlane.xlu0 %3421
        %v3423 = vsel %vm3354, %v3407, 0.0
        %3424 = vadd.xlane.f32.xlu0 %v3423
        %v3425 = vpop.xlane.xlu0 %3424
        %v3426 = vsel %vm3354, %v3408, 0.0
        %3427 = vadd.xlane.f32.xlu0 %v3426
        %v3428 = vpop.xlane.xlu0 %3427
        %v3429 = vsel %vm3354, %v3409, 0.0
        %3430 = vadd.xlane.f32.xlu0 %v3429
        %v3431 = vpop.xlane.xlu0 %3430
        %v3432 = vsel %vm3354, %v3410, 0.0
        %3433 = vadd.xlane.f32.xlu0 %v3432
        %v3434 = vpop.xlane.xlu0 %3433
        %v3435 = vrcp.pop %v3413
        %v3436 = vrcp.pop %v3416
        %v3437 = vrcp.pop %v3419
        %v3438 = vrcp.pop %v3422
        %v3439 = vrcp.pop %v3425
        %v3440 = vrcp.pop %v3428
        %v3441 = vrcp.pop %v3431
        %v3442 = vrcp.pop %v3434
        %v3443 = vmul.f32 %v3403, %v3435
        %v3444 = vmul.f32 %v3404, %v3436
        %v3445 = vmul.f32 %v3405, %v3437
        %v3446 = vmul.f32 %v3406, %v3438
        %v3447 = vmul.f32 %v3407, %v3439
        %v3448 = vmul.f32 %v3408, %v3440
        %v3449 = vmul.f32 %v3409, %v3441
        %v3450 = vmul.f32 %v3410, %v3442
        %v3451 = vmul.f32 %v3443, %v3031
        %v3452 = vmul.f32 %v3444, %v3031
        %v3453 = vmul.f32 %v3445, %v3031
        %v3454 = vmul.f32 %v3446, %v3031
        %v3455 = vmul.f32 %v3447, %v3031
        %v3456 = vmul.f32 %v3448, %v3031
        %v3457 = vmul.f32 %v3449, %v3031
        %v3458 = vmul.f32 %v3450, %v3031
        %v3459 = vpack.c.bf16 %v3452, %v3451
        %v3460 = vpack.c.bf16 %v3454, %v3453
        %v3461 = vpack.c.bf16 %v3456, %v3455
        %v3462 = vpack.c.bf16 %v3458, %v3457
        %v3464 = vsel %vm3354, %v3459, 0
        %3466 = vmatprep.subr.bf16.mxu0 0
        %3467 = vmatpush1.bf16.msra.mxu0 %v1838
        %3468 = vmatprep.subr.bf16.mxu0 0
        %3469 = vmatpush1.bf16.msra.mxu0 0
        %3470 = vmatprep.subr.bf16.mxu0 0
        %3471 = vmatpush1.bf16.msra.mxu0 0
        %3472 = vmatprep.subr.bf16.mxu0 0
        %3473 = vmatpush1.bf16.msra.mxu0 0
        %3474 = vmatprep.subr.bf16.mxu0 0
        %3475 = vmatpush1.bf16.msra.mxu0 0
        %3476 = vmatprep.subr.bf16.mxu0 0
        %3477 = vmatpush1.bf16.msra.mxu0 0
        %3478 = vmatprep.subr.bf16.mxu0 0
        %3479 = vmatpush1.bf16.msra.mxu0 0
        %3480 = vmatprep.subr.bf16.mxu0 0
        %3481 = vmatpush1.bf16.msra.mxu0 0
        %3482 = vmatprep.subr.bf16.mxu0 0
        %3483 = vmatpush1.bf16.msra.mxu0 0
        %3484 = vmatprep.subr.bf16.mxu0 0
        %3485 = vmatpush1.bf16.msra.mxu0 0
        %3486 = vmatprep.subr.bf16.mxu0 0
        %3487 = vmatpush1.bf16.msra.mxu0 0
        %3488 = vmatprep.subr.bf16.mxu0 0
        %3489 = vmatpush1.bf16.msra.mxu0 0
        %3490 = vmatprep.subr.bf16.mxu0 0
        %3491 = vmatpush1.bf16.msra.mxu0 0
        %3492 = vmatprep.subr.bf16.mxu0 0
        %3493 = vmatpush1.bf16.msra.mxu0 0
        %3494 = vmatprep.subr.bf16.mxu0 0
        %3495 = vmatpush1.bf16.msra.mxu0 0
        %3496 = vmatprep.subr.bf16.mxu0 0
        %3497 = vmatpush1.bf16.msra.mxu0 0
        %3498 = vmatprep.mubr.bf16.mxu0 0
        %3499 = vmatmul.mubr.bf16.gmra.mrb[0].mxu0 %v3464
        %v3500 = vpop.f32.mrb[0].mxu0
        %v3501 = vadd.f32 0.0, %v3500
        %v3502 = vpop.f32.mrb[0].mxu0
        %v3503 = vpop.f32.mrb[0].mxu0
        %v3504 = vadd.f32 0.0, %v3503
        %v3505 = vpop.f32.mrb[0].mxu0
        %3506 = vdwg.mxu0
        %v3508 = vsel %vm3354, %v3460, 0
        %3510 = vmatprep.subr.bf16.mxu0 0
        %3511 = vmatpush1.bf16.msra.mxu0 %v1855
        %3512 = vmatprep.subr.bf16.mxu0 0
        %3513 = vmatpush1.bf16.msra.mxu0 0
        %3514 = vmatprep.subr.bf16.mxu0 0
        %3515 = vmatpush1.bf16.msra.mxu0 0
        %3516 = vmatprep.subr.bf16.mxu0 0
        %3517 = vmatpush1.bf16.msra.mxu0 0
        %3518 = vmatprep.subr.bf16.mxu0 0
        %3519 = vmatpush1.bf16.msra.mxu0 0
        %3520 = vmatprep.subr.bf16.mxu0 0
        %3521 = vmatpush1.bf16.msra.mxu0 0
        %3522 = vmatprep.subr.bf16.mxu0 0
        %3523 = vmatpush1.bf16.msra.mxu0 0
        %3524 = vmatprep.subr.bf16.mxu0 0
        %3525 = vmatpush1.bf16.msra.mxu0 0
        %3526 = vmatprep.subr.bf16.mxu0 0
        %3527 = vmatpush1.bf16.msra.mxu0 0
        %3528 = vmatprep.subr.bf16.mxu0 0
        %3529 = vmatpush1.bf16.msra.mxu0 0
        %3530 = vmatprep.subr.bf16.mxu0 0
        %3531 = vmatpush1.bf16.msra.mxu0 0
        %3532 = vmatprep.subr.bf16.mxu0 0
        %3533 = vmatpush1.bf16.msra.mxu0 0
        %3534 = vmatprep.subr.bf16.mxu0 0
        %3535 = vmatpush1.bf16.msra.mxu0 0
        %3536 = vmatprep.subr.bf16.mxu0 0
        %3537 = vmatpush1.bf16.msra.mxu0 0
        %3538 = vmatprep.subr.bf16.mxu0 0
        %3539 = vmatpush1.bf16.msra.mxu0 0
        %3540 = vmatprep.subr.bf16.mxu0 0
        %3541 = vmatpush1.bf16.msra.mxu0 0
        %3542 = vmatprep.mubr.bf16.mxu0 0
        %3543 = vmatmul.mubr.bf16.gmra.mrb[0].mxu0 %v3508
        %v3544 = vpop.f32.mrb[0].mxu0
        %v3545 = vadd.f32 0.0, %v3544
        %v3546 = vpop.f32.mrb[0].mxu0
        %v3547 = vpop.f32.mrb[0].mxu0
        %v3548 = vadd.f32 0.0, %v3547
        %v3549 = vpop.f32.mrb[0].mxu0
        %3550 = vdwg.mxu0
        %v3552 = vsel %vm3354, %v3461, 0
        %3554 = vmatprep.subr.bf16.mxu0 0
        %3555 = vmatpush1.bf16.msra.mxu0 %v1858
        %3556 = vmatprep.subr.bf16.mxu0 0
        %3557 = vmatpush1.bf16.msra.mxu0 0
        %3558 = vmatprep.subr.bf16.mxu0 0
        %3559 = vmatpush1.bf16.msra.mxu0 0
        %3560 = vmatprep.subr.bf16.mxu0 0
        %3561 = vmatpush1.bf16.msra.mxu0 0
        %3562 = vmatprep.subr.bf16.mxu0 0
        %3563 = vmatpush1.bf16.msra.mxu0 0
        %3564 = vmatprep.subr.bf16.mxu0 0
        %3565 = vmatpush1.bf16.msra.mxu0 0
        %3566 = vmatprep.subr.bf16.mxu0 0
        %3567 = vmatpush1.bf16.msra.mxu0 0
        %3568 = vmatprep.subr.bf16.mxu0 0
        %3569 = vmatpush1.bf16.msra.mxu0 0
        %3570 = vmatprep.subr.bf16.mxu0 0
        %3571 = vmatpush1.bf16.msra.mxu0 0
        %3572 = vmatprep.subr.bf16.mxu0 0
        %3573 = vmatpush1.bf16.msra.mxu0 0
        %3574 = vmatprep.subr.bf16.mxu0 0
        %3575 = vmatpush1.bf16.msra.mxu0 0
        %3576 = vmatprep.subr.bf16.mxu0 0
        %3577 = vmatpush1.bf16.msra.mxu0 0
        %3578 = vmatprep.subr.bf16.mxu0 0
        %3579 = vmatpush1.bf16.msra.mxu0 0
        %3580 = vmatprep.subr.bf16.mxu0 0
        %3581 = vmatpush1.bf16.msra.mxu0 0
        %3582 = vmatprep.subr.bf16.mxu0 0
        %3583 = vmatpush1.bf16.msra.mxu0 0
        %3584 = vmatprep.subr.bf16.mxu0 0
        %3585 = vmatpush1.bf16.msra.mxu0 0
        %3586 = vmatprep.mubr.bf16.mxu0 0
        %3587 = vmatmul.mubr.bf16.gmra.mrb[0].mxu0 %v3552
        %v3588 = vpop.f32.mrb[0].mxu0
        %v3589 = vadd.f32 0.0, %v3588
        %v3590 = vpop.f32.mrb[0].mxu0
        %v3591 = vpop.f32.mrb[0].mxu0
        %v3592 = vadd.f32 0.0, %v3591
        %v3593 = vpop.f32.mrb[0].mxu0
        %3594 = vdwg.mxu0
        %v3596 = vsel %vm3354, %v3462, 0
        %3598 = vmatprep.subr.bf16.mxu0 0
        %3599 = vmatpush1.bf16.msra.mxu0 %v1861
        %3600 = vmatprep.subr.bf16.mxu0 0
        %3601 = vmatpush1.bf16.msra.mxu0 0
        %3602 = vmatprep.subr.bf16.mxu0 0
        %3603 = vmatpush1.bf16.msra.mxu0 0
        %3604 = vmatprep.subr.bf16.mxu0 0
        %3605 = vmatpush1.bf16.msra.mxu0 0
        %3606 = vmatprep.subr.bf16.mxu0 0
        %3607 = vmatpush1.bf16.msra.mxu0 0
        %3608 = vmatprep.subr.bf16.mxu0 0
        %3609 = vmatpush1.bf16.msra.mxu0 0
        %3610 = vmatprep.subr.bf16.mxu0 0
        %3611 = vmatpush1.bf16.msra.mxu0 0
        %3612 = vmatprep.subr.bf16.mxu0 0
        %3613 = vmatpush1.bf16.msra.mxu0 0
        %3614 = vmatprep.subr.bf16.mxu0 0
        %3615 = vmatpush1.bf16.msra.mxu0 0
        %3616 = vmatprep.subr.bf16.mxu0 0
        %3617 = vmatpush1.bf16.msra.mxu0 0
        %3618 = vmatprep.subr.bf16.mxu0 0
        %3619 = vmatpush1.bf16.msra.mxu0 0
        %3620 = vmatprep.subr.bf16.mxu0 0
        %3621 = vmatpush1.bf16.msra.mxu0 0
        %3622 = vmatprep.subr.bf16.mxu0 0
        %3623 = vmatpush1.bf16.msra.mxu0 0
        %3624 = vmatprep.subr.bf16.mxu0 0
        %3625 = vmatpush1.bf16.msra.mxu0 0
        %3626 = vmatprep.subr.bf16.mxu0 0
        %3627 = vmatpush1.bf16.msra.mxu0 0
        %3628 = vmatprep.subr.bf16.mxu0 0
        %3629 = vmatpush1.bf16.msra.mxu0 0
        %3630 = vmatprep.mubr.bf16.mxu0 0
        %3631 = vmatmul.mubr.bf16.gmra.mrb[0].mxu0 %v3596
        %v3632 = vpop.f32.mrb[0].mxu0
        %v3633 = vadd.f32 0.0, %v3632
        %v3634 = vpop.f32.mrb[0].mxu0
        %v3635 = vpop.f32.mrb[0].mxu0
        %v3636 = vadd.f32 0.0, %v3635
        %v3637 = vpop.f32.mrb[0].mxu0
        %3638 = vdwg.mxu0
        %3641 = vrot.lane.b32.xlu0 %v3545, 32
        %v3642 = vpop.permute.xlu0 %3641
        %3643 = vrot.lane.b32.xlu0 %v3548, 32
        %v3644 = vpop.permute.xlu0 %3643
        %3649 = vrot.lane.b32.xlu0 %v3589, 64
        %v3650 = vpop.permute.xlu0 %3649
        %3651 = vrot.lane.b32.xlu0 %v3592, 64
        %v3652 = vpop.permute.xlu0 %3651
        %3657 = vrot.lane.b32.xlu0 %v3633, 96
        %v3658 = vpop.permute.xlu0 %3657
        %3659 = vrot.lane.b32.xlu0 %v3636, 96
        %v3660 = vpop.permute.xlu0 %3659
        %v3663 = vsel %vm2093, %v3501, %v3642
        %v3664 = vsel %vm2093, %v3504, %v3644
        %vm3665 = vcmask 523264
        %v3666 = vsel %vm3665, %v3663, %v3650
        %v3667 = vsel %vm3665, %v3664, %v3652
        %vm3668 = vcmask 785408
        %v3669 = vsel %vm3668, %v3666, %v3658
        %v3670 = vsel %vm3668, %v3667, %v3660
        %v3671 = vpack.c.bf16 %v3670, %v3669
        %v3672 = vld [vmem:[#allocation24] sm:$0xf]
        %v3673 = vld [vmem:[#allocation24 + $0x4] sm:$0xf]
        %v3674 = vld [vmem:[#allocation24 + $0x8] sm:$0xf]
        %v3675 = vld [vmem:[#allocation24 + $0xc] sm:$0xf]
        %v3676 = vld [vmem:[#allocation24 + $0x10] sm:$0xf]
        %v3677 = vld [vmem:[#allocation24 + $0x14] sm:$0xf]
        %v3678 = vld [vmem:[#allocation24 + $0x18] sm:$0xf]
        %v3679 = vld [vmem:[#allocation24 + $0x1c] sm:$0xf]
        %v3680 = vld [vmem:[#allocation24 + $0x20] sm:$0xf]
        %v3681 = vld [vmem:[#allocation24 + $0x24] sm:$0xf]
        %v3682 = vld [vmem:[#allocation24 + $0x28] sm:$0xf]
        %v3683 = vld [vmem:[#allocation24 + $0x2c] sm:$0xf]
        %v3684 = vld [vmem:[#allocation24 + $0x30] sm:$0xf]
        %v3685 = vld [vmem:[#allocation24 + $0x34] sm:$0xf]
        %v3686 = vld [vmem:[#allocation24 + $0x38] sm:$0xf]
        %v3687 = vld [vmem:[#allocation24 + $0x3c] sm:$0xf]
        %v3688 = vld [vmem:[#allocation26] sm:$0x1]
        %v3690 = vlaneseq
        %v3691 = vshrl.u32 %v3690, 7
        %v3692 = vsub.s32 0, %v3691
        %v3693 = vrot.slane %v3688, %v3692
        %v3711 = vunpack.c.l.b16 %v3672
        %v3712 = vunpack.c.l.b16 %v3673
        %v3713 = vunpack.c.l.b16 %v3674
        %v3714 = vunpack.c.l.b16 %v3675
        %v3715 = vunpack.c.l.b16 %v3676
        %v3716 = vunpack.c.l.b16 %v3677
        %v3717 = vunpack.c.l.b16 %v3678
        %v3718 = vunpack.c.l.b16 %v3679
        %v3719 = vunpack.c.l.b16 %v3680
        %v3720 = vunpack.c.l.b16 %v3681
        %v3721 = vunpack.c.l.b16 %v3682
        %v3722 = vunpack.c.l.b16 %v3683
        %v3723 = vunpack.c.l.b16 %v3684
        %v3724 = vunpack.c.l.b16 %v3685
        %v3725 = vunpack.c.l.b16 %v3686
        %v3726 = vunpack.c.l.b16 %v3687
        %v3727 = vpack.c.b16 %v3712, %v3711
        %v3728 = vpack.c.b16 %v3714, %v3713
        %v3729 = vpack.c.b16 %v3716, %v3715
        %v3730 = vpack.c.b16 %v3718, %v3717
        %v3731 = vpack.c.b16 %v3720, %v3719
        %v3732 = vpack.c.b16 %v3722, %v3721
        %v3733 = vpack.c.b16 %v3724, %v3723
        %v3734 = vpack.c.b16 %v3726, %v3725
        %3743 = vmatprep.subr.bf16.mxu0 0
        %3744 = vmatpush1.bf16.msra.mxu0 %v3727
        %3745 = vmatprep.subr.bf16.mxu0 0
        %3746 = vmatpush1.bf16.msra.mxu0 %v3728
        %3747 = vmatprep.subr.bf16.mxu0 0
        %3748 = vmatpush1.bf16.msra.mxu0 %v3729
        %3749 = vmatprep.subr.bf16.mxu0 0
        %3750 = vmatpush1.bf16.msra.mxu0 %v3730
        %3751 = vmatprep.subr.bf16.mxu0 0
        %3752 = vmatpush1.bf16.msra.mxu0 %v3731
        %3753 = vmatprep.subr.bf16.mxu0 0
        %3754 = vmatpush1.bf16.msra.mxu0 %v3732
        %3755 = vmatprep.subr.bf16.mxu0 0
        %3756 = vmatpush1.bf16.msra.mxu0 %v3733
        %3757 = vmatprep.subr.bf16.mxu0 0
        %3758 = vmatpush1.bf16.msra.mxu0 %v3734
        %3759 = vmatprep.subr.bf16.mxu0 0
        %3760 = vmatpush1.bf16.msra.mxu0 0
        %3761 = vmatprep.subr.bf16.mxu0 0
        %3762 = vmatpush1.bf16.msra.mxu0 0
        %3763 = vmatprep.subr.bf16.mxu0 0
        %3764 = vmatpush1.bf16.msra.mxu0 0
        %3765 = vmatprep.subr.bf16.mxu0 0
        %3766 = vmatpush1.bf16.msra.mxu0 0
        %3767 = vmatprep.subr.bf16.mxu0 0
        %3768 = vmatpush1.bf16.msra.mxu0 0
        %3769 = vmatprep.subr.bf16.mxu0 0
        %3770 = vmatpush1.bf16.msra.mxu0 0
        %3771 = vmatprep.subr.bf16.mxu0 0
        %3772 = vmatpush1.bf16.msra.mxu0 0
        %3773 = vmatprep.subr.bf16.mxu0 0
        %3774 = vmatpush1.bf16.msra.mxu0 0
        %3775 = vmatprep.mubr.bf16.mxu0 0
        %3776 = vmatmul.mubr.bf16.gmra.mrb[0].mxu0 %v3671
        %v3777 = vpop.f32.mrb[0].mxu0
        %v3778 = vadd.f32 %v3693, %v3777
        %v3779 = vpop.f32.mrb[0].mxu0
        %v3780 = vpop.f32.mrb[0].mxu0
        %v3781 = vadd.f32 %v3693, %v3780
        %v3782 = vpop.f32.mrb[0].mxu0
        %3783 = vdwg.mxu0
        %v3784 = vadd.f32 %v1532, %v3778
        %v3785 = vadd.f32 %v1533, %v3781
        %v3786 = vld [vmem:[#allocation27] sm:$0x1]
        %v3787 = vld [vmem:[#allocation29] sm:$0x1]
        %3788 = vadd.xlane.f32.xlu0 %v3784
        %v3789 = vpop.xlane.xlu0 %3788
        %3790 = vadd.xlane.f32.xlu0 %v3785
        %v3791 = vpop.xlane.xlu0 %3790
        %v3792 = vmul.f32 %v3789, %v1161
        %v3793 = vmul.f32 %v3791, %v1161
        %v3794 = vsub.f32 %v3784, %v3792
        %v3795 = vsub.f32 %v3785, %v3793
        %v3796 = vmul.f32 %v3794, %v3794
        %v3797 = vmul.f32 %v3795, %v3795
        %3798 = vadd.xlane.f32.xlu0 %v3796
        %v3799 = vpop.xlane.xlu0 %3798
        %3800 = vadd.xlane.f32.xlu0 %v3797
        %v3801 = vpop.xlane.xlu0 %3800
        %v3802 = vmul.f32 %v3799, %v1161
        %v3803 = vmul.f32 %v3801, %v1161
        %v3804 = vadd.f32 %v3802, 1e-05
        %v3805 = vadd.f32 %v3803, 1e-05
        %v3806 = vrsqrt.pop %v3804
        %v3807 = vrsqrt.pop %v3805
        %v3808 = vmul.f32 %v3794, %v3806
        %v3809 = vmul.f32 %v3795, %v3807
        %v3811 = vlaneseq
        %v3812 = vshrl.u32 %v3811, 7
        %v3813 = vsub.s32 0, %v3812
        %v3814 = vrot.slane %v3786, %v3813
        %v3816 = vmul.f32 %v3808, %v3814
        %v3817 = vmul.f32 %v3809, %v3814
        %v3819 = vlaneseq
        %v3820 = vshrl.u32 %v3819, 7
        %v3821 = vsub.s32 0, %v3820
        %v3822 = vrot.slane %v3787, %v3821
        %v3824 = vadd.f32 %v3816, %v3822
        %v3825 = vadd.f32 %v3817, %v3822
        %s3826 = sld [smem:[#allocation30]]
        %v3827 = vstv %s3826
        %v3828 = vmul.f32 %v3824, %v3827
        %v3829 = vmul.f32 %v3825, %v3827
        %s3830 = sld [smem:[#allocation31]]
        %v3831 = vstv %s3830
        %v3832 = vadd.f32 %v3828, %v3831
        %v3833 = vadd.f32 %v3829, %v3831
        %s3834 = sld [smem:[#allocation30 + $0x1]]
        %v3835 = vstv %s3834
        %v3836 = vmul.f32 %v3824, %v3835
        %v3837 = vmul.f32 %v3825, %v3835
        %s3838 = sld [smem:[#allocation31 + $0x1]]
        %v3839 = vstv %s3838
        %v3840 = vadd.f32 %v3836, %v3839
        %v3841 = vadd.f32 %v3837, %v3839
        %v3842 = vxor.u32 %v3840, 2147483648
        %v3843 = vxor.u32 %v3841, 2147483648
        %v3844 = vmul.f32 %v3842, 1.442695
        %v3845 = vpow.pop %v3844
        %v3846 = vmul.f32 %v3843, 1.442695
        %v3847 = vpow.pop %v3846
        %v3848 = vadd.f32 %v3845, 1.0
        %v3849 = vadd.f32 %v3847, 1.0
        %v3850 = vrcp.pop %v3848
        %v3851 = vmul.f32 1.0, %v3850
        %v3852 = vrcp.pop %v3849
        %v3853 = vmul.f32 1.0, %v3852
        %v3854 = vmul.f32 %v3832, %v3851
        %v3855 = vmul.f32 %v3833, %v3853
        %3856 = vst [vmem:[#allocation2] sm:$0x1] 0.0
        %3857 = vst [vmem:[#allocation2 + $0x11] sm:$0x1] 0.0
        %3858 = vst [vmem:[#allocation2 + $0x1] sm:$0xff] %v3854
        %3859 = vst [vmem:[#allocation2 + $0x9] sm:$0xff] %v3855
        %v3860 = vld [vmem:[%s39] sm:$0x1]
        %v3861 = vld [vmem:[#allocation2] sm:$0xff]
        %v3862 = vld [vmem:[#allocation2 + $0x8] sm:$0xff]
        %v3863 = vlaneseq
        %v3864 = vshrl.u32 %v3863, 7
        %v3865 = vsub.s32 0, %v3864
        %v3866 = vrot.slane %v3860, %v3865
        %v3867 = vmul.f32 %v3866, %v3861
        %v3868 = vmul.f32 %v3866, %v3862
        %v3869 = vld [vmem:[%s39 + $0x1] sm:$0x1]
        %v3870 = vld [vmem:[#allocation2 + $0x1] sm:$0xff]
        %v3871 = vld [vmem:[#allocation2 + $0x9] sm:$0xff]
        %v3872 = vlaneseq
        %v3873 = vshrl.u32 %v3872, 7
        %v3874 = vsub.s32 0, %v3873
        %v3875 = vrot.slane %v3869, %v3874
        %v3876 = vmul.f32 %v3875, %v3870
        %v3877 = vmul.f32 %v3875, %v3871
        %v3878 = vadd.f32 %v3867, %v3876
        %v3879 = vadd.f32 %v3868, %v3877
        %v3880 = vld [vmem:[%s39 + $0x2] sm:$0x1]
        %v3881 = vld [vmem:[#allocation2 + $0x2] sm:$0xff]
        %v3882 = vld [vmem:[#allocation2 + $0xa] sm:$0xff]
        %v3883 = vlaneseq
        %v3884 = vshrl.u32 %v3883, 7
        %v3885 = vsub.s32 0, %v3884
        %v3886 = vrot.slane %v3880, %v3885
        %v3887 = vmul.f32 %v3886, %v3881
        %v3888 = vmul.f32 %v3886, %v3882
        %v3889 = vadd.f32 %v3878, %v3887
        %v3890 = vadd.f32 %v3879, %v3888
        %v3891 = vld [vmem:[%s41] sm:$0x1]
        %v3893 = vlaneseq
        %v3894 = vshrl.u32 %v3893, 7
        %v3895 = vsub.s32 0, %v3894
        %v3896 = vrot.slane %v3891, %v3895
        %v3898 = vadd.f32 %v3889, %v3896
        %v3899 = vadd.f32 %v3890, %v3896
        %v3900 = vmax.f32 %v3898, 0.0
        %v3901 = vmax.f32 %v3899, 0.0
        %s3902 = sld [smem:[#allocation5]]
        %v3903 = vstv %s3902
        %v3904 = vmul.f32 %v3900, %v3903
        %v3905 = vmul.f32 %v3901, %v3903
        %s3906 = sld [smem:[#allocation6]]
        %v3907 = vstv %s3906
        %v3908 = vadd.f32 %v3904, %v3907
        %v3909 = vadd.f32 %v3905, %v3907
        %v3910 = vadd.f32 %v3784, %v3908
        %v3911 = vadd.f32 %v3785, %v3909
        %v3912 = vld [vmem:[%s47] sm:$0x1]
        %v3913 = vld [vmem:[%s49] sm:$0x1]
        %3914 = vadd.xlane.f32.xlu0 %v3910
        %v3915 = vpop.xlane.xlu0 %3914
        %3916 = vadd.xlane.f32.xlu0 %v3911
        %v3917 = vpop.xlane.xlu0 %3916
        %v3918 = vmul.f32 %v3915, %v1161
        %v3919 = vmul.f32 %v3917, %v1161
        %v3920 = vsub.f32 %v3910, %v3918
        %v3921 = vsub.f32 %v3911, %v3919
        %v3922 = vmul.f32 %v3920, %v3920
        %v3923 = vmul.f32 %v3921, %v3921
        %3924 = vadd.xlane.f32.xlu0 %v3922
        %v3925 = vpop.xlane.xlu0 %3924
        %3926 = vadd.xlane.f32.xlu0 %v3923
        %v3927 = vpop.xlane.xlu0 %3926
        %v3928 = vmul.f32 %v3925, %v1161
        %v3929 = vmul.f32 %v3927, %v1161
        %v3930 = vadd.f32 %v3928, 1e-05
        %v3931 = vadd.f32 %v3929, 1e-05
        %v3932 = vrsqrt.pop %v3930
        %v3933 = vrsqrt.pop %v3931
        %v3934 = vmul.f32 %v3920, %v3932
        %v3935 = vmul.f32 %v3921, %v3933
        %v3937 = vlaneseq
        %v3938 = vshrl.u32 %v3937, 7
        %v3939 = vsub.s32 0, %v3938
        %v3940 = vrot.slane %v3912, %v3939
        %v3942 = vmul.f32 %v3934, %v3940
        %v3943 = vmul.f32 %v3935, %v3940
        %v3945 = vlaneseq
        %v3946 = vshrl.u32 %v3945, 7
        %v3947 = vsub.s32 0, %v3946
        %v3948 = vrot.slane %v3913, %v3947
        %v3950 = vadd.f32 %v3942, %v3948
        %v3951 = vadd.f32 %v3943, %v3948
        %v3952 = vpack.c.bf16 %v3951, %v3950
        %v3953 = vld [vmem:[%s51] sm:$0xff]
        %v3954 = vld [vmem:[%s51 + $0x8] sm:$0xff]
        %v3955 = vld [vmem:[%s51 + $0x10] sm:$0xff]
        %v3956 = vld [vmem:[%s51 + $0x18] sm:$0xff]
        %v3957 = vld [vmem:[%s51 + $0x20] sm:$0xff]
        %v3958 = vld [vmem:[%s51 + $0x28] sm:$0xff]
        %v3959 = vld [vmem:[%s51 + $0x30] sm:$0xff]
        %v3960 = vld [vmem:[%s51 + $0x38] sm:$0xff]
        %v3961 = vld [vmem:[%s51 + $0x40] sm:$0xff]
        %v3962 = vld [vmem:[%s51 + $0x48] sm:$0xff]
        %v3963 = vld [vmem:[%s51 + $0x50] sm:$0xff]
        %v3964 = vld [vmem:[%s51 + $0x58] sm:$0xff]
        %v3965 = vld [vmem:[%s51 + $0x60] sm:$0xff]
        %v3966 = vld [vmem:[%s51 + $0x68] sm:$0xff]
        %v3967 = vld [vmem:[%s51 + $0x70] sm:$0xff]
        %v3968 = vld [vmem:[%s51 + $0x78] sm:$0xff]
        %v3969 = vld [vmem:[%s53] sm:$0x3]
        %v3971 = vlaneseq
        %v3972 = vshrl.u32 %v3971, 7
        %v3973 = vsub.s32 0, %v3972
        %v3974 = vrot.slane %v3969, %v3973
        %v3975 = vlaneseq
        %v3976 = vshrl.u32 %v3975, 7
        %v3977 = vsub.s32 1, %v3976
        %v3978 = vrot.slane %v3969, %v3977
        %v3997 = vunpack.c.l.b16 %v3953
        %v3998 = vunpack.c.h.b16 %v3953
        %v3999 = vunpack.c.l.b16 %v3954
        %v4000 = vunpack.c.h.b16 %v3954
        %v4001 = vunpack.c.l.b16 %v3955
        %v4002 = vunpack.c.h.b16 %v3955
        %v4003 = vunpack.c.l.b16 %v3956
        %v4004 = vunpack.c.h.b16 %v3956
        %v4005 = vunpack.c.l.b16 %v3957
        %v4006 = vunpack.c.h.b16 %v3957
        %v4007 = vunpack.c.l.b16 %v3958
        %v4008 = vunpack.c.h.b16 %v3958
        %v4009 = vunpack.c.l.b16 %v3959
        %v4010 = vunpack.c.h.b16 %v3959
        %v4011 = vunpack.c.l.b16 %v3960
        %v4012 = vunpack.c.h.b16 %v3960
        %v4013 = vunpack.c.l.b16 %v3961
        %v4014 = vunpack.c.h.b16 %v3961
        %v4015 = vunpack.c.l.b16 %v3962
        %v4016 = vunpack.c.h.b16 %v3962
        %v4017 = vunpack.c.l.b16 %v3963
        %v4018 = vunpack.c.h.b16 %v3963
        %v4019 = vunpack.c.l.b16 %v3964
        %v4020 = vunpack.c.h.b16 %v3964
        %v4021 = vunpack.c.l.b16 %v3965
        %v4022 = vunpack.c.h.b16 %v3965
        %v4023 = vunpack.c.l.b16 %v3966
        %v4024 = vunpack.c.h.b16 %v3966
        %v4025 = vunpack.c.l.b16 %v3967
        %v4026 = vunpack.c.h.b16 %v3967
        %v4027 = vunpack.c.l.b16 %v3968
        %v4028 = vunpack.c.h.b16 %v3968
        %v4029 = vpack.c.b16 %v3999, %v3997
        %v4030 = vpack.c.b16 %v4000, %v3998
        %v4031 = vpack.c.b16 %v4003, %v4001
        %v4032 = vpack.c.b16 %v4004, %v4002
        %v4033 = vpack.c.b16 %v4007, %v4005
        %v4034 = vpack.c.b16 %v4008, %v4006
        %v4035 = vpack.c.b16 %v4011, %v4009
        %v4036 = vpack.c.b16 %v4012, %v4010
        %v4037 = vpack.c.b16 %v4015, %v4013
        %v4038 = vpack.c.b16 %v4016, %v4014
        %v4039 = vpack.c.b16 %v4019, %v4017
        %v4040 = vpack.c.b16 %v4020, %v4018
        %v4041 = vpack.c.b16 %v4023, %v4021
        %v4042 = vpack.c.b16 %v4024, %v4022
        %v4043 = vpack.c.b16 %v4027, %v4025
        %v4044 = vpack.c.b16 %v4028, %v4026
        %4061 = vmatprep.subr.bf16.mxu0 %v4030
        %4062 = vmatpush1.bf16.msra.mxu0 %v4029
        %4063 = vmatprep.subr.bf16.mxu0 %v4032
        %4064 = vmatpush1.bf16.msra.mxu0 %v4031
        %4065 = vmatprep.subr.bf16.mxu0 %v4034
        %4066 = vmatpush1.bf16.msra.mxu0 %v4033
        %4067 = vmatprep.subr.bf16.mxu0 %v4036
        %4068 = vmatpush1.bf16.msra.mxu0 %v4035
        %4069 = vmatprep.subr.bf16.mxu0 %v4038
        %4070 = vmatpush1.bf16.msra.mxu0 %v4037
        %4071 = vmatprep.subr.bf16.mxu0 %v4040
        %4072 = vmatpush1.bf16.msra.mxu0 %v4039
        %4073 = vmatprep.subr.bf16.mxu0 %v4042
        %4074 = vmatpush1.bf16.msra.mxu0 %v4041
        %4075 = vmatprep.subr.bf16.mxu0 %v4044
        %4076 = vmatpush1.bf16.msra.mxu0 %v4043
        %4077 = vmatprep.subr.bf16.mxu0 0
        %4078 = vmatpush1.bf16.msra.mxu0 0
        %4079 = vmatprep.subr.bf16.mxu0 0
        %4080 = vmatpush1.bf16.msra.mxu0 0
        %4081 = vmatprep.subr.bf16.mxu0 0
        %4082 = vmatpush1.bf16.msra.mxu0 0
        %4083 = vmatprep.subr.bf16.mxu0 0
        %4084 = vmatpush1.bf16.msra.mxu0 0
        %4085 = vmatprep.subr.bf16.mxu0 0
        %4086 = vmatpush1.bf16.msra.mxu0 0
        %4087 = vmatprep.subr.bf16.mxu0 0
        %4088 = vmatpush1.bf16.msra.mxu0 0
        %4089 = vmatprep.subr.bf16.mxu0 0
        %4090 = vmatpush1.bf16.msra.mxu0 0
        %4091 = vmatprep.subr.bf16.mxu0 0
        %4092 = vmatpush1.bf16.msra.mxu0 0
        %4093 = vmatprep.mubr.bf16.mxu0 0
        %4094 = vmatmul.mubr.bf16.gmra.mrb[0].mxu0 %v3952
        %v4095 = vpop.f32.mrb[0].mxu0
        %v4096 = vadd.f32 %v3974, %v4095
        %v4097 = vpop.f32.mrb[0].mxu0
        %v4098 = vadd.f32 %v3978, %v4097
        %v4099 = vpop.f32.mrb[0].mxu0
        %v4100 = vadd.f32 %v3974, %v4099
        %v4101 = vpop.f32.mrb[0].mxu0
        %v4102 = vadd.f32 %v3978, %v4101
        %4103 = vdwg.mxu0
        %v4104 = vmax.f32 %v4096, 0.0
        %v4105 = vmax.f32 %v4098, 0.0
        %v4106 = vmax.f32 %v4100, 0.0
        %v4107 = vmax.f32 %v4102, 0.0
        %v4108 = vpack.c.bf16 %v4106, %v4104
        %v4109 = vpack.c.bf16 %v4107, %v4105
        %v4110 = vld [vmem:[#allocation32] sm:$0xf]
        %v4111 = vld [vmem:[#allocation32 + $0x4] sm:$0xf]
        %v4112 = vld [vmem:[#allocation32 + $0x8] sm:$0xf]
        %v4113 = vld [vmem:[#allocation32 + $0xc] sm:$0xf]
        %v4114 = vld [vmem:[#allocation32 + $0x10] sm:$0xf]
        %v4115 = vld [vmem:[#allocation32 + $0x14] sm:$0xf]
        %v4116 = vld [vmem:[#allocation32 + $0x18] sm:$0xf]
        %v4117 = vld [vmem:[#allocation32 + $0x1c] sm:$0xf]
        %v4118 = vld [vmem:[#allocation32 + $0x20] sm:$0xf]
        %v4119 = vld [vmem:[#allocation32 + $0x24] sm:$0xf]
        %v4120 = vld [vmem:[#allocation32 + $0x28] sm:$0xf]
        %v4121 = vld [vmem:[#allocation32 + $0x2c] sm:$0xf]
        %v4122 = vld [vmem:[#allocation32 + $0x30] sm:$0xf]
        %v4123 = vld [vmem:[#allocation32 + $0x34] sm:$0xf]
        %v4124 = vld [vmem:[#allocation32 + $0x38] sm:$0xf]
        %v4125 = vld [vmem:[#allocation32 + $0x3c] sm:$0xf]
        %v4126 = vld [vmem:[#allocation32 + $0x40] sm:$0xf]
        %v4127 = vld [vmem:[#allocation32 + $0x44] sm:$0xf]
        %v4128 = vld [vmem:[#allocation32 + $0x48] sm:$0xf]
        %v4129 = vld [vmem:[#allocation32 + $0x4c] sm:$0xf]
        %v4130 = vld [vmem:[#allocation32 + $0x50] sm:$0xf]
        %v4131 = vld [vmem:[#allocation32 + $0x54] sm:$0xf]
        %v4132 = vld [vmem:[#allocation32 + $0x58] sm:$0xf]
        %v4133 = vld [vmem:[#allocation32 + $0x5c] sm:$0xf]
        %v4134 = vld [vmem:[#allocation32 + $0x60] sm:$0xf]
        %v4135 = vld [vmem:[#allocation32 + $0x64] sm:$0xf]
        %v4136 = vld [vmem:[#allocation32 + $0x68] sm:$0xf]
        %v4137 = vld [vmem:[#allocation32 + $0x6c] sm:$0xf]
        %v4138 = vld [vmem:[#allocation32 + $0x70] sm:$0xf]
        %v4139 = vld [vmem:[#allocation32 + $0x74] sm:$0xf]
        %v4140 = vld [vmem:[#allocation32 + $0x78] sm:$0xf]
        %v4141 = vld [vmem:[#allocation32 + $0x7c] sm:$0xf]
        %v4142 = vld [vmem:[%s57] sm:$0x1]
        %v4144 = vlaneseq
        %v4145 = vshrl.u32 %v4144, 7
        %v4146 = vsub.s32 0, %v4145
        %v4147 = vrot.slane %v4142, %v4146
        %v4181 = vunpack.c.l.b16 %v4110
        %v4182 = vunpack.c.l.b16 %v4111
        %v4183 = vunpack.c.l.b16 %v4112
        %v4184 = vunpack.c.l.b16 %v4113
        %v4185 = vunpack.c.l.b16 %v4114
        %v4186 = vunpack.c.l.b16 %v4115
        %v4187 = vunpack.c.l.b16 %v4116
        %v4188 = vunpack.c.l.b16 %v4117
        %v4189 = vunpack.c.l.b16 %v4118
        %v4190 = vunpack.c.l.b16 %v4119
        %v4191 = vunpack.c.l.b16 %v4120
        %v4192 = vunpack.c.l.b16 %v4121
        %v4193 = vunpack.c.l.b16 %v4122
        %v4194 = vunpack.c.l.b16 %v4123
        %v4195 = vunpack.c.l.b16 %v4124
        %v4196 = vunpack.c.l.b16 %v4125
        %v4197 = vunpack.c.l.b16 %v4126
        %v4198 = vunpack.c.l.b16 %v4127
        %v4199 = vunpack.c.l.b16 %v4128
        %v4200 = vunpack.c.l.b16 %v4129
        %v4201 = vunpack.c.l.b16 %v4130
        %v4202 = vunpack.c.l.b16 %v4131
        %v4203 = vunpack.c.l.b16 %v4132
        %v4204 = vunpack.c.l.b16 %v4133
        %v4205 = vunpack.c.l.b16 %v4134
        %v4206 = vunpack.c.l.b16 %v4135
        %v4207 = vunpack.c.l.b16 %v4136
        %v4208 = vunpack.c.l.b16 %v4137
        %v4209 = vunpack.c.l.b16 %v4138
        %v4210 = vunpack.c.l.b16 %v4139
        %v4211 = vunpack.c.l.b16 %v4140
        %v4212 = vunpack.c.l.b16 %v4141
        %v4213 = vpack.c.b16 %v4182, %v4181
        %v4214 = vpack.c.b16 %v4184, %v4183
        %v4215 = vpack.c.b16 %v4186, %v4185
        %v4216 = vpack.c.b16 %v4188, %v4187
        %v4217 = vpack.c.b16 %v4190, %v4189
        %v4218 = vpack.c.b16 %v4192, %v4191
        %v4219 = vpack.c.b16 %v4194, %v4193
        %v4220 = vpack.c.b16 %v4196, %v4195
        %v4221 = vpack.c.b16 %v4198, %v4197
        %v4222 = vpack.c.b16 %v4200, %v4199
        %v4223 = vpack.c.b16 %v4202, %v4201
        %v4224 = vpack.c.b16 %v4204, %v4203
        %v4225 = vpack.c.b16 %v4206, %v4205
        %v4226 = vpack.c.b16 %v4208, %v4207
        %v4227 = vpack.c.b16 %v4210, %v4209
        %v4228 = vpack.c.b16 %v4212, %v4211
        %4245 = vmatprep.subr.bf16.mxu0 0
        %4246 = vmatpush1.bf16.msra.mxu0 %v4213
        %4247 = vmatprep.subr.bf16.mxu0 0
        %4248 = vmatpush1.bf16.msra.mxu0 %v4214
        %4249 = vmatprep.subr.bf16.mxu0 0
        %4250 = vmatpush1.bf16.msra.mxu0 %v4215
        %4251 = vmatprep.subr.bf16.mxu0 0
        %4252 = vmatpush1.bf16.msra.mxu0 %v4216
        %4253 = vmatprep.subr.bf16.mxu0 0
        %4254 = vmatpush1.bf16.msra.mxu0 %v4217
        %4255 = vmatprep.subr.bf16.mxu0 0
        %4256 = vmatpush1.bf16.msra.mxu0 %v4218
        %4257 = vmatprep.subr.bf16.mxu0 0
        %4258 = vmatpush1.bf16.msra.mxu0 %v4219
        %4259 = vmatprep.subr.bf16.mxu0 0
        %4260 = vmatpush1.bf16.msra.mxu0 %v4220
        %4261 = vmatprep.subr.bf16.mxu0 0
        %4262 = vmatpush1.bf16.msra.mxu0 %v4221
        %4263 = vmatprep.subr.bf16.mxu0 0
        %4264 = vmatpush1.bf16.msra.mxu0 %v4222
        %4265 = vmatprep.subr.bf16.mxu0 0
        %4266 = vmatpush1.bf16.msra.mxu0 %v4223
        %4267 = vmatprep.subr.bf16.mxu0 0
        %4268 = vmatpush1.bf16.msra.mxu0 %v4224
        %4269 = vmatprep.subr.bf16.mxu0 0
        %4270 = vmatpush1.bf16.msra.mxu0 %v4225
        %4271 = vmatprep.subr.bf16.mxu0 0
        %4272 = vmatpush1.bf16.msra.mxu0 %v4226
        %4273 = vmatprep.subr.bf16.mxu0 0
        %4274 = vmatpush1.bf16.msra.mxu0 %v4227
        %4275 = vmatprep.subr.bf16.mxu0 0
        %4276 = vmatpush1.bf16.msra.mxu0 %v4228
        %4277 = vmatprep.mubr.bf16.mxu0 %v4109
        %4278 = vmatmul.mubr.bf16.gmra.mrb[0].mxu0 %v4108
        %v4279 = vpop.f32.mrb[0].mxu0
        %v4280 = vadd.f32 %v4147, %v4279
        %v4281 = vpop.f32.mrb[0].mxu0
        %v4282 = vpop.f32.mrb[0].mxu0
        %v4283 = vadd.f32 %v4147, %v4282
        %v4284 = vpop.f32.mrb[0].mxu0
        %4285 = vdwg.mxu0
        %v4286 = vmul.f32 %v4280, 0.5
        %v4287 = vmul.f32 %v4283, 0.5
        %v4288 = vadd.f32 %v3910, %v4286
        %v4289 = vadd.f32 %v3911, %v4287
        %v4290 = vld [vmem:[%s59] sm:$0x1]
        %v4291 = vld [vmem:[%s61] sm:$0x1]
        %4292 = vadd.xlane.f32.xlu0 %v4288
        %v4293 = vpop.xlane.xlu0 %4292
        %4294 = vadd.xlane.f32.xlu0 %v4289
        %v4295 = vpop.xlane.xlu0 %4294
        %v4296 = vmul.f32 %v4293, %v1161
        %v4297 = vmul.f32 %v4295, %v1161
        %v4298 = vsub.f32 %v4288, %v4296
        %v4299 = vsub.f32 %v4289, %v4297
        %v4300 = vmul.f32 %v4298, %v4298
        %v4301 = vmul.f32 %v4299, %v4299
        %4302 = vadd.xlane.f32.xlu0 %v4300
        %v4303 = vpop.xlane.xlu0 %4302
        %4304 = vadd.xlane.f32.xlu0 %v4301
        %v4305 = vpop.xlane.xlu0 %4304
        %v4306 = vmul.f32 %v4303, %v1161
        %v4307 = vmul.f32 %v4305, %v1161
        %v4308 = vadd.f32 %v4306, 1e-05
        %v4309 = vadd.f32 %v4307, 1e-05
        %v4310 = vrsqrt.pop %v4308
        %v4311 = vrsqrt.pop %v4309
        %v4312 = vmul.f32 %v4298, %v4310
        %v4313 = vmul.f32 %v4299, %v4311
        %v4315 = vlaneseq
        %v4316 = vshrl.u32 %v4315, 7
        %v4317 = vsub.s32 0, %v4316
        %v4318 = vrot.slane %v4290, %v4317
        %v4320 = vmul.f32 %v4312, %v4318
        %v4321 = vmul.f32 %v4313, %v4318
        %v4323 = vlaneseq
        %v4324 = vshrl.u32 %v4323, 7
        %v4325 = vsub.s32 0, %v4324
        %v4326 = vrot.slane %v4291, %v4325
        %v4328 = vadd.f32 %v4320, %v4326
        %v4329 = vadd.f32 %v4321, %v4326
        %4330 = vst [vmem:[%s1150] sm:$0xff] %v4328
        %4331 = vst [vmem:[%s1150 + $0x8] sm:$0xff] %v4329
        %s4332 = sand.u32 %s738, 1
        %s4333 = scalar_lea.sflag [#allocation9], %s4332
        %s4334 = sand.u32 %s738, 1
        %s4335 = smul.addr %s4334, 16
        %s4336 = scalar_lea.vmem [#allocation34], %s4335
        // Predicated region
        $region205: #{tpu_custom_call.1} parent=139 // pred_check
          %p4337 = pneg %p748
        $region206: #{tpu_custom_call.1} parent=139 // pred_check_branch
          %4339 = sbr.rel (%p4337) target = $region208
        $region207: #{tpu_custom_call.1} parent=139 // pred_region
          %s4341 = ssub.s32 256, 256
          %4342 = vsyncadd %s4333, %s4341
          %s4343 = smul.addr %s95, 2
          %s4344 = smul.addr %s4343, 128
          %s4345 = scalar_lea.hbm %s63, %s4344
          %s4346 = sshll.u32 %s4336, 4
          %s4347 = int_to_ptr.vmem [resolvable:$true] %s4346
          %4352 = dma.vmem_to_hbm [thread:$0]  %s4347, 256, %s4345, %s4333, 128, 128, 8
        $region208: #{tpu_custom_call.1} parent=139 // pred_fallthru
          _
      $region140: #{tpu_custom_call.1} parent=5 // pred_fallthru
        _
      %p4353 = scmp.le.s32.totalorder 2, %s90
      // Predicated region
      $region209: #{tpu_custom_call.1} parent=5 // pred_check
        %p4354 = pneg %p4353
      $region210: #{tpu_custom_call.1} parent=5 // pred_check_branch
        %4356 = sbr.rel (%p4354) target = $region212
      $region211: #{tpu_custom_call.1} parent=5 // pred_region
        %s4357 = ssub.s32 %s90, 2
        // Predicated region
        $region213: #{tpu_custom_call.1} parent=211 // pred_check
          %p4358 = pneg %p754
        $region214: #{tpu_custom_call.1} parent=211 // pred_check_branch
          %4360 = sbr.rel (%p4358) target = $region216
        $region215: #{tpu_custom_call.1} parent=211 // pred_region
          %s4361 = sand.u32 %s739, 1
          %s4362 = scalar_lea.sflag [#allocation9], %s4361
          %s4363 = sand.u32 %s739, 1
          %s4364 = smul.addr %s4363, 16
          %s4365 = scalar_lea.vmem [#allocation34], %s4364
          %4366 = dma.done %s4362, 256
        $region216: #{tpu_custom_call.1} parent=211 // pred_fallthru
          _
      $region212: #{tpu_custom_call.1} parent=5 // pred_fallthru
        _
    $region6: #{tpu_custom_call.1} parent=1 // loop_footer
      %s94 = sadd.s32 1, %s90
    $region7: #{tpu_custom_call.1} parent=1 // loop_footer_branch
      %89 = sbr.rel target = $region3
    $region8: #{tpu_custom_call.1} parent=1 // loop_exit
      _
    %4367 = vsyncpa [#allocation8], 1
    %s4368 = scalar_lea.sflag [#allocation8], 1
    %4369 = vsyncpa %s4368, 1
    %4370 = vsyncpa [#allocation13], 1
    %4371 = vsyncpa [#allocation16], 1
    %4372 = vsyncpa [#allocation19], 1
    %4373 = vsyncpa [#allocation22], 1
    %4374 = vsyncpa [#allocation25], 1
    %4375 = vsyncpa [#allocation28], 1
    %4376 = vsyncpa [#allocation33], 1
    %4377 = vsyncpa [#allocation9], 1
    %s4378 = scalar_lea.sflag [#allocation9], 1
    %4379 = vsyncpa %s4378, 1
    %4380 = vsyncpa [#allocation10], 1
    %s4381 = scalar_lea.sflag [#allocation10], 1
    %4382 = vsyncpa %s4381, 1
    %4383 = vsyncpa [#allocation11], 1
    %s4384 = scalar_lea.sflag [#allocation11], 1
    %4385 = vsyncpa %s4384, 1

</llo_original>
